<compile_context>
chip_gen: v6e
topology: v6e:2x2x1
jax: 0.10.0
libtpu: 0.0.40
codegen_flags: <defaults>
</compile_context>

<pallas_src>
import jax
import jax.numpy as jnp
from jax.experimental import pallas as pl
from jax.experimental.pallas import tpu as pltpu

HIDDEN = 32            # config.hidden_size for the synthetic test
D1, D2, D3 = 256, 512, 784
D3P = 896              # 784 padded up to 7*128 for lane-dense output stores
LEAKY_ALPHA = 0.2      # config.leaky_relu_alpha


def _leaky_relu(x, alpha):
    return jnp.where(x > 0, x, alpha * x)


def ffdecoder_kernel(x_ref, w1_ref, w2_ref, w3_ref, b_ref, o_ref):
    # x tile: (TM, HIDDEN) f32.  Weights: bf16, [in, out] layout, VMEM-resident.
    # b_ref: (3, D3P) f32 packed biases (row 0 -> b1, row 1 -> b2, row 2 -> b3).
    x = x_ref[...]
    b = b_ref[...]

    # Layer 1: bf16 MXU operands, f32 accumulation; elementwise math in f32.
    h = jnp.dot(x.astype(jnp.bfloat16), w1_ref[...],
                preferred_element_type=jnp.float32)
    h = _leaky_relu(h + b[0:1, :D1], LEAKY_ALPHA)

    # Layer 2
    h = jnp.dot(h.astype(jnp.bfloat16), w2_ref[...],
                preferred_element_type=jnp.float32)
    h = _leaky_relu(h + b[1:2, :D2], LEAKY_ALPHA)

    # Layer 3 (no activation); output already f32, lane-dense 896-wide store.
    out = jnp.dot(h.astype(jnp.bfloat16), w3_ref[...],
                  preferred_element_type=jnp.float32)
    o_ref[...] = out + b[2:3, :]


def _pick_tile_m():
    # v5e: 128 rows already fill its 4x128x128 MXU; v6e/v7x: 256 fills 2x256x256.
    try:
        kind = jax.devices()[0].device_kind.lower()
    except Exception:
        return 256
    return 128 if "v5" in kind else 256


def ffdecoder_forward(x, kernel_params, tile_m=None):
    """x: [B, HIDDEN] f32 -> [B, 1, 28, 28] f32 (matches torch .view(-1,1,28,28))."""
    w1b, w2b, w3b, b_packed = kernel_params
    B, H = x.shape
    tm = tile_m or _pick_tile_m()

    # Pad batch up to a multiple of the tile so every grid step is full-size.
    b_pad = (-B) % tm
    if b_pad:
        x = jnp.pad(x, ((0, b_pad), (0, 0)))
    Bp = B + b_pad
    n_tiles = Bp // tm

    flat = pl.pallas_call(
        ffdecoder_kernel,
        out_shape=jax.ShapeDtypeStruct((Bp, D3P), jnp.float32),
        grid_spec=pltpu.PrefetchScalarGridSpec(
            num_scalar_prefetch=0,
            grid=(n_tiles,),
            in_specs=[
                pl.BlockSpec((tm, H), lambda i: (i, 0)),      # activations, batch-tiled
                pl.BlockSpec((H, D1), lambda i: (0, 0)),      # weights: resident
                pl.BlockSpec((D1, D2), lambda i: (0, 0)),
                pl.BlockSpec((D2, D3P), lambda i: (0, 0)),
                pl.BlockSpec((3, D3P), lambda i: (0, 0)),     # packed biases: resident
            ],
            out_specs=pl.BlockSpec((tm, D3P), lambda i: (i, 0)),
        ),
        compiler_params=pltpu.CompilerParams(
            # Independent batch tiles: shard grid steps across both v7x TCs.
            dimension_semantics=("parallel",),
        ),
    )(x, w1b, w2b, w3b, b_packed)

    # Drop batch/feature padding, then the torch-equivalent view.
    return flat[:B, :D3].reshape(-1, 1, 28, 28)


def init_params(key, hidden=HIDDEN):
    """Deterministic synthetic f32 params. Weights stored as [in, out]."""
    ks = jax.random.split(key, 6)

    def lin(kw, kb, fan_in, fan_out):
        # torch.nn.Linear default init: U(-1/sqrt(fan_in), 1/sqrt(fan_in))
        bound = 1.0 / jnp.sqrt(fan_in)
        w = jax.random.uniform(kw, (fan_in, fan_out), jnp.float32, -bound, bound)
        b = jax.random.uniform(kb, (fan_out,), jnp.float32, -bound, bound)
        return w, b

    w1, b1 = lin(ks[0], ks[1], hidden, D1)
    w2, b2 = lin(ks[2], ks[3], D1, D2)
    w3, b3 = lin(ks[4], ks[5], D2, D3)
    return (w1, b1, w2, b2, w3, b3)


def prepare_kernel_params(params):
    """bf16 weights (w3 zero-padded 784->896) + packed f32 biases (3, 896)."""
    w1, b1, w2, b2, w3, b3 = params
    w3p = jnp.pad(w3, ((0, 0), (0, D3P - D3)))
    b_packed = jnp.zeros((3, D3P), jnp.float32)
    b_packed = b_packed.at[0, :D1].set(b1)
    b_packed = b_packed.at[1, :D2].set(b2)
    b_packed = b_packed.at[2, :D3].set(b3)
    return (w1.astype(jnp.bfloat16),
            w2.astype(jnp.bfloat16),
            w3p.astype(jnp.bfloat16),
            b_packed)


def ffdecoder_reference(x, params):
    """Plain-JAX f32 reference mirroring the PyTorch forward."""
    w1, b1, w2, b2, w3, b3 = params
    h = _leaky_relu(x @ w1 + b1, LEAKY_ALPHA)
    h = _leaky_relu(h @ w2 + b2, LEAKY_ALPHA)
    out = h @ w3 + b3
    return out.reshape(-1, 1, 28, 28)


if __name__ == "__main__":
    key = jax.random.PRNGKey(0)
    k_param, k_x = jax.random.split(key)

    B = 8
    params = init_params(k_param)
    kernel_params = prepare_kernel_params(params)
    x = jax.random.normal(k_x, (B, HIDDEN), dtype=jnp.float32)

    out = ffdecoder_forward(x, kernel_params)
    out = jax.block_until_ready(out)

    ref = ffdecoder_reference(x, params)
    assert out.shape == (B, 1, 28, 28), out.shape
    # bf16 MXU operands (f32 accumulation) -> looser tolerance than pure f32.
    assert jnp.allclose(out, ref, atol=3e-2, rtol=3e-2), "mismatch vs reference"

    print("KERNEL_OK")
</pallas_src>

<mosaic_0001>
module attributes {stable_mosaic.version = 11 : i64} {
  func.func @ffdecoder_kernel(%arg0: i32, %arg1: memref<256x32xf32, #tpu.memory_space<vmem>>, %arg2: memref<32x256xbf16, #tpu.memory_space<vmem>>, %arg3: memref<256x512xbf16, #tpu.memory_space<vmem>>, %arg4: memref<512x896xbf16, #tpu.memory_space<vmem>>, %arg5: memref<3x896xf32, #tpu.memory_space<vmem>>, %arg6: memref<256x896xf32, #tpu.memory_space<vmem>>) attributes {dimension_semantics = [#tpu.dimension_semantics<parallel>], iteration_bounds = array<i64: 1>, scalar_prefetch = 0 : i64, scratch_operands = 0 : i64, tpu.core_type = #tpu.core_type<tc>, window_params = [{transform_indices = @transform_0, window_bounds = array<i64: 256, 32>}, {pipeline_mode = #tpu.pipeline_mode<synchronous>, transform_indices = @transform_1, window_bounds = array<i64: 32, 256>}, {pipeline_mode = #tpu.pipeline_mode<synchronous>, transform_indices = @transform_2, window_bounds = array<i64: 256, 512>}, {pipeline_mode = #tpu.pipeline_mode<synchronous>, transform_indices = @transform_3, window_bounds = array<i64: 512, 896>}, {pipeline_mode = #tpu.pipeline_mode<synchronous>, transform_indices = @transform_4, window_bounds = array<i64: 3, 896>}, {transform_indices = @transform_5, window_bounds = array<i64: 256, 896>}]} {
    %c0 = arith.constant 0 : index
    %c0_0 = arith.constant 0 : index
    %0 = vector.load %arg1[%c0, %c0_0] : memref<256x32xf32, #tpu.memory_space<vmem>>, vector<256x32xf32>
    %c0_1 = arith.constant 0 : index
    %c0_2 = arith.constant 0 : index
    %1 = vector.load %arg5[%c0_1, %c0_2] : memref<3x896xf32, #tpu.memory_space<vmem>>, vector<3x896xf32>
    %2 = arith.truncf %0 : vector<256x32xf32> to vector<256x32xbf16>
    %c0_3 = arith.constant 0 : index
    %c0_4 = arith.constant 0 : index
    %3 = vector.load %arg2[%c0_3, %c0_4] : memref<32x256xbf16, #tpu.memory_space<vmem>>, vector<32x256xbf16>
    %cst = arith.constant dense<0.000000e+00> : vector<256x256xf32>
    %4 = tpu.matmul %2, %3, %cst {dimension_numbers = #tpu.dot_dimension_numbers<[1], [0], [0], [1], [0, 0, 1, 1], [], []>} : vector<256x32xbf16>, vector<32x256xbf16>, vector<256x256xf32> -> vector<256x256xf32>
    %5 = vector.extract_strided_slice %1 {offsets = [0, 0], sizes = [1, 256], strides = [1, 1]} : vector<3x896xf32> to vector<1x256xf32>
    %6 = vector.broadcast %5 : vector<1x256xf32> to vector<256x256xf32>
    %7 = arith.addf %4, %6 : vector<256x256xf32>
    %cst_5 = arith.constant 0.000000e+00 : f32
    %8 = vector.broadcast %cst_5 : f32 to vector<256x256xf32>
    %9 = arith.cmpf ogt, %7, %8 : vector<256x256xf32>
    %cst_6 = arith.constant 2.000000e-01 : f32
    %10 = vector.broadcast %cst_6 : f32 to vector<256x256xf32>
    %11 = arith.mulf %10, %7 : vector<256x256xf32>
    %12 = arith.select %9, %7, %11 : vector<256x256xi1>, vector<256x256xf32>
    %13 = arith.truncf %12 : vector<256x256xf32> to vector<256x256xbf16>
    %c0_7 = arith.constant 0 : index
    %c0_8 = arith.constant 0 : index
    %14 = vector.load %arg3[%c0_7, %c0_8] : memref<256x512xbf16, #tpu.memory_space<vmem>>, vector<256x512xbf16>
    %cst_9 = arith.constant dense<0.000000e+00> : vector<256x512xf32>
    %15 = tpu.matmul %13, %14, %cst_9 {dimension_numbers = #tpu.dot_dimension_numbers<[1], [0], [0], [1], [0, 0, 1, 1], [], []>} : vector<256x256xbf16>, vector<256x512xbf16>, vector<256x512xf32> -> vector<256x512xf32>
    %16 = vector.extract_strided_slice %1 {offsets = [1, 0], sizes = [1, 512], strides = [1, 1]} : vector<3x896xf32> to vector<1x512xf32>
    %17 = vector.broadcast %16 : vector<1x512xf32> to vector<256x512xf32>
    %18 = arith.addf %15, %17 : vector<256x512xf32>
    %cst_10 = arith.constant 0.000000e+00 : f32
    %19 = vector.broadcast %cst_10 : f32 to vector<256x512xf32>
    %20 = arith.cmpf ogt, %18, %19 : vector<256x512xf32>
    %cst_11 = arith.constant 2.000000e-01 : f32
    %21 = vector.broadcast %cst_11 : f32 to vector<256x512xf32>
    %22 = arith.mulf %21, %18 : vector<256x512xf32>
    %23 = arith.select %20, %18, %22 : vector<256x512xi1>, vector<256x512xf32>
    %24 = arith.truncf %23 : vector<256x512xf32> to vector<256x512xbf16>
    %c0_12 = arith.constant 0 : index
    %c0_13 = arith.constant 0 : index
    %25 = vector.load %arg4[%c0_12, %c0_13] : memref<512x896xbf16, #tpu.memory_space<vmem>>, vector<512x896xbf16>
    %cst_14 = arith.constant dense<0.000000e+00> : vector<256x896xf32>
    %26 = tpu.matmul %24, %25, %cst_14 {dimension_numbers = #tpu.dot_dimension_numbers<[1], [0], [0], [1], [0, 0, 1, 1], [], []>} : vector<256x512xbf16>, vector<512x896xbf16>, vector<256x896xf32> -> vector<256x896xf32>
    %27 = vector.extract_strided_slice %1 {offsets = [2, 0], sizes = [1, 896], strides = [1, 1]} : vector<3x896xf32> to vector<1x896xf32>
    %28 = vector.broadcast %27 : vector<1x896xf32> to vector<256x896xf32>
    %29 = arith.addf %26, %28 : vector<256x896xf32>
    %c0_15 = arith.constant 0 : index
    %c0_16 = arith.constant 0 : index
    %30 = vector.load %arg6[%c0_15, %c0_16] : memref<256x896xf32, #tpu.memory_space<vmem>>, vector<256x896xf32>
    tpu.vector_store %arg6[%c0_15, %c0_16], %29 {strides = array<i32>} : memref<256x896xf32, #tpu.memory_space<vmem>>, vector<256x896xf32>,
    return
  }
  func.func @transform_0(%arg0: i32) -> (i32, i32) {
    %c0_i32 = arith.constant 0 : i32
    %c0_i32_0 = arith.constant 0 : i32
    return %arg0, %c0_i32 : i32, i32
  }
  func.func @transform_1(%arg0: i32) -> (i32, i32) {
    %c0_i32 = arith.constant 0 : i32
    %c0_i32_0 = arith.constant 0 : i32
    %c0_i32_1 = arith.constant 0 : i32
    return %c0_i32, %c0_i32_0 : i32, i32
  }
  func.func @transform_2(%arg0: i32) -> (i32, i32) {
    %c0_i32 = arith.constant 0 : i32
    %c0_i32_0 = arith.constant 0 : i32
    %c0_i32_1 = arith.constant 0 : i32
    return %c0_i32, %c0_i32_0 : i32, i32
  }
  func.func @transform_3(%arg0: i32) -> (i32, i32) {
    %c0_i32 = arith.constant 0 : i32
    %c0_i32_0 = arith.constant 0 : i32
    %c0_i32_1 = arith.constant 0 : i32
    return %c0_i32, %c0_i32_0 : i32, i32
  }
  func.func @transform_4(%arg0: i32) -> (i32, i32) {
    %c0_i32 = arith.constant 0 : i32
    %c0_i32_0 = arith.constant 0 : i32
    %c0_i32_1 = arith.constant 0 : i32
    return %c0_i32, %c0_i32_0 : i32, i32
  }
  func.func @transform_5(%arg0: i32) -> (i32, i32) {
    %c0_i32 = arith.constant 0 : i32
    %c0_i32_0 = arith.constant 0 : i32
    return %arg0, %c0_i32 : i32, i32
  }
}

</mosaic_0001>

<llo_original>
// kernel: tpu_custom_call.1
$region0: #{tpu_custom_call.1}
  #allocation0 [shape = 'u32[]', space=smem, size = 0x4, offset = 0x4, fixed_abs, tag = 'smem constant byte address 0x4 - core index']
  #allocation1 [shape = 'u32[144,128]{1,0:T(1,128)}', space=vmem, size = 0x12000, scoped, tag = 'internal scratch']
  %s0 = inlined_call_operand.vmem [shape: f32[256,32], index: 0, kind: input, shape index: {}]
  %s1 = inlined_call_operand.vmem [shape: bf16[32,256], index: 1, kind: input, shape index: {}]
  %s2 = inlined_call_operand.hbm [shape: bf16[256,512], index: 2, kind: input, shape index: {}]
  %s3 = inlined_call_operand.hbm [shape: bf16[512,896], index: 3, kind: input, shape index: {}]
  %s4 = inlined_call_operand.vmem [shape: f32[3,896], index: 4, kind: input, shape index: {}]
  %s5 = inlined_call_operand.hbm [shape: f32[256,896], index: 5, kind: output, shape index: {}]
  %s6 = sld [smem:[#allocation0]]
  $region38: #{tpu_custom_call.1} parent=0
    _
  %s8 = ssub.s32 1, %s6
  %s9 = scalar_select 0, %s8, %s6
  $region1: #{tpu_custom_call.1} parent=0
    #allocation2 [shape = 'u8[262144]{0}', space=vmem, size = 0x40000, scoped, tag = 'input window, operand 2, single buffered']
    #allocation3 [shape = 's32[1]{0}', space=sflag, size = 0x4, scoped, tag = 'scoped memory for tpu_custom_call.1']
    #allocation4 [shape = 's32[1]{0}', space=sflag, size = 0x4, scoped, tag = 'scoped memory for tpu_custom_call.1']
    #allocation5 [shape = 'u8[917504]{0}', space=vmem, size = 0xe0000, scoped, tag = 'input window, operand 3, single buffered']
    #allocation6 [shape = 's32[1]{0}', space=sflag, size = 0x4, scoped, tag = 'scoped memory for tpu_custom_call.1']
    #allocation7 [shape = 'u8[917504]{0}', space=vmem, size = 0xe0000, scoped, tag = 'output window, operand 0, single buffered']
    %10 = vsyncpa [#allocation3], 0
    %11 = vsyncpa [#allocation6], 0
    %12 = vsyncpa [#allocation4], 0
    // Predicated region
    $region2: #{tpu_custom_call.1} parent=1 // pred_check
      _
    $region3: #{tpu_custom_call.1} parent=1 // pred_check_branch
      %14 = sbr.rel (0) target = $region5
    $region4: #{tpu_custom_call.1} parent=1 // pred_region
      _
    $region5: #{tpu_custom_call.1} parent=1 // pred_fallthru
      _
    // Predicated region
    $region6: #{tpu_custom_call.1} parent=1 // pred_check
      _
    $region7: #{tpu_custom_call.1} parent=1 // pred_check_branch
      %16 = sbr.rel (0) target = $region9
    $region8: #{tpu_custom_call.1} parent=1 // pred_region
      _
    $region9: #{tpu_custom_call.1} parent=1 // pred_fallthru
      _
    // Predicated region
    $region10: #{tpu_custom_call.1} parent=1 // pred_check
      _
    $region11: #{tpu_custom_call.1} parent=1 // pred_check_branch
      %18 = sbr.rel (0) target = $region13
    $region12: #{tpu_custom_call.1} parent=1 // pred_region
      %s20 = ssub.s32 8192, 8192
      %21 = vsyncadd [#allocation3], %s20
      %s22 = sshll.u32 [#allocation2], 4
      %s23 = int_to_ptr.vmem [resolvable:$true] %s22
      %28 = dma.hbm_to_vmem [thread:$0]  %s2, 8192, %s23, [#allocation3], 256, 256, 16
    $region13: #{tpu_custom_call.1} parent=1 // pred_fallthru
      _
    // Predicated region
    $region14: #{tpu_custom_call.1} parent=1 // pred_check
      _
    $region15: #{tpu_custom_call.1} parent=1 // pred_check_branch
      %30 = sbr.rel (0) target = $region17
    $region16: #{tpu_custom_call.1} parent=1 // pred_region
      %s32 = ssub.s32 28672, 28672
      %33 = vsyncadd [#allocation6], %s32
      %s34 = sshll.u32 [#allocation5], 4
      %s35 = int_to_ptr.vmem [resolvable:$true] %s34
      %40 = dma.hbm_to_vmem [thread:$0]  %s3, 28672, %s35, [#allocation6], 448, 448, 28
    $region17: #{tpu_custom_call.1} parent=1 // pred_fallthru
      _
    // Predicated region
    $region18: #{tpu_custom_call.1} parent=1 // pred_check
      _
    $region19: #{tpu_custom_call.1} parent=1 // pred_check_branch
      %42 = sbr.rel (0) target = $region21
    $region20: #{tpu_custom_call.1} parent=1 // pred_region
      _
    $region21: #{tpu_custom_call.1} parent=1 // pred_fallthru
      _
    // Predicated region
    $region22: #{tpu_custom_call.1} parent=1 // pred_check
      _
    $region23: #{tpu_custom_call.1} parent=1 // pred_check_branch
      %44 = sbr.rel (0) target = $region25
    $region24: #{tpu_custom_call.1} parent=1 // pred_region
      %45 = dma.done [#allocation3], 8192
    $region25: #{tpu_custom_call.1} parent=1 // pred_fallthru
      _
    // Predicated region
    $region26: #{tpu_custom_call.1} parent=1 // pred_check
      _
    $region27: #{tpu_custom_call.1} parent=1 // pred_check_branch
      %47 = sbr.rel (0) target = $region29
    $region28: #{tpu_custom_call.1} parent=1 // pred_region
      %48 = dma.done [#allocation6], 28672
    $region29: #{tpu_custom_call.1} parent=1 // pred_fallthru
      _
    %v50 = vld [vmem:[%s0] sm:$0xff]
    %v51 = vld [vmem:[%s0 + $0x8] sm:$0xff]
    %v52 = vld [vmem:[%s0 + $0x10] sm:$0xff]
    %v53 = vld [vmem:[%s0 + $0x18] sm:$0xff]
    %v54 = vld [vmem:[%s0 + $0x20] sm:$0xff]
    %v55 = vld [vmem:[%s0 + $0x28] sm:$0xff]
    %v56 = vld [vmem:[%s0 + $0x30] sm:$0xff]
    %v57 = vld [vmem:[%s0 + $0x38] sm:$0xff]
    %v58 = vld [vmem:[%s0 + $0x40] sm:$0xff]
    %v59 = vld [vmem:[%s0 + $0x48] sm:$0xff]
    %v60 = vld [vmem:[%s0 + $0x50] sm:$0xff]
    %v61 = vld [vmem:[%s0 + $0x58] sm:$0xff]
    %v62 = vld [vmem:[%s0 + $0x60] sm:$0xff]
    %v63 = vld [vmem:[%s0 + $0x68] sm:$0xff]
    %v64 = vld [vmem:[%s0 + $0x70] sm:$0xff]
    %v65 = vld [vmem:[%s0 + $0x78] sm:$0xff]
    %v66 = vld [vmem:[%s0 + $0x80] sm:$0xff]
    %v67 = vld [vmem:[%s0 + $0x88] sm:$0xff]
    %v68 = vld [vmem:[%s0 + $0x90] sm:$0xff]
    %v69 = vld [vmem:[%s0 + $0x98] sm:$0xff]
    %v70 = vld [vmem:[%s0 + $0xa0] sm:$0xff]
    %v71 = vld [vmem:[%s0 + $0xa8] sm:$0xff]
    %v72 = vld [vmem:[%s0 + $0xb0] sm:$0xff]
    %v73 = vld [vmem:[%s0 + $0xb8] sm:$0xff]
    %v74 = vld [vmem:[%s0 + $0xc0] sm:$0xff]
    %v75 = vld [vmem:[%s0 + $0xc8] sm:$0xff]
    %v76 = vld [vmem:[%s0 + $0xd0] sm:$0xff]
    %v77 = vld [vmem:[%s0 + $0xd8] sm:$0xff]
    %v78 = vld [vmem:[%s0 + $0xe0] sm:$0xff]
    %v79 = vld [vmem:[%s0 + $0xe8] sm:$0xff]
    %v80 = vld [vmem:[%s0 + $0xf0] sm:$0xff]
    %v81 = vld [vmem:[%s0 + $0xf8] sm:$0xff]
    %v82 = vld [vmem:[%s4] sm:$0x77]
    %v83 = vld [vmem:[%s4 + $0x8] sm:$0x77]
    %v84 = vld [vmem:[%s4 + $0x10] sm:$0x77]
    %v85 = vld [vmem:[%s4 + $0x18] sm:$0x7]
    %v86 = vpack.c.bf16 %v51, %v50
    %v87 = vpack.c.bf16 %v53, %v52
    %v88 = vpack.c.bf16 %v55, %v54
    %v89 = vpack.c.bf16 %v57, %v56
    %v90 = vpack.c.bf16 %v59, %v58
    %v91 = vpack.c.bf16 %v61, %v60
    %v92 = vpack.c.bf16 %v63, %v62
    %v93 = vpack.c.bf16 %v65, %v64
    %v94 = vpack.c.bf16 %v67, %v66
    %v95 = vpack.c.bf16 %v69, %v68
    %v96 = vpack.c.bf16 %v71, %v70
    %v97 = vpack.c.bf16 %v73, %v72
    %v98 = vpack.c.bf16 %v75, %v74
    %v99 = vpack.c.bf16 %v77, %v76
    %v100 = vpack.c.bf16 %v79, %v78
    %v101 = vpack.c.bf16 %v81, %v80
    %v102 = vld [vmem:[%s1] sm:$0xff]
    %v103 = vld [vmem:[%s1 + $0x8] sm:$0xff]
    %v104 = vld [vmem:[%s1 + $0x10] sm:$0xff]
    %v105 = vld [vmem:[%s1 + $0x18] sm:$0xff]
    %v107 = vlaneseq
    %v108 = vshrl.u32 %v107, 7
    %v109 = vsub.s32 0, %v108
    %v110 = vrot.slane %v82, %v109
    %v111 = vlaneseq
    %v112 = vshrl.u32 %v111, 7
    %v113 = vsub.s32 4, %v112
    %v114 = vrot.slane %v82, %v113
    %v117 = vlaneseq
    %v118 = vshrl.u32 %v117, 7
    %v119 = vsub.s32 0, %v118
    %v120 = vrot.slane %v110, %v119
    %v121 = vlaneseq
    %v122 = vshrl.u32 %v121, 7
    %v123 = vsub.s32 0, %v122
    %v124 = vrot.slane %v114, %v123
    %v129 = vunpack.c.l.b16 %v102
    %v130 = vunpack.c.h.b16 %v102
    %v131 = vunpack.c.l.b16 %v103
    %v132 = vunpack.c.h.b16 %v103
    %v133 = vunpack.c.l.b16 %v104
    %v134 = vunpack.c.h.b16 %v104
    %v135 = vunpack.c.l.b16 %v105
    %v136 = vunpack.c.h.b16 %v105
    %v137 = vpack.c.b16 %v131, %v129
    %v138 = vpack.c.b16 %v132, %v130
    %v139 = vpack.c.b16 %v135, %v133
    %v140 = vpack.c.b16 %v136, %v134
    %vm145 = vcmask 261120
    %v147 = vsel %vm145, %v86, 0
    %v150 = vsel %vm145, %v87, 0
    %v153 = vsel %vm145, %v88, 0
    %v156 = vsel %vm145, %v89, 0
    %v159 = vsel %vm145, %v90, 0
    %v162 = vsel %vm145, %v91, 0
    %v165 = vsel %vm145, %v92, 0
    %v168 = vsel %vm145, %v93, 0
    %v171 = vsel %vm145, %v94, 0
    %v174 = vsel %vm145, %v95, 0
    %v177 = vsel %vm145, %v96, 0
    %v180 = vsel %vm145, %v97, 0
    %v183 = vsel %vm145, %v98, 0
    %v186 = vsel %vm145, %v99, 0
    %v189 = vsel %vm145, %v100, 0
    %v192 = vsel %vm145, %v101, 0
    %194 = vmatprep.subr.bf16.mxu0 0
    %195 = vmatpush1.bf16.msra.mxu0 0
    %196 = vmatprep.subr.bf16.mxu0 0
    %197 = vmatpush1.bf16.msra.mxu0 0
    %198 = vmatprep.subr.bf16.mxu0 0
    %199 = vmatpush1.bf16.msra.mxu0 0
    %200 = vmatprep.subr.bf16.mxu0 0
    %201 = vmatpush1.bf16.msra.mxu0 0
    %202 = vmatprep.subr.bf16.mxu0 0
    %203 = vmatpush1.bf16.msra.mxu0 0
    %204 = vmatprep.subr.bf16.mxu0 0
    %205 = vmatpush1.bf16.msra.mxu0 0
    %206 = vmatprep.subr.bf16.mxu0 %v140
    %207 = vmatpush1.bf16.msra.mxu0 %v139
    %208 = vmatprep.subr.bf16.mxu0 %v138
    %209 = vmatpush1.bf16.msra.mxu0 %v137
    %210 = vmatprep.subr.bf16.mxu0 0
    %211 = vmatpush2.bf16.msra.mxu0 0
    %212 = vmatprep.subr.bf16.mxu0 0
    %213 = vmatpush2.bf16.msra.mxu0 0
    %214 = vmatprep.subr.bf16.mxu0 0
    %215 = vmatpush2.bf16.msra.mxu0 0
    %216 = vmatprep.subr.bf16.mxu0 0
    %217 = vmatpush2.bf16.msra.mxu0 0
    %218 = vmatprep.subr.bf16.mxu0 0
    %219 = vmatpush2.bf16.msra.mxu0 0
    %220 = vmatprep.subr.bf16.mxu0 0
    %221 = vmatpush2.bf16.msra.mxu0 0
    %222 = vmatprep.subr.bf16.mxu0 0
    %223 = vmatpush2.bf16.msra.mxu0 0
    %224 = vmatprep.subr.bf16.mxu0 0
    %225 = vmatpush2.bf16.msra.mxu0 0
    %226 = vmatprep.mubr.bf16.mxu0 0
    %227 = vmatmul.mubr.bf16.gmra.mxu0 %v147
    %v228 = vpop.f32.mrf.mxu0
    %v229 = vadd.f32 %v120, %v228
    %v230 = vpop.f32.mrf.mxu0
    %v231 = vadd.f32 %v124, %v230
    %v232 = vpop.f32.mrf.mxu0
    %v233 = vadd.f32 %v120, %v232
    %v234 = vpop.f32.mrf.mxu0
    %v235 = vadd.f32 %v124, %v234
    %236 = vmatprep.mubr.bf16.mxu0 0
    %237 = vmatmul.mubr.bf16.gmra.mxu0 %v150
    %v238 = vpop.f32.mrf.mxu0
    %v239 = vadd.f32 %v120, %v238
    %v240 = vpop.f32.mrf.mxu0
    %v241 = vadd.f32 %v124, %v240
    %v242 = vpop.f32.mrf.mxu0
    %v243 = vadd.f32 %v120, %v242
    %v244 = vpop.f32.mrf.mxu0
    %v245 = vadd.f32 %v124, %v244
    %246 = vmatprep.mubr.bf16.mxu0 0
    %247 = vmatmul.mubr.bf16.gmra.mxu0 %v153
    %v248 = vpop.f32.mrf.mxu0
    %v249 = vadd.f32 %v120, %v248
    %v250 = vpop.f32.mrf.mxu0
    %v251 = vadd.f32 %v124, %v250
    %v252 = vpop.f32.mrf.mxu0
    %v253 = vadd.f32 %v120, %v252
    %v254 = vpop.f32.mrf.mxu0
    %v255 = vadd.f32 %v124, %v254
    %256 = vmatprep.mubr.bf16.mxu0 0
    %257 = vmatmul.mubr.bf16.gmra.mxu0 %v156
    %v258 = vpop.f32.mrf.mxu0
    %v259 = vadd.f32 %v120, %v258
    %v260 = vpop.f32.mrf.mxu0
    %v261 = vadd.f32 %v124, %v260
    %v262 = vpop.f32.mrf.mxu0
    %v263 = vadd.f32 %v120, %v262
    %v264 = vpop.f32.mrf.mxu0
    %v265 = vadd.f32 %v124, %v264
    %266 = vmatprep.mubr.bf16.mxu0 0
    %267 = vmatmul.mubr.bf16.gmra.mxu0 %v159
    %v268 = vpop.f32.mrf.mxu0
    %v269 = vadd.f32 %v120, %v268
    %v270 = vpop.f32.mrf.mxu0
    %v271 = vadd.f32 %v124, %v270
    %v272 = vpop.f32.mrf.mxu0
    %v273 = vadd.f32 %v120, %v272
    %v274 = vpop.f32.mrf.mxu0
    %v275 = vadd.f32 %v124, %v274
    %276 = vmatprep.mubr.bf16.mxu0 0
    %277 = vmatmul.mubr.bf16.gmra.mxu0 %v162
    %v278 = vpop.f32.mrf.mxu0
    %v279 = vadd.f32 %v120, %v278
    %v280 = vpop.f32.mrf.mxu0
    %v281 = vadd.f32 %v124, %v280
    %v282 = vpop.f32.mrf.mxu0
    %v283 = vadd.f32 %v120, %v282
    %v284 = vpop.f32.mrf.mxu0
    %v285 = vadd.f32 %v124, %v284
    %286 = vmatprep.mubr.bf16.mxu0 0
    %287 = vmatmul.mubr.bf16.gmra.mxu0 %v165
    %v288 = vpop.f32.mrf.mxu0
    %v289 = vadd.f32 %v120, %v288
    %v290 = vpop.f32.mrf.mxu0
    %v291 = vadd.f32 %v124, %v290
    %v292 = vpop.f32.mrf.mxu0
    %v293 = vadd.f32 %v120, %v292
    %v294 = vpop.f32.mrf.mxu0
    %v295 = vadd.f32 %v124, %v294
    %296 = vmatprep.mubr.bf16.mxu0 0
    %297 = vmatmul.mubr.bf16.gmra.mxu0 %v168
    %v298 = vpop.f32.mrf.mxu0
    %v299 = vadd.f32 %v120, %v298
    %v300 = vpop.f32.mrf.mxu0
    %v301 = vadd.f32 %v124, %v300
    %v302 = vpop.f32.mrf.mxu0
    %v303 = vadd.f32 %v120, %v302
    %v304 = vpop.f32.mrf.mxu0
    %v305 = vadd.f32 %v124, %v304
    %306 = vmatprep.mubr.bf16.mxu0 0
    %307 = vmatmul.mubr.bf16.gmra.mxu0 %v171
    %v308 = vpop.f32.mrf.mxu0
    %v309 = vadd.f32 %v120, %v308
    %v310 = vpop.f32.mrf.mxu0
    %v311 = vadd.f32 %v124, %v310
    %v312 = vpop.f32.mrf.mxu0
    %v313 = vadd.f32 %v120, %v312
    %v314 = vpop.f32.mrf.mxu0
    %v315 = vadd.f32 %v124, %v314
    %316 = vmatprep.mubr.bf16.mxu0 0
    %317 = vmatmul.mubr.bf16.gmra.mxu0 %v174
    %v318 = vpop.f32.mrf.mxu0
    %v319 = vadd.f32 %v120, %v318
    %v320 = vpop.f32.mrf.mxu0
    %v321 = vadd.f32 %v124, %v320
    %v322 = vpop.f32.mrf.mxu0
    %v323 = vadd.f32 %v120, %v322
    %v324 = vpop.f32.mrf.mxu0
    %v325 = vadd.f32 %v124, %v324
    %326 = vmatprep.mubr.bf16.mxu0 0
    %327 = vmatmul.mubr.bf16.gmra.mxu0 %v177
    %v328 = vpop.f32.mrf.mxu0
    %v329 = vadd.f32 %v120, %v328
    %v330 = vpop.f32.mrf.mxu0
    %v331 = vadd.f32 %v124, %v330
    %v332 = vpop.f32.mrf.mxu0
    %v333 = vadd.f32 %v120, %v332
    %v334 = vpop.f32.mrf.mxu0
    %v335 = vadd.f32 %v124, %v334
    %336 = vmatprep.mubr.bf16.mxu0 0
    %337 = vmatmul.mubr.bf16.gmra.mxu0 %v180
    %v338 = vpop.f32.mrf.mxu0
    %v339 = vadd.f32 %v120, %v338
    %v340 = vpop.f32.mrf.mxu0
    %v341 = vadd.f32 %v124, %v340
    %v342 = vpop.f32.mrf.mxu0
    %v343 = vadd.f32 %v120, %v342
    %v344 = vpop.f32.mrf.mxu0
    %v345 = vadd.f32 %v124, %v344
    %346 = vmatprep.mubr.bf16.mxu0 0
    %347 = vmatmul.mubr.bf16.gmra.mxu0 %v183
    %v348 = vpop.f32.mrf.mxu0
    %v349 = vadd.f32 %v120, %v348
    %v350 = vpop.f32.mrf.mxu0
    %v351 = vadd.f32 %v124, %v350
    %v352 = vpop.f32.mrf.mxu0
    %v353 = vadd.f32 %v120, %v352
    %v354 = vpop.f32.mrf.mxu0
    %v355 = vadd.f32 %v124, %v354
    %356 = vmatprep.mubr.bf16.mxu0 0
    %357 = vmatmul.mubr.bf16.gmra.mxu0 %v186
    %v358 = vpop.f32.mrf.mxu0
    %v359 = vadd.f32 %v120, %v358
    %v360 = vpop.f32.mrf.mxu0
    %v361 = vadd.f32 %v124, %v360
    %v362 = vpop.f32.mrf.mxu0
    %v363 = vadd.f32 %v120, %v362
    %v364 = vpop.f32.mrf.mxu0
    %v365 = vadd.f32 %v124, %v364
    %366 = vmatprep.mubr.bf16.mxu0 0
    %367 = vmatmul.mubr.bf16.gmra.mxu0 %v189
    %v368 = vpop.f32.mrf.mxu0
    %v369 = vadd.f32 %v120, %v368
    %v370 = vpop.f32.mrf.mxu0
    %v371 = vadd.f32 %v124, %v370
    %v372 = vpop.f32.mrf.mxu0
    %v373 = vadd.f32 %v120, %v372
    %v374 = vpop.f32.mrf.mxu0
    %v375 = vadd.f32 %v124, %v374
    %376 = vmatprep.mubr.bf16.mxu0 0
    %377 = vmatmul.mubr.bf16.gmra.mxu0 %v192
    %v378 = vpop.f32.mrf.mxu0
    %v379 = vadd.f32 %v120, %v378
    %v380 = vpop.f32.mrf.mxu0
    %v381 = vadd.f32 %v124, %v380
    %v382 = vpop.f32.mrf.mxu0
    %v383 = vadd.f32 %v120, %v382
    %v384 = vpop.f32.mrf.mxu0
    %v385 = vadd.f32 %v124, %v384
    %386 = vdwg.mxu0
    %vm387 = vcmp.gt.f32.partialorder %v229, 0.0
    %vm388 = vcmp.gt.f32.partialorder %v231, 0.0
    %vm389 = vcmp.gt.f32.partialorder %v233, 0.0
    %vm390 = vcmp.gt.f32.partialorder %v235, 0.0
    %vm391 = vcmp.gt.f32.partialorder %v239, 0.0
    %vm392 = vcmp.gt.f32.partialorder %v241, 0.0
    %vm393 = vcmp.gt.f32.partialorder %v243, 0.0
    %vm394 = vcmp.gt.f32.partialorder %v245, 0.0
    %vm395 = vcmp.gt.f32.partialorder %v249, 0.0
    %vm396 = vcmp.gt.f32.partialorder %v251, 0.0
    %vm397 = vcmp.gt.f32.partialorder %v253, 0.0
    %vm398 = vcmp.gt.f32.partialorder %v255, 0.0
    %vm399 = vcmp.gt.f32.partialorder %v259, 0.0
    %vm400 = vcmp.gt.f32.partialorder %v261, 0.0
    %vm401 = vcmp.gt.f32.partialorder %v263, 0.0
    %vm402 = vcmp.gt.f32.partialorder %v265, 0.0
    %vm403 = vcmp.gt.f32.partialorder %v269, 0.0
    %vm404 = vcmp.gt.f32.partialorder %v271, 0.0
    %vm405 = vcmp.gt.f32.partialorder %v273, 0.0
    %vm406 = vcmp.gt.f32.partialorder %v275, 0.0
    %vm407 = vcmp.gt.f32.partialorder %v279, 0.0
    %vm408 = vcmp.gt.f32.partialorder %v281, 0.0
    %vm409 = vcmp.gt.f32.partialorder %v283, 0.0
    %vm410 = vcmp.gt.f32.partialorder %v285, 0.0
    %vm411 = vcmp.gt.f32.partialorder %v289, 0.0
    %vm412 = vcmp.gt.f32.partialorder %v291, 0.0
    %vm413 = vcmp.gt.f32.partialorder %v293, 0.0
    %vm414 = vcmp.gt.f32.partialorder %v295, 0.0
    %vm415 = vcmp.gt.f32.partialorder %v299, 0.0
    %vm416 = vcmp.gt.f32.partialorder %v301, 0.0
    %vm417 = vcmp.gt.f32.partialorder %v303, 0.0
    %vm418 = vcmp.gt.f32.partialorder %v305, 0.0
    %vm419 = vcmp.gt.f32.partialorder %v309, 0.0
    %vm420 = vcmp.gt.f32.partialorder %v311, 0.0
    %vm421 = vcmp.gt.f32.partialorder %v313, 0.0
    %vm422 = vcmp.gt.f32.partialorder %v315, 0.0
    %vm423 = vcmp.gt.f32.partialorder %v319, 0.0
    %vm424 = vcmp.gt.f32.partialorder %v321, 0.0
    %vm425 = vcmp.gt.f32.partialorder %v323, 0.0
    %vm426 = vcmp.gt.f32.partialorder %v325, 0.0
    %vm427 = vcmp.gt.f32.partialorder %v329, 0.0
    %vm428 = vcmp.gt.f32.partialorder %v331, 0.0
    %vm429 = vcmp.gt.f32.partialorder %v333, 0.0
    %vm430 = vcmp.gt.f32.partialorder %v335, 0.0
    %vm431 = vcmp.gt.f32.partialorder %v339, 0.0
    %vm432 = vcmp.gt.f32.partialorder %v341, 0.0
    %vm433 = vcmp.gt.f32.partialorder %v343, 0.0
    %vm434 = vcmp.gt.f32.partialorder %v345, 0.0
    %vm435 = vcmp.gt.f32.partialorder %v349, 0.0
    %vm436 = vcmp.gt.f32.partialorder %v351, 0.0
    %vm437 = vcmp.gt.f32.partialorder %v353, 0.0
    %vm438 = vcmp.gt.f32.partialorder %v355, 0.0
    %vm439 = vcmp.gt.f32.partialorder %v359, 0.0
    %vm440 = vcmp.gt.f32.partialorder %v361, 0.0
    %vm441 = vcmp.gt.f32.partialorder %v363, 0.0
    %vm442 = vcmp.gt.f32.partialorder %v365, 0.0
    %vm443 = vcmp.gt.f32.partialorder %v369, 0.0
    %vm444 = vcmp.gt.f32.partialorder %v371, 0.0
    %vm445 = vcmp.gt.f32.partialorder %v373, 0.0
    %vm446 = vcmp.gt.f32.partialorder %v375, 0.0
    %vm447 = vcmp.gt.f32.partialorder %v379, 0.0
    %vm448 = vcmp.gt.f32.partialorder %v381, 0.0
    %vm449 = vcmp.gt.f32.partialorder %v383, 0.0
    %vm450 = vcmp.gt.f32.partialorder %v385, 0.0
    %v451 = vmul.f32 %v229, 0.2
    %v452 = vmul.f32 %v231, 0.2
    %v453 = vmul.f32 %v233, 0.2
    %v454 = vmul.f32 %v235, 0.2
    %v455 = vmul.f32 %v239, 0.2
    %v456 = vmul.f32 %v241, 0.2
    %v457 = vmul.f32 %v243, 0.2
    %v458 = vmul.f32 %v245, 0.2
    %v459 = vmul.f32 %v249, 0.2
    %v460 = vmul.f32 %v251, 0.2
    %v461 = vmul.f32 %v253, 0.2
    %v462 = vmul.f32 %v255, 0.2
    %v463 = vmul.f32 %v259, 0.2
    %v464 = vmul.f32 %v261, 0.2
    %v465 = vmul.f32 %v263, 0.2
    %v466 = vmul.f32 %v265, 0.2
    %v467 = vmul.f32 %v269, 0.2
    %v468 = vmul.f32 %v271, 0.2
    %v469 = vmul.f32 %v273, 0.2
    %v470 = vmul.f32 %v275, 0.2
    %v471 = vmul.f32 %v279, 0.2
    %v472 = vmul.f32 %v281, 0.2
    %v473 = vmul.f32 %v283, 0.2
    %v474 = vmul.f32 %v285, 0.2
    %v475 = vmul.f32 %v289, 0.2
    %v476 = vmul.f32 %v291, 0.2
    %v477 = vmul.f32 %v293, 0.2
    %v478 = vmul.f32 %v295, 0.2
    %v479 = vmul.f32 %v299, 0.2
    %v480 = vmul.f32 %v301, 0.2
    %v481 = vmul.f32 %v303, 0.2
    %v482 = vmul.f32 %v305, 0.2
    %v483 = vmul.f32 %v309, 0.2
    %v484 = vmul.f32 %v311, 0.2
    %v485 = vmul.f32 %v313, 0.2
    %v486 = vmul.f32 %v315, 0.2
    %v487 = vmul.f32 %v319, 0.2
    %v488 = vmul.f32 %v321, 0.2
    %v489 = vmul.f32 %v323, 0.2
    %v490 = vmul.f32 %v325, 0.2
    %v491 = vmul.f32 %v329, 0.2
    %v492 = vmul.f32 %v331, 0.2
    %v493 = vmul.f32 %v333, 0.2
    %v494 = vmul.f32 %v335, 0.2
    %v495 = vmul.f32 %v339, 0.2
    %v496 = vmul.f32 %v341, 0.2
    %v497 = vmul.f32 %v343, 0.2
    %v498 = vmul.f32 %v345, 0.2
    %v499 = vmul.f32 %v349, 0.2
    %v500 = vmul.f32 %v351, 0.2
    %v501 = vmul.f32 %v353, 0.2
    %v502 = vmul.f32 %v355, 0.2
    %v503 = vmul.f32 %v359, 0.2
    %v504 = vmul.f32 %v361, 0.2
    %v505 = vmul.f32 %v363, 0.2
    %v506 = vmul.f32 %v365, 0.2
    %v507 = vmul.f32 %v369, 0.2
    %v508 = vmul.f32 %v371, 0.2
    %v509 = vmul.f32 %v373, 0.2
    %v510 = vmul.f32 %v375, 0.2
    %v511 = vmul.f32 %v379, 0.2
    %v512 = vmul.f32 %v381, 0.2
    %v513 = vmul.f32 %v383, 0.2
    %v514 = vmul.f32 %v385, 0.2
    %v515 = vsel %vm387, %v229, %v451
    %v516 = vsel %vm388, %v231, %v452
    %v517 = vsel %vm389, %v233, %v453
    %v518 = vsel %vm390, %v235, %v454
    %v519 = vsel %vm391, %v239, %v455
    %v520 = vsel %vm392, %v241, %v456
    %v521 = vsel %vm393, %v243, %v457
    %v522 = vsel %vm394, %v245, %v458
    %v523 = vsel %vm395, %v249, %v459
    %v524 = vsel %vm396, %v251, %v460
    %v525 = vsel %vm397, %v253, %v461
    %v526 = vsel %vm398, %v255, %v462
    %v527 = vsel %vm399, %v259, %v463
    %v528 = vsel %vm400, %v261, %v464
    %v529 = vsel %vm401, %v263, %v465
    %v530 = vsel %vm402, %v265, %v466
    %v531 = vsel %vm403, %v269, %v467
    %v532 = vsel %vm404, %v271, %v468
    %v533 = vsel %vm405, %v273, %v469
    %v534 = vsel %vm406, %v275, %v470
    %v535 = vsel %vm407, %v279, %v471
    %v536 = vsel %vm408, %v281, %v472
    %v537 = vsel %vm409, %v283, %v473
    %v538 = vsel %vm410, %v285, %v474
    %v539 = vsel %vm411, %v289, %v475
    %v540 = vsel %vm412, %v291, %v476
    %v541 = vsel %vm413, %v293, %v477
    %v542 = vsel %vm414, %v295, %v478
    %v543 = vsel %vm415, %v299, %v479
    %v544 = vsel %vm416, %v301, %v480
    %v545 = vsel %vm417, %v303, %v481
    %v546 = vsel %vm418, %v305, %v482
    %v547 = vsel %vm419, %v309, %v483
    %v548 = vsel %vm420, %v311, %v484
    %v549 = vsel %vm421, %v313, %v485
    %v550 = vsel %vm422, %v315, %v486
    %v551 = vsel %vm423, %v319, %v487
    %v552 = vsel %vm424, %v321, %v488
    %v553 = vsel %vm425, %v323, %v489
    %v554 = vsel %vm426, %v325, %v490
    %v555 = vsel %vm427, %v329, %v491
    %v556 = vsel %vm428, %v331, %v492
    %v557 = vsel %vm429, %v333, %v493
    %v558 = vsel %vm430, %v335, %v494
    %v559 = vsel %vm431, %v339, %v495
    %v560 = vsel %vm432, %v341, %v496
    %v561 = vsel %vm433, %v343, %v497
    %v562 = vsel %vm434, %v345, %v498
    %v563 = vsel %vm435, %v349, %v499
    %v564 = vsel %vm436, %v351, %v500
    %v565 = vsel %vm437, %v353, %v501
    %v566 = vsel %vm438, %v355, %v502
    %v567 = vsel %vm439, %v359, %v503
    %v568 = vsel %vm440, %v361, %v504
    %v569 = vsel %vm441, %v363, %v505
    %v570 = vsel %vm442, %v365, %v506
    %v571 = vsel %vm443, %v369, %v507
    %v572 = vsel %vm444, %v371, %v508
    %v573 = vsel %vm445, %v373, %v509
    %v574 = vsel %vm446, %v375, %v510
    %v575 = vsel %vm447, %v379, %v511
    %v576 = vsel %vm448, %v381, %v512
    %v577 = vsel %vm449, %v383, %v513
    %v578 = vsel %vm450, %v385, %v514
    %v579 = vpack.c.bf16 %v517, %v515
    %v580 = vpack.c.bf16 %v518, %v516
    %v581 = vpack.c.bf16 %v521, %v519
    %v582 = vpack.c.bf16 %v522, %v520
    %v583 = vpack.c.bf16 %v525, %v523
    %v584 = vpack.c.bf16 %v526, %v524
    %v585 = vpack.c.bf16 %v529, %v527
    %v586 = vpack.c.bf16 %v530, %v528
    %v587 = vpack.c.bf16 %v533, %v531
    %v588 = vpack.c.bf16 %v534, %v532
    %v589 = vpack.c.bf16 %v537, %v535
    %v590 = vpack.c.bf16 %v538, %v536
    %v591 = vpack.c.bf16 %v541, %v539
    %v592 = vpack.c.bf16 %v542, %v540
    %v593 = vpack.c.bf16 %v545, %v543
    %v594 = vpack.c.bf16 %v546, %v544
    %v595 = vpack.c.bf16 %v549, %v547
    %v596 = vpack.c.bf16 %v550, %v548
    %v597 = vpack.c.bf16 %v553, %v551
    %v598 = vpack.c.bf16 %v554, %v552
    %v599 = vpack.c.bf16 %v557, %v555
    %v600 = vpack.c.bf16 %v558, %v556
    %v601 = vpack.c.bf16 %v561, %v559
    %v602 = vpack.c.bf16 %v562, %v560
    %v603 = vpack.c.bf16 %v565, %v563
    %v604 = vpack.c.bf16 %v566, %v564
    %v605 = vpack.c.bf16 %v569, %v567
    %v606 = vpack.c.bf16 %v570, %v568
    %v607 = vpack.c.bf16 %v573, %v571
    %v608 = vpack.c.bf16 %v574, %v572
    %v609 = vpack.c.bf16 %v577, %v575
    %v610 = vpack.c.bf16 %v578, %v576
    %v611 = vld [vmem:[#allocation2] sm:$0xff]
    %v612 = vld [vmem:[#allocation2 + $0x8] sm:$0xff]
    %v613 = vld [vmem:[#allocation2 + $0x10] sm:$0xff]
    %v614 = vld [vmem:[#allocation2 + $0x18] sm:$0xff]
    %v615 = vld [vmem:[#allocation2 + $0x20] sm:$0xff]
    %v616 = vld [vmem:[#allocation2 + $0x28] sm:$0xff]
    %v617 = vld [vmem:[#allocation2 + $0x30] sm:$0xff]
    %v618 = vld [vmem:[#allocation2 + $0x38] sm:$0xff]
    %v619 = vld [vmem:[#allocation2 + $0x40] sm:$0xff]
    %v620 = vld [vmem:[#allocation2 + $0x48] sm:$0xff]
    %v621 = vld [vmem:[#allocation2 + $0x50] sm:$0xff]
    %v622 = vld [vmem:[#allocation2 + $0x58] sm:$0xff]
    %v623 = vld [vmem:[#allocation2 + $0x60] sm:$0xff]
    %v624 = vld [vmem:[#allocation2 + $0x68] sm:$0xff]
    %v625 = vld [vmem:[#allocation2 + $0x70] sm:$0xff]
    %v626 = vld [vmem:[#allocation2 + $0x78] sm:$0xff]
    %v627 = vld [vmem:[#allocation2 + $0x80] sm:$0xff]
    %v628 = vld [vmem:[#allocation2 + $0x88] sm:$0xff]
    %v629 = vld [vmem:[#allocation2 + $0x90] sm:$0xff]
    %v630 = vld [vmem:[#allocation2 + $0x98] sm:$0xff]
    %v631 = vld [vmem:[#allocation2 + $0xa0] sm:$0xff]
    %v632 = vld [vmem:[#allocation2 + $0xa8] sm:$0xff]
    %v633 = vld [vmem:[#allocation2 + $0xb0] sm:$0xff]
    %v634 = vld [vmem:[#allocation2 + $0xb8] sm:$0xff]
    %v635 = vld [vmem:[#allocation2 + $0xc0] sm:$0xff]
    %v636 = vld [vmem:[#allocation2 + $0xc8] sm:$0xff]
    %v637 = vld [vmem:[#allocation2 + $0xd0] sm:$0xff]
    %v638 = vld [vmem:[#allocation2 + $0xd8] sm:$0xff]
    %v639 = vld [vmem:[#allocation2 + $0xe0] sm:$0xff]
    %v640 = vld [vmem:[#allocation2 + $0xe8] sm:$0xff]
    %v641 = vld [vmem:[#allocation2 + $0xf0] sm:$0xff]
    %v642 = vld [vmem:[#allocation2 + $0xf8] sm:$0xff]
    %v643 = vld [vmem:[#allocation2 + $0x100] sm:$0xff]
    %v644 = vld [vmem:[#allocation2 + $0x108] sm:$0xff]
    %v645 = vld [vmem:[#allocation2 + $0x110] sm:$0xff]
    %v646 = vld [vmem:[#allocation2 + $0x118] sm:$0xff]
    %v647 = vld [vmem:[#allocation2 + $0x120] sm:$0xff]
    %v648 = vld [vmem:[#allocation2 + $0x128] sm:$0xff]
    %v649 = vld [vmem:[#allocation2 + $0x130] sm:$0xff]
    %v650 = vld [vmem:[#allocation2 + $0x138] sm:$0xff]
    %v651 = vld [vmem:[#allocation2 + $0x140] sm:$0xff]
    %v652 = vld [vmem:[#allocation2 + $0x148] sm:$0xff]
    %v653 = vld [vmem:[#allocation2 + $0x150] sm:$0xff]
    %v654 = vld [vmem:[#allocation2 + $0x158] sm:$0xff]
    %v655 = vld [vmem:[#allocation2 + $0x160] sm:$0xff]
    %v656 = vld [vmem:[#allocation2 + $0x168] sm:$0xff]
    %v657 = vld [vmem:[#allocation2 + $0x170] sm:$0xff]
    %v658 = vld [vmem:[#allocation2 + $0x178] sm:$0xff]
    %v659 = vld [vmem:[#allocation2 + $0x180] sm:$0xff]
    %v660 = vld [vmem:[#allocation2 + $0x188] sm:$0xff]
    %v661 = vld [vmem:[#allocation2 + $0x190] sm:$0xff]
    %v662 = vld [vmem:[#allocation2 + $0x198] sm:$0xff]
    %v663 = vld [vmem:[#allocation2 + $0x1a0] sm:$0xff]
    %v664 = vld [vmem:[#allocation2 + $0x1a8] sm:$0xff]
    %v665 = vld [vmem:[#allocation2 + $0x1b0] sm:$0xff]
    %v666 = vld [vmem:[#allocation2 + $0x1b8] sm:$0xff]
    %v667 = vld [vmem:[#allocation2 + $0x1c0] sm:$0xff]
    %v668 = vld [vmem:[#allocation2 + $0x1c8] sm:$0xff]
    %v669 = vld [vmem:[#allocation2 + $0x1d0] sm:$0xff]
    %v670 = vld [vmem:[#allocation2 + $0x1d8] sm:$0xff]
    %v671 = vld [vmem:[#allocation2 + $0x1e0] sm:$0xff]
    %v672 = vld [vmem:[#allocation2 + $0x1e8] sm:$0xff]
    %v673 = vld [vmem:[#allocation2 + $0x1f0] sm:$0xff]
    %v674 = vld [vmem:[#allocation2 + $0x1f8] sm:$0xff]
    %v676 = vlaneseq
    %v677 = vshrl.u32 %v676, 7
    %v678 = vsub.s32 1, %v677
    %v679 = vrot.slane %v82, %v678
    %v680 = vlaneseq
    %v681 = vshrl.u32 %v680, 7
    %v682 = vsub.s32 5, %v681
    %v683 = vrot.slane %v82, %v682
    %v684 = vlaneseq
    %v685 = vshrl.u32 %v684, 7
    %v686 = vsub.s32 1, %v685
    %v687 = vrot.slane %v83, %v686
    %v688 = vlaneseq
    %v689 = vshrl.u32 %v688, 7
    %v690 = vsub.s32 5, %v689
    %v691 = vrot.slane %v83, %v690
    %v696 = vlaneseq
    %v697 = vshrl.u32 %v696, 7
    %v698 = vsub.s32 1, %v697
    %v699 = vrot.slane %v679, %v698
    %v700 = vlaneseq
    %v701 = vshrl.u32 %v700, 7
    %v702 = vsub.s32 1, %v701
    %v703 = vrot.slane %v683, %v702
    %v704 = vlaneseq
    %v705 = vshrl.u32 %v704, 7
    %v706 = vsub.s32 1, %v705
    %v707 = vrot.slane %v687, %v706
    %v708 = vlaneseq
    %v709 = vshrl.u32 %v708, 7
    %v710 = vsub.s32 1, %v709
    %v711 = vrot.slane %v691, %v710
    %v776 = vunpack.c.l.b16 %v611
    %v777 = vunpack.c.h.b16 %v611
    %v778 = vunpack.c.l.b16 %v612
    %v779 = vunpack.c.h.b16 %v612
    %v780 = vunpack.c.l.b16 %v613
    %v781 = vunpack.c.h.b16 %v613
    %v782 = vunpack.c.l.b16 %v614
    %v783 = vunpack.c.h.b16 %v614
    %v784 = vunpack.c.l.b16 %v615
    %v785 = vunpack.c.h.b16 %v615
    %v786 = vunpack.c.l.b16 %v616
    %v787 = vunpack.c.h.b16 %v616
    %v788 = vunpack.c.l.b16 %v617
    %v789 = vunpack.c.h.b16 %v617
    %v790 = vunpack.c.l.b16 %v618
    %v791 = vunpack.c.h.b16 %v618
    %v792 = vunpack.c.l.b16 %v619
    %v793 = vunpack.c.h.b16 %v619
    %v794 = vunpack.c.l.b16 %v620
    %v795 = vunpack.c.h.b16 %v620
    %v796 = vunpack.c.l.b16 %v621
    %v797 = vunpack.c.h.b16 %v621
    %v798 = vunpack.c.l.b16 %v622
    %v799 = vunpack.c.h.b16 %v622
    %v800 = vunpack.c.l.b16 %v623
    %v801 = vunpack.c.h.b16 %v623
    %v802 = vunpack.c.l.b16 %v624
    %v803 = vunpack.c.h.b16 %v624
    %v804 = vunpack.c.l.b16 %v625
    %v805 = vunpack.c.h.b16 %v625
    %v806 = vunpack.c.l.b16 %v626
    %v807 = vunpack.c.h.b16 %v626
    %v808 = vunpack.c.l.b16 %v627
    %v809 = vunpack.c.h.b16 %v627
    %v810 = vunpack.c.l.b16 %v628
    %v811 = vunpack.c.h.b16 %v628
    %v812 = vunpack.c.l.b16 %v629
    %v813 = vunpack.c.h.b16 %v629
    %v814 = vunpack.c.l.b16 %v630
    %v815 = vunpack.c.h.b16 %v630
    %v816 = vunpack.c.l.b16 %v631
    %v817 = vunpack.c.h.b16 %v631
    %v818 = vunpack.c.l.b16 %v632
    %v819 = vunpack.c.h.b16 %v632
    %v820 = vunpack.c.l.b16 %v633
    %v821 = vunpack.c.h.b16 %v633
    %v822 = vunpack.c.l.b16 %v634
    %v823 = vunpack.c.h.b16 %v634
    %v824 = vunpack.c.l.b16 %v635
    %v825 = vunpack.c.h.b16 %v635
    %v826 = vunpack.c.l.b16 %v636
    %v827 = vunpack.c.h.b16 %v636
    %v828 = vunpack.c.l.b16 %v637
    %v829 = vunpack.c.h.b16 %v637
    %v830 = vunpack.c.l.b16 %v638
    %v831 = vunpack.c.h.b16 %v638
    %v832 = vunpack.c.l.b16 %v639
    %v833 = vunpack.c.h.b16 %v639
    %v834 = vunpack.c.l.b16 %v640
    %v835 = vunpack.c.h.b16 %v640
    %v836 = vunpack.c.l.b16 %v641
    %v837 = vunpack.c.h.b16 %v641
    %v838 = vunpack.c.l.b16 %v642
    %v839 = vunpack.c.h.b16 %v642
    %v840 = vunpack.c.l.b16 %v643
    %v841 = vunpack.c.h.b16 %v643
    %v842 = vunpack.c.l.b16 %v644
    %v843 = vunpack.c.h.b16 %v644
    %v844 = vunpack.c.l.b16 %v645
    %v845 = vunpack.c.h.b16 %v645
    %v846 = vunpack.c.l.b16 %v646
    %v847 = vunpack.c.h.b16 %v646
    %v848 = vunpack.c.l.b16 %v647
    %v849 = vunpack.c.h.b16 %v647
    %v850 = vunpack.c.l.b16 %v648
    %v851 = vunpack.c.h.b16 %v648
    %v852 = vunpack.c.l.b16 %v649
    %v853 = vunpack.c.h.b16 %v649
    %v854 = vunpack.c.l.b16 %v650
    %v855 = vunpack.c.h.b16 %v650
    %v856 = vunpack.c.l.b16 %v651
    %v857 = vunpack.c.h.b16 %v651
    %v858 = vunpack.c.l.b16 %v652
    %v859 = vunpack.c.h.b16 %v652
    %v860 = vunpack.c.l.b16 %v653
    %v861 = vunpack.c.h.b16 %v653
    %v862 = vunpack.c.l.b16 %v654
    %v863 = vunpack.c.h.b16 %v654
    %v864 = vunpack.c.l.b16 %v655
    %v865 = vunpack.c.h.b16 %v655
    %v866 = vunpack.c.l.b16 %v656
    %v867 = vunpack.c.h.b16 %v656
    %v868 = vunpack.c.l.b16 %v657
    %v869 = vunpack.c.h.b16 %v657
    %v870 = vunpack.c.l.b16 %v658
    %v871 = vunpack.c.h.b16 %v658
    %v872 = vunpack.c.l.b16 %v659
    %v873 = vunpack.c.h.b16 %v659
    %v874 = vunpack.c.l.b16 %v660
    %v875 = vunpack.c.h.b16 %v660
    %v876 = vunpack.c.l.b16 %v661
    %v877 = vunpack.c.h.b16 %v661
    %v878 = vunpack.c.l.b16 %v662
    %v879 = vunpack.c.h.b16 %v662
    %v880 = vunpack.c.l.b16 %v663
    %v881 = vunpack.c.h.b16 %v663
    %v882 = vunpack.c.l.b16 %v664
    %v883 = vunpack.c.h.b16 %v664
    %v884 = vunpack.c.l.b16 %v665
    %v885 = vunpack.c.h.b16 %v665
    %v886 = vunpack.c.l.b16 %v666
    %v887 = vunpack.c.h.b16 %v666
    %v888 = vunpack.c.l.b16 %v667
    %v889 = vunpack.c.h.b16 %v667
    %v890 = vunpack.c.l.b16 %v668
    %v891 = vunpack.c.h.b16 %v668
    %v892 = vunpack.c.l.b16 %v669
    %v893 = vunpack.c.h.b16 %v669
    %v894 = vunpack.c.l.b16 %v670
    %v895 = vunpack.c.h.b16 %v670
    %v896 = vunpack.c.l.b16 %v671
    %v897 = vunpack.c.h.b16 %v671
    %v898 = vunpack.c.l.b16 %v672
    %v899 = vunpack.c.h.b16 %v672
    %v900 = vunpack.c.l.b16 %v673
    %v901 = vunpack.c.h.b16 %v673
    %v902 = vunpack.c.l.b16 %v674
    %v903 = vunpack.c.h.b16 %v674
    %v904 = vpack.c.b16 %v780, %v776
    %v905 = vpack.c.b16 %v781, %v777
    %v906 = vpack.c.b16 %v782, %v778
    %v907 = vpack.c.b16 %v783, %v779
    %v908 = vpack.c.b16 %v788, %v784
    %v909 = vpack.c.b16 %v789, %v785
    %v910 = vpack.c.b16 %v790, %v786
    %v911 = vpack.c.b16 %v791, %v787
    %v912 = vpack.c.b16 %v796, %v792
    %v913 = vpack.c.b16 %v797, %v793
    %v914 = vpack.c.b16 %v798, %v794
    %v915 = vpack.c.b16 %v799, %v795
    %v916 = vpack.c.b16 %v804, %v800
    %v917 = vpack.c.b16 %v805, %v801
    %v918 = vpack.c.b16 %v806, %v802
    %v919 = vpack.c.b16 %v807, %v803
    %v920 = vpack.c.b16 %v812, %v808
    %v921 = vpack.c.b16 %v813, %v809
    %v922 = vpack.c.b16 %v814, %v810
    %v923 = vpack.c.b16 %v815, %v811
    %v924 = vpack.c.b16 %v820, %v816
    %v925 = vpack.c.b16 %v821, %v817
    %v926 = vpack.c.b16 %v822, %v818
    %v927 = vpack.c.b16 %v823, %v819
    %v928 = vpack.c.b16 %v828, %v824
    %v929 = vpack.c.b16 %v829, %v825
    %v930 = vpack.c.b16 %v830, %v826
    %v931 = vpack.c.b16 %v831, %v827
    %v932 = vpack.c.b16 %v836, %v832
    %v933 = vpack.c.b16 %v837, %v833
    %v934 = vpack.c.b16 %v838, %v834
    %v935 = vpack.c.b16 %v839, %v835
    %v936 = vpack.c.b16 %v844, %v840
    %v937 = vpack.c.b16 %v845, %v841
    %v938 = vpack.c.b16 %v846, %v842
    %v939 = vpack.c.b16 %v847, %v843
    %v940 = vpack.c.b16 %v852, %v848
    %v941 = vpack.c.b16 %v853, %v849
    %v942 = vpack.c.b16 %v854, %v850
    %v943 = vpack.c.b16 %v855, %v851
    %v944 = vpack.c.b16 %v860, %v856
    %v945 = vpack.c.b16 %v861, %v857
    %v946 = vpack.c.b16 %v862, %v858
    %v947 = vpack.c.b16 %v863, %v859
    %v948 = vpack.c.b16 %v868, %v864
    %v949 = vpack.c.b16 %v869, %v865
    %v950 = vpack.c.b16 %v870, %v866
    %v951 = vpack.c.b16 %v871, %v867
    %v952 = vpack.c.b16 %v876, %v872
    %v953 = vpack.c.b16 %v877, %v873
    %v954 = vpack.c.b16 %v878, %v874
    %v955 = vpack.c.b16 %v879, %v875
    %v956 = vpack.c.b16 %v884, %v880
    %v957 = vpack.c.b16 %v885, %v881
    %v958 = vpack.c.b16 %v886, %v882
    %v959 = vpack.c.b16 %v887, %v883
    %v960 = vpack.c.b16 %v892, %v888
    %v961 = vpack.c.b16 %v893, %v889
    %v962 = vpack.c.b16 %v894, %v890
    %v963 = vpack.c.b16 %v895, %v891
    %v964 = vpack.c.b16 %v900, %v896
    %v965 = vpack.c.b16 %v901, %v897
    %v966 = vpack.c.b16 %v902, %v898
    %v967 = vpack.c.b16 %v903, %v899
    %1032 = vmatprep.subr.bf16.mxu0 %v933
    %1033 = vmatpush1.bf16.msra.mxu0 %v932
    %1034 = vmatprep.subr.bf16.mxu0 %v929
    %1035 = vmatpush1.bf16.msra.mxu0 %v928
    %1036 = vmatprep.subr.bf16.mxu0 %v925
    %1037 = vmatpush1.bf16.msra.mxu0 %v924
    %1038 = vmatprep.subr.bf16.mxu0 %v921
    %1039 = vmatpush1.bf16.msra.mxu0 %v920
    %1040 = vmatprep.subr.bf16.mxu0 %v917
    %1041 = vmatpush1.bf16.msra.mxu0 %v916
    %1042 = vmatprep.subr.bf16.mxu0 %v913
    %1043 = vmatpush1.bf16.msra.mxu0 %v912
    %1044 = vmatprep.subr.bf16.mxu0 %v909
    %1045 = vmatpush1.bf16.msra.mxu0 %v908
    %1046 = vmatprep.subr.bf16.mxu0 %v905
    %1047 = vmatpush1.bf16.msra.mxu0 %v904
    %1048 = vmatprep.subr.bf16.mxu0 %v965
    %1049 = vmatpush2.bf16.msra.mxu0 %v964
    %1050 = vmatprep.subr.bf16.mxu0 %v961
    %1051 = vmatpush2.bf16.msra.mxu0 %v960
    %1052 = vmatprep.subr.bf16.mxu0 %v957
    %1053 = vmatpush2.bf16.msra.mxu0 %v956
    %1054 = vmatprep.subr.bf16.mxu0 %v953
    %1055 = vmatpush2.bf16.msra.mxu0 %v952
    %1056 = vmatprep.subr.bf16.mxu0 %v949
    %1057 = vmatpush2.bf16.msra.mxu0 %v948
    %1058 = vmatprep.subr.bf16.mxu0 %v945
    %1059 = vmatpush2.bf16.msra.mxu0 %v944
    %1060 = vmatprep.subr.bf16.mxu0 %v941
    %1061 = vmatpush2.bf16.msra.mxu0 %v940
    %1062 = vmatprep.subr.bf16.mxu0 %v937
    %1063 = vmatpush2.bf16.msra.mxu0 %v936
    %1064 = vmatprep.mubr.bf16.mxu0 %v580
    %1065 = vmatmul.mubr.bf16.gmra.mxu0 %v579
    %v1066 = vpop.f32.mrf.mxu0
    %v1067 = vadd.f32 %v699, %v1066
    %v1068 = vpop.f32.mrf.mxu0
    %v1069 = vadd.f32 %v703, %v1068
    %v1070 = vpop.f32.mrf.mxu0
    %v1071 = vadd.f32 %v699, %v1070
    %v1072 = vpop.f32.mrf.mxu0
    %v1073 = vadd.f32 %v703, %v1072
    %1074 = vmatprep.mubr.bf16.mxu0 %v582
    %1075 = vmatmul.mubr.bf16.gmra.mxu0 %v581
    %v1076 = vpop.f32.mrf.mxu0
    %v1077 = vadd.f32 %v699, %v1076
    %v1078 = vpop.f32.mrf.mxu0
    %v1079 = vadd.f32 %v703, %v1078
    %v1080 = vpop.f32.mrf.mxu0
    %v1081 = vadd.f32 %v699, %v1080
    %v1082 = vpop.f32.mrf.mxu0
    %v1083 = vadd.f32 %v703, %v1082
    %1084 = vmatprep.mubr.bf16.mxu0 %v584
    %1085 = vmatmul.mubr.bf16.gmra.mxu0 %v583
    %v1086 = vpop.f32.mrf.mxu0
    %v1087 = vadd.f32 %v699, %v1086
    %v1088 = vpop.f32.mrf.mxu0
    %v1089 = vadd.f32 %v703, %v1088
    %v1090 = vpop.f32.mrf.mxu0
    %v1091 = vadd.f32 %v699, %v1090
    %v1092 = vpop.f32.mrf.mxu0
    %v1093 = vadd.f32 %v703, %v1092
    %1094 = vmatprep.mubr.bf16.mxu0 %v586
    %1095 = vmatmul.mubr.bf16.gmra.mxu0 %v585
    %v1096 = vpop.f32.mrf.mxu0
    %v1097 = vadd.f32 %v699, %v1096
    %v1098 = vpop.f32.mrf.mxu0
    %v1099 = vadd.f32 %v703, %v1098
    %v1100 = vpop.f32.mrf.mxu0
    %v1101 = vadd.f32 %v699, %v1100
    %v1102 = vpop.f32.mrf.mxu0
    %v1103 = vadd.f32 %v703, %v1102
    %1104 = vmatprep.mubr.bf16.mxu0 %v588
    %1105 = vmatmul.mubr.bf16.gmra.mxu0 %v587
    %v1106 = vpop.f32.mrf.mxu0
    %v1107 = vadd.f32 %v699, %v1106
    %v1108 = vpop.f32.mrf.mxu0
    %v1109 = vadd.f32 %v703, %v1108
    %v1110 = vpop.f32.mrf.mxu0
    %v1111 = vadd.f32 %v699, %v1110
    %v1112 = vpop.f32.mrf.mxu0
    %v1113 = vadd.f32 %v703, %v1112
    %1114 = vmatprep.mubr.bf16.mxu0 %v590
    %1115 = vmatmul.mubr.bf16.gmra.mxu0 %v589
    %v1116 = vpop.f32.mrf.mxu0
    %v1117 = vadd.f32 %v699, %v1116
    %v1118 = vpop.f32.mrf.mxu0
    %v1119 = vadd.f32 %v703, %v1118
    %v1120 = vpop.f32.mrf.mxu0
    %v1121 = vadd.f32 %v699, %v1120
    %v1122 = vpop.f32.mrf.mxu0
    %v1123 = vadd.f32 %v703, %v1122
    %1124 = vmatprep.mubr.bf16.mxu0 %v592
    %1125 = vmatmul.mubr.bf16.gmra.mxu0 %v591
    %v1126 = vpop.f32.mrf.mxu0
    %v1127 = vadd.f32 %v699, %v1126
    %v1128 = vpop.f32.mrf.mxu0
    %v1129 = vadd.f32 %v703, %v1128
    %v1130 = vpop.f32.mrf.mxu0
    %v1131 = vadd.f32 %v699, %v1130
    %v1132 = vpop.f32.mrf.mxu0
    %v1133 = vadd.f32 %v703, %v1132
    %1134 = vmatprep.mubr.bf16.mxu0 %v594
    %1135 = vmatmul.mubr.bf16.gmra.mxu0 %v593
    %v1136 = vpop.f32.mrf.mxu0
    %v1137 = vadd.f32 %v699, %v1136
    %v1138 = vpop.f32.mrf.mxu0
    %v1139 = vadd.f32 %v703, %v1138
    %v1140 = vpop.f32.mrf.mxu0
    %v1141 = vadd.f32 %v699, %v1140
    %v1142 = vpop.f32.mrf.mxu0
    %v1143 = vadd.f32 %v703, %v1142
    %1144 = vmatprep.mubr.bf16.mxu0 %v596
    %1145 = vmatmul.mubr.bf16.gmra.mxu0 %v595
    %v1146 = vpop.f32.mrf.mxu0
    %v1147 = vadd.f32 %v699, %v1146
    %v1148 = vpop.f32.mrf.mxu0
    %v1149 = vadd.f32 %v703, %v1148
    %v1150 = vpop.f32.mrf.mxu0
    %v1151 = vadd.f32 %v699, %v1150
    %v1152 = vpop.f32.mrf.mxu0
    %v1153 = vadd.f32 %v703, %v1152
    %1154 = vmatprep.mubr.bf16.mxu0 %v598
    %1155 = vmatmul.mubr.bf16.gmra.mxu0 %v597
    %v1156 = vpop.f32.mrf.mxu0
    %v1157 = vadd.f32 %v699, %v1156
    %v1158 = vpop.f32.mrf.mxu0
    %v1159 = vadd.f32 %v703, %v1158
    %v1160 = vpop.f32.mrf.mxu0
    %v1161 = vadd.f32 %v699, %v1160
    %v1162 = vpop.f32.mrf.mxu0
    %v1163 = vadd.f32 %v703, %v1162
    %1164 = vmatprep.mubr.bf16.mxu0 %v600
    %1165 = vmatmul.mubr.bf16.gmra.mxu0 %v599
    %v1166 = vpop.f32.mrf.mxu0
    %v1167 = vadd.f32 %v699, %v1166
    %v1168 = vpop.f32.mrf.mxu0
    %v1169 = vadd.f32 %v703, %v1168
    %v1170 = vpop.f32.mrf.mxu0
    %v1171 = vadd.f32 %v699, %v1170
    %v1172 = vpop.f32.mrf.mxu0
    %v1173 = vadd.f32 %v703, %v1172
    %1174 = vmatprep.mubr.bf16.mxu0 %v602
    %1175 = vmatmul.mubr.bf16.gmra.mxu0 %v601
    %v1176 = vpop.f32.mrf.mxu0
    %v1177 = vadd.f32 %v699, %v1176
    %v1178 = vpop.f32.mrf.mxu0
    %v1179 = vadd.f32 %v703, %v1178
    %v1180 = vpop.f32.mrf.mxu0
    %v1181 = vadd.f32 %v699, %v1180
    %v1182 = vpop.f32.mrf.mxu0
    %v1183 = vadd.f32 %v703, %v1182
    %1184 = vmatprep.mubr.bf16.mxu0 %v604
    %1185 = vmatmul.mubr.bf16.gmra.mxu0 %v603
    %v1186 = vpop.f32.mrf.mxu0
    %v1187 = vadd.f32 %v699, %v1186
    %v1188 = vpop.f32.mrf.mxu0
    %v1189 = vadd.f32 %v703, %v1188
    %v1190 = vpop.f32.mrf.mxu0
    %v1191 = vadd.f32 %v699, %v1190
    %v1192 = vpop.f32.mrf.mxu0
    %v1193 = vadd.f32 %v703, %v1192
    %1194 = vmatprep.mubr.bf16.mxu0 %v606
    %1195 = vmatmul.mubr.bf16.gmra.mxu0 %v605
    %v1196 = vpop.f32.mrf.mxu0
    %v1197 = vadd.f32 %v699, %v1196
    %v1198 = vpop.f32.mrf.mxu0
    %v1199 = vadd.f32 %v703, %v1198
    %v1200 = vpop.f32.mrf.mxu0
    %v1201 = vadd.f32 %v699, %v1200
    %v1202 = vpop.f32.mrf.mxu0
    %v1203 = vadd.f32 %v703, %v1202
    %1204 = vmatprep.mubr.bf16.mxu0 %v608
    %1205 = vmatmul.mubr.bf16.gmra.mxu0 %v607
    %v1206 = vpop.f32.mrf.mxu0
    %v1207 = vadd.f32 %v699, %v1206
    %v1208 = vpop.f32.mrf.mxu0
    %v1209 = vadd.f32 %v703, %v1208
    %v1210 = vpop.f32.mrf.mxu0
    %v1211 = vadd.f32 %v699, %v1210
    %v1212 = vpop.f32.mrf.mxu0
    %v1213 = vadd.f32 %v703, %v1212
    %1214 = vmatprep.mubr.bf16.mxu0 %v610
    %1215 = vmatmul.mubr.bf16.gmra.mxu0 %v609
    %v1216 = vpop.f32.mrf.mxu0
    %v1217 = vadd.f32 %v699, %v1216
    %v1218 = vpop.f32.mrf.mxu0
    %v1219 = vadd.f32 %v703, %v1218
    %v1220 = vpop.f32.mrf.mxu0
    %v1221 = vadd.f32 %v699, %v1220
    %v1222 = vpop.f32.mrf.mxu0
    %v1223 = vadd.f32 %v703, %v1222
    %1224 = vdwg.mxu0
    %1225 = vmatprep.subr.bf16.mxu0 %v935
    %1226 = vmatpush1.bf16.msra.mxu0 %v934
    %1227 = vmatprep.subr.bf16.mxu0 %v931
    %1228 = vmatpush1.bf16.msra.mxu0 %v930
    %1229 = vmatprep.subr.bf16.mxu0 %v927
    %1230 = vmatpush1.bf16.msra.mxu0 %v926
    %1231 = vmatprep.subr.bf16.mxu0 %v923
    %1232 = vmatpush1.bf16.msra.mxu0 %v922
    %1233 = vmatprep.subr.bf16.mxu0 %v919
    %1234 = vmatpush1.bf16.msra.mxu0 %v918
    %1235 = vmatprep.subr.bf16.mxu0 %v915
    %1236 = vmatpush1.bf16.msra.mxu0 %v914
    %1237 = vmatprep.subr.bf16.mxu0 %v911
    %1238 = vmatpush1.bf16.msra.mxu0 %v910
    %1239 = vmatprep.subr.bf16.mxu0 %v907
    %1240 = vmatpush1.bf16.msra.mxu0 %v906
    %1241 = vmatprep.subr.bf16.mxu0 %v967
    %1242 = vmatpush2.bf16.msra.mxu0 %v966
    %1243 = vmatprep.subr.bf16.mxu0 %v963
    %1244 = vmatpush2.bf16.msra.mxu0 %v962
    %1245 = vmatprep.subr.bf16.mxu0 %v959
    %1246 = vmatpush2.bf16.msra.mxu0 %v958
    %1247 = vmatprep.subr.bf16.mxu0 %v955
    %1248 = vmatpush2.bf16.msra.mxu0 %v954
    %1249 = vmatprep.subr.bf16.mxu0 %v951
    %1250 = vmatpush2.bf16.msra.mxu0 %v950
    %1251 = vmatprep.subr.bf16.mxu0 %v947
    %1252 = vmatpush2.bf16.msra.mxu0 %v946
    %1253 = vmatprep.subr.bf16.mxu0 %v943
    %1254 = vmatpush2.bf16.msra.mxu0 %v942
    %1255 = vmatprep.subr.bf16.mxu0 %v939
    %1256 = vmatpush2.bf16.msra.mxu0 %v938
    %1257 = vmatprep.mubr.bf16.mxu0 %v580
    %1258 = vmatmul.mubr.bf16.gmra.mxu0 %v579
    %v1259 = vpop.f32.mrf.mxu0
    %v1260 = vadd.f32 %v707, %v1259
    %v1261 = vpop.f32.mrf.mxu0
    %v1262 = vadd.f32 %v711, %v1261
    %v1263 = vpop.f32.mrf.mxu0
    %v1264 = vadd.f32 %v707, %v1263
    %v1265 = vpop.f32.mrf.mxu0
    %v1266 = vadd.f32 %v711, %v1265
    %1267 = vmatprep.mubr.bf16.mxu0 %v582
    %1268 = vmatmul.mubr.bf16.gmra.mxu0 %v581
    %v1269 = vpop.f32.mrf.mxu0
    %v1270 = vadd.f32 %v707, %v1269
    %v1271 = vpop.f32.mrf.mxu0
    %v1272 = vadd.f32 %v711, %v1271
    %v1273 = vpop.f32.mrf.mxu0
    %v1274 = vadd.f32 %v707, %v1273
    %v1275 = vpop.f32.mrf.mxu0
    %v1276 = vadd.f32 %v711, %v1275
    %1277 = vmatprep.mubr.bf16.mxu0 %v584
    %1278 = vmatmul.mubr.bf16.gmra.mxu0 %v583
    %v1279 = vpop.f32.mrf.mxu0
    %v1280 = vadd.f32 %v707, %v1279
    %v1281 = vpop.f32.mrf.mxu0
    %v1282 = vadd.f32 %v711, %v1281
    %v1283 = vpop.f32.mrf.mxu0
    %v1284 = vadd.f32 %v707, %v1283
    %v1285 = vpop.f32.mrf.mxu0
    %v1286 = vadd.f32 %v711, %v1285
    %1287 = vmatprep.mubr.bf16.mxu0 %v586
    %1288 = vmatmul.mubr.bf16.gmra.mxu0 %v585
    %v1289 = vpop.f32.mrf.mxu0
    %v1290 = vadd.f32 %v707, %v1289
    %v1291 = vpop.f32.mrf.mxu0
    %v1292 = vadd.f32 %v711, %v1291
    %v1293 = vpop.f32.mrf.mxu0
    %v1294 = vadd.f32 %v707, %v1293
    %v1295 = vpop.f32.mrf.mxu0
    %v1296 = vadd.f32 %v711, %v1295
    %1297 = vmatprep.mubr.bf16.mxu0 %v588
    %1298 = vmatmul.mubr.bf16.gmra.mxu0 %v587
    %v1299 = vpop.f32.mrf.mxu0
    %v1300 = vadd.f32 %v707, %v1299
    %v1301 = vpop.f32.mrf.mxu0
    %v1302 = vadd.f32 %v711, %v1301
    %v1303 = vpop.f32.mrf.mxu0
    %v1304 = vadd.f32 %v707, %v1303
    %v1305 = vpop.f32.mrf.mxu0
    %v1306 = vadd.f32 %v711, %v1305
    %1307 = vmatprep.mubr.bf16.mxu0 %v590
    %1308 = vmatmul.mubr.bf16.gmra.mxu0 %v589
    %v1309 = vpop.f32.mrf.mxu0
    %v1310 = vadd.f32 %v707, %v1309
    %v1311 = vpop.f32.mrf.mxu0
    %v1312 = vadd.f32 %v711, %v1311
    %v1313 = vpop.f32.mrf.mxu0
    %v1314 = vadd.f32 %v707, %v1313
    %v1315 = vpop.f32.mrf.mxu0
    %v1316 = vadd.f32 %v711, %v1315
    %1317 = vmatprep.mubr.bf16.mxu0 %v592
    %1318 = vmatmul.mubr.bf16.gmra.mxu0 %v591
    %v1319 = vpop.f32.mrf.mxu0
    %v1320 = vadd.f32 %v707, %v1319
    %v1321 = vpop.f32.mrf.mxu0
    %v1322 = vadd.f32 %v711, %v1321
    %v1323 = vpop.f32.mrf.mxu0
    %v1324 = vadd.f32 %v707, %v1323
    %v1325 = vpop.f32.mrf.mxu0
    %v1326 = vadd.f32 %v711, %v1325
    %1327 = vmatprep.mubr.bf16.mxu0 %v594
    %1328 = vmatmul.mubr.bf16.gmra.mxu0 %v593
    %v1329 = vpop.f32.mrf.mxu0
    %v1330 = vadd.f32 %v707, %v1329
    %v1331 = vpop.f32.mrf.mxu0
    %v1332 = vadd.f32 %v711, %v1331
    %v1333 = vpop.f32.mrf.mxu0
    %v1334 = vadd.f32 %v707, %v1333
    %v1335 = vpop.f32.mrf.mxu0
    %v1336 = vadd.f32 %v711, %v1335
    %1337 = vmatprep.mubr.bf16.mxu0 %v596
    %1338 = vmatmul.mubr.bf16.gmra.mxu0 %v595
    %v1339 = vpop.f32.mrf.mxu0
    %v1340 = vadd.f32 %v707, %v1339
    %v1341 = vpop.f32.mrf.mxu0
    %v1342 = vadd.f32 %v711, %v1341
    %v1343 = vpop.f32.mrf.mxu0
    %v1344 = vadd.f32 %v707, %v1343
    %v1345 = vpop.f32.mrf.mxu0
    %v1346 = vadd.f32 %v711, %v1345
    %1347 = vmatprep.mubr.bf16.mxu0 %v598
    %1348 = vmatmul.mubr.bf16.gmra.mxu0 %v597
    %v1349 = vpop.f32.mrf.mxu0
    %v1350 = vadd.f32 %v707, %v1349
    %v1351 = vpop.f32.mrf.mxu0
    %v1352 = vadd.f32 %v711, %v1351
    %v1353 = vpop.f32.mrf.mxu0
    %v1354 = vadd.f32 %v707, %v1353
    %v1355 = vpop.f32.mrf.mxu0
    %v1356 = vadd.f32 %v711, %v1355
    %1357 = vmatprep.mubr.bf16.mxu0 %v600
    %1358 = vmatmul.mubr.bf16.gmra.mxu0 %v599
    %v1359 = vpop.f32.mrf.mxu0
    %v1360 = vadd.f32 %v707, %v1359
    %v1361 = vpop.f32.mrf.mxu0
    %v1362 = vadd.f32 %v711, %v1361
    %v1363 = vpop.f32.mrf.mxu0
    %v1364 = vadd.f32 %v707, %v1363
    %v1365 = vpop.f32.mrf.mxu0
    %v1366 = vadd.f32 %v711, %v1365
    %1367 = vmatprep.mubr.bf16.mxu0 %v602
    %1368 = vmatmul.mubr.bf16.gmra.mxu0 %v601
    %v1369 = vpop.f32.mrf.mxu0
    %v1370 = vadd.f32 %v707, %v1369
    %v1371 = vpop.f32.mrf.mxu0
    %v1372 = vadd.f32 %v711, %v1371
    %v1373 = vpop.f32.mrf.mxu0
    %v1374 = vadd.f32 %v707, %v1373
    %v1375 = vpop.f32.mrf.mxu0
    %v1376 = vadd.f32 %v711, %v1375
    %1377 = vmatprep.mubr.bf16.mxu0 %v604
    %1378 = vmatmul.mubr.bf16.gmra.mxu0 %v603
    %v1379 = vpop.f32.mrf.mxu0
    %v1380 = vadd.f32 %v707, %v1379
    %v1381 = vpop.f32.mrf.mxu0
    %v1382 = vadd.f32 %v711, %v1381
    %v1383 = vpop.f32.mrf.mxu0
    %v1384 = vadd.f32 %v707, %v1383
    %v1385 = vpop.f32.mrf.mxu0
    %v1386 = vadd.f32 %v711, %v1385
    %1387 = vmatprep.mubr.bf16.mxu0 %v606
    %1388 = vmatmul.mubr.bf16.gmra.mxu0 %v605
    %v1389 = vpop.f32.mrf.mxu0
    %v1390 = vadd.f32 %v707, %v1389
    %v1391 = vpop.f32.mrf.mxu0
    %v1392 = vadd.f32 %v711, %v1391
    %v1393 = vpop.f32.mrf.mxu0
    %v1394 = vadd.f32 %v707, %v1393
    %v1395 = vpop.f32.mrf.mxu0
    %v1396 = vadd.f32 %v711, %v1395
    %1397 = vmatprep.mubr.bf16.mxu0 %v608
    %1398 = vmatmul.mubr.bf16.gmra.mxu0 %v607
    %v1399 = vpop.f32.mrf.mxu0
    %v1400 = vadd.f32 %v707, %v1399
    %v1401 = vpop.f32.mrf.mxu0
    %v1402 = vadd.f32 %v711, %v1401
    %v1403 = vpop.f32.mrf.mxu0
    %v1404 = vadd.f32 %v707, %v1403
    %v1405 = vpop.f32.mrf.mxu0
    %v1406 = vadd.f32 %v711, %v1405
    %1407 = vmatprep.mubr.bf16.mxu0 %v610
    %1408 = vmatmul.mubr.bf16.gmra.mxu0 %v609
    %v1409 = vpop.f32.mrf.mxu0
    %v1410 = vadd.f32 %v707, %v1409
    %v1411 = vpop.f32.mrf.mxu0
    %v1412 = vadd.f32 %v711, %v1411
    %v1413 = vpop.f32.mrf.mxu0
    %v1414 = vadd.f32 %v707, %v1413
    %v1415 = vpop.f32.mrf.mxu0
    %v1416 = vadd.f32 %v711, %v1415
    %1417 = vdwg.mxu0
    %vm1418 = vcmp.gt.f32.partialorder %v1067, 0.0
    %vm1419 = vcmp.gt.f32.partialorder %v1069, 0.0
    %vm1420 = vcmp.gt.f32.partialorder %v1260, 0.0
    %vm1421 = vcmp.gt.f32.partialorder %v1262, 0.0
    %vm1422 = vcmp.gt.f32.partialorder %v1071, 0.0
    %vm1423 = vcmp.gt.f32.partialorder %v1073, 0.0
    %vm1424 = vcmp.gt.f32.partialorder %v1264, 0.0
    %vm1425 = vcmp.gt.f32.partialorder %v1266, 0.0
    %vm1426 = vcmp.gt.f32.partialorder %v1077, 0.0
    %vm1427 = vcmp.gt.f32.partialorder %v1079, 0.0
    %vm1428 = vcmp.gt.f32.partialorder %v1270, 0.0
    %vm1429 = vcmp.gt.f32.partialorder %v1272, 0.0
    %vm1430 = vcmp.gt.f32.partialorder %v1081, 0.0
    %vm1431 = vcmp.gt.f32.partialorder %v1083, 0.0
    %vm1432 = vcmp.gt.f32.partialorder %v1274, 0.0
    %vm1433 = vcmp.gt.f32.partialorder %v1276, 0.0
    %vm1434 = vcmp.gt.f32.partialorder %v1087, 0.0
    %vm1435 = vcmp.gt.f32.partialorder %v1089, 0.0
    %vm1436 = vcmp.gt.f32.partialorder %v1280, 0.0
    %vm1437 = vcmp.gt.f32.partialorder %v1282, 0.0
    %vm1438 = vcmp.gt.f32.partialorder %v1091, 0.0
    %vm1439 = vcmp.gt.f32.partialorder %v1093, 0.0
    %vm1440 = vcmp.gt.f32.partialorder %v1284, 0.0
    %vm1441 = vcmp.gt.f32.partialorder %v1286, 0.0
    %vm1442 = vcmp.gt.f32.partialorder %v1097, 0.0
    %vm1443 = vcmp.gt.f32.partialorder %v1099, 0.0
    %vm1444 = vcmp.gt.f32.partialorder %v1290, 0.0
    %vm1445 = vcmp.gt.f32.partialorder %v1292, 0.0
    %vm1446 = vcmp.gt.f32.partialorder %v1101, 0.0
    %vm1447 = vcmp.gt.f32.partialorder %v1103, 0.0
    %vm1448 = vcmp.gt.f32.partialorder %v1294, 0.0
    %vm1449 = vcmp.gt.f32.partialorder %v1296, 0.0
    %vm1450 = vcmp.gt.f32.partialorder %v1107, 0.0
    %vm1451 = vcmp.gt.f32.partialorder %v1109, 0.0
    %vm1452 = vcmp.gt.f32.partialorder %v1300, 0.0
    %vm1453 = vcmp.gt.f32.partialorder %v1302, 0.0
    %vm1454 = vcmp.gt.f32.partialorder %v1111, 0.0
    %vm1455 = vcmp.gt.f32.partialorder %v1113, 0.0
    %vm1456 = vcmp.gt.f32.partialorder %v1304, 0.0
    %vm1457 = vcmp.gt.f32.partialorder %v1306, 0.0
    %vm1458 = vcmp.gt.f32.partialorder %v1117, 0.0
    %vm1459 = vcmp.gt.f32.partialorder %v1119, 0.0
    %vm1460 = vcmp.gt.f32.partialorder %v1310, 0.0
    %vm1461 = vcmp.gt.f32.partialorder %v1312, 0.0
    %vm1462 = vcmp.gt.f32.partialorder %v1121, 0.0
    %vm1463 = vcmp.gt.f32.partialorder %v1123, 0.0
    %vm1464 = vcmp.gt.f32.partialorder %v1314, 0.0
    %vm1465 = vcmp.gt.f32.partialorder %v1316, 0.0
    %vm1466 = vcmp.gt.f32.partialorder %v1127, 0.0
    %vm1467 = vcmp.gt.f32.partialorder %v1129, 0.0
    %vm1468 = vcmp.gt.f32.partialorder %v1320, 0.0
    %vm1469 = vcmp.gt.f32.partialorder %v1322, 0.0
    %vm1470 = vcmp.gt.f32.partialorder %v1131, 0.0
    %vm1471 = vcmp.gt.f32.partialorder %v1133, 0.0
    %vm1472 = vcmp.gt.f32.partialorder %v1324, 0.0
    %vm1473 = vcmp.gt.f32.partialorder %v1326, 0.0
    %vm1474 = vcmp.gt.f32.partialorder %v1137, 0.0
    %vm1475 = vcmp.gt.f32.partialorder %v1139, 0.0
    %vm1476 = vcmp.gt.f32.partialorder %v1330, 0.0
    %vm1477 = vcmp.gt.f32.partialorder %v1332, 0.0
    %vm1478 = vcmp.gt.f32.partialorder %v1141, 0.0
    %vm1479 = vcmp.gt.f32.partialorder %v1143, 0.0
    %vm1480 = vcmp.gt.f32.partialorder %v1334, 0.0
    %vm1481 = vcmp.gt.f32.partialorder %v1336, 0.0
    %vm1482 = vcmp.gt.f32.partialorder %v1147, 0.0
    %vm1483 = vcmp.gt.f32.partialorder %v1149, 0.0
    %vm1484 = vcmp.gt.f32.partialorder %v1340, 0.0
    %vm1485 = vcmp.gt.f32.partialorder %v1342, 0.0
    %vm1486 = vcmp.gt.f32.partialorder %v1151, 0.0
    %vm1487 = vcmp.gt.f32.partialorder %v1153, 0.0
    %vm1488 = vcmp.gt.f32.partialorder %v1344, 0.0
    %vm1489 = vcmp.gt.f32.partialorder %v1346, 0.0
    %vm1490 = vcmp.gt.f32.partialorder %v1157, 0.0
    %vm1491 = vcmp.gt.f32.partialorder %v1159, 0.0
    %vm1492 = vcmp.gt.f32.partialorder %v1350, 0.0
    %vm1493 = vcmp.gt.f32.partialorder %v1352, 0.0
    %vm1494 = vcmp.gt.f32.partialorder %v1161, 0.0
    %vm1495 = vcmp.gt.f32.partialorder %v1163, 0.0
    %vm1496 = vcmp.gt.f32.partialorder %v1354, 0.0
    %vm1497 = vcmp.gt.f32.partialorder %v1356, 0.0
    %vm1498 = vcmp.gt.f32.partialorder %v1167, 0.0
    %vm1499 = vcmp.gt.f32.partialorder %v1169, 0.0
    %vm1500 = vcmp.gt.f32.partialorder %v1360, 0.0
    %vm1501 = vcmp.gt.f32.partialorder %v1362, 0.0
    %vm1502 = vcmp.gt.f32.partialorder %v1171, 0.0
    %vm1503 = vcmp.gt.f32.partialorder %v1173, 0.0
    %vm1504 = vcmp.gt.f32.partialorder %v1364, 0.0
    %vm1505 = vcmp.gt.f32.partialorder %v1366, 0.0
    %vm1506 = vcmp.gt.f32.partialorder %v1177, 0.0
    %vm1507 = vcmp.gt.f32.partialorder %v1179, 0.0
    %vm1508 = vcmp.gt.f32.partialorder %v1370, 0.0
    %vm1509 = vcmp.gt.f32.partialorder %v1372, 0.0
    %vm1510 = vcmp.gt.f32.partialorder %v1181, 0.0
    %vm1511 = vcmp.gt.f32.partialorder %v1183, 0.0
    %vm1512 = vcmp.gt.f32.partialorder %v1374, 0.0
    %vm1513 = vcmp.gt.f32.partialorder %v1376, 0.0
    %vm1514 = vcmp.gt.f32.partialorder %v1187, 0.0
    %vm1515 = vcmp.gt.f32.partialorder %v1189, 0.0
    %vm1516 = vcmp.gt.f32.partialorder %v1380, 0.0
    %vm1517 = vcmp.gt.f32.partialorder %v1382, 0.0
    %vm1518 = vcmp.gt.f32.partialorder %v1191, 0.0
    %vm1519 = vcmp.gt.f32.partialorder %v1193, 0.0
    %vm1520 = vcmp.gt.f32.partialorder %v1384, 0.0
    %vm1521 = vcmp.gt.f32.partialorder %v1386, 0.0
    %vm1522 = vcmp.gt.f32.partialorder %v1197, 0.0
    %vm1523 = vcmp.gt.f32.partialorder %v1199, 0.0
    %vm1524 = vcmp.gt.f32.partialorder %v1390, 0.0
    %vm1525 = vcmp.gt.f32.partialorder %v1392, 0.0
    %vm1526 = vcmp.gt.f32.partialorder %v1201, 0.0
    %vm1527 = vcmp.gt.f32.partialorder %v1203, 0.0
    %vm1528 = vcmp.gt.f32.partialorder %v1394, 0.0
    %vm1529 = vcmp.gt.f32.partialorder %v1396, 0.0
    %vm1530 = vcmp.gt.f32.partialorder %v1207, 0.0
    %vm1531 = vcmp.gt.f32.partialorder %v1209, 0.0
    %vm1532 = vcmp.gt.f32.partialorder %v1400, 0.0
    %vm1533 = vcmp.gt.f32.partialorder %v1402, 0.0
    %vm1534 = vcmp.gt.f32.partialorder %v1211, 0.0
    %vm1535 = vcmp.gt.f32.partialorder %v1213, 0.0
    %vm1536 = vcmp.gt.f32.partialorder %v1404, 0.0
    %vm1537 = vcmp.gt.f32.partialorder %v1406, 0.0
    %vm1538 = vcmp.gt.f32.partialorder %v1217, 0.0
    %vm1539 = vcmp.gt.f32.partialorder %v1219, 0.0
    %vm1540 = vcmp.gt.f32.partialorder %v1410, 0.0
    %vm1541 = vcmp.gt.f32.partialorder %v1412, 0.0
    %vm1542 = vcmp.gt.f32.partialorder %v1221, 0.0
    %vm1543 = vcmp.gt.f32.partialorder %v1223, 0.0
    %vm1544 = vcmp.gt.f32.partialorder %v1414, 0.0
    %vm1545 = vcmp.gt.f32.partialorder %v1416, 0.0
    %v1546 = vmul.f32 %v1067, 0.2
    %v1547 = vmul.f32 %v1069, 0.2
    %v1548 = vmul.f32 %v1260, 0.2
    %v1549 = vmul.f32 %v1262, 0.2
    %v1550 = vmul.f32 %v1071, 0.2
    %v1551 = vmul.f32 %v1073, 0.2
    %v1552 = vmul.f32 %v1264, 0.2
    %v1553 = vmul.f32 %v1266, 0.2
    %v1554 = vmul.f32 %v1077, 0.2
    %v1555 = vmul.f32 %v1079, 0.2
    %v1556 = vmul.f32 %v1270, 0.2
    %v1557 = vmul.f32 %v1272, 0.2
    %v1558 = vmul.f32 %v1081, 0.2
    %v1559 = vmul.f32 %v1083, 0.2
    %v1560 = vmul.f32 %v1274, 0.2
    %v1561 = vmul.f32 %v1276, 0.2
    %v1562 = vmul.f32 %v1087, 0.2
    %v1563 = vmul.f32 %v1089, 0.2
    %v1564 = vmul.f32 %v1280, 0.2
    %v1565 = vmul.f32 %v1282, 0.2
    %v1566 = vmul.f32 %v1091, 0.2
    %v1567 = vmul.f32 %v1093, 0.2
    %v1568 = vmul.f32 %v1284, 0.2
    %v1569 = vmul.f32 %v1286, 0.2
    %v1570 = vmul.f32 %v1097, 0.2
    %v1571 = vmul.f32 %v1099, 0.2
    %v1572 = vmul.f32 %v1290, 0.2
    %v1573 = vmul.f32 %v1292, 0.2
    %v1574 = vmul.f32 %v1101, 0.2
    %v1575 = vmul.f32 %v1103, 0.2
    %v1576 = vmul.f32 %v1294, 0.2
    %v1577 = vmul.f32 %v1296, 0.2
    %v1578 = vmul.f32 %v1107, 0.2
    %v1579 = vmul.f32 %v1109, 0.2
    %v1580 = vmul.f32 %v1300, 0.2
    %v1581 = vmul.f32 %v1302, 0.2
    %v1582 = vmul.f32 %v1111, 0.2
    %v1583 = vmul.f32 %v1113, 0.2
    %v1584 = vmul.f32 %v1304, 0.2
    %v1585 = vmul.f32 %v1306, 0.2
    %v1586 = vmul.f32 %v1117, 0.2
    %v1587 = vmul.f32 %v1119, 0.2
    %v1588 = vmul.f32 %v1310, 0.2
    %v1589 = vmul.f32 %v1312, 0.2
    %v1590 = vmul.f32 %v1121, 0.2
    %v1591 = vmul.f32 %v1123, 0.2
    %v1592 = vmul.f32 %v1314, 0.2
    %v1593 = vmul.f32 %v1316, 0.2
    %v1594 = vmul.f32 %v1127, 0.2
    %v1595 = vmul.f32 %v1129, 0.2
    %v1596 = vmul.f32 %v1320, 0.2
    %v1597 = vmul.f32 %v1322, 0.2
    %v1598 = vmul.f32 %v1131, 0.2
    %v1599 = vmul.f32 %v1133, 0.2
    %v1600 = vmul.f32 %v1324, 0.2
    %v1601 = vmul.f32 %v1326, 0.2
    %v1602 = vmul.f32 %v1137, 0.2
    %v1603 = vmul.f32 %v1139, 0.2
    %v1604 = vmul.f32 %v1330, 0.2
    %v1605 = vmul.f32 %v1332, 0.2
    %v1606 = vmul.f32 %v1141, 0.2
    %v1607 = vmul.f32 %v1143, 0.2
    %v1608 = vmul.f32 %v1334, 0.2
    %v1609 = vmul.f32 %v1336, 0.2
    %v1610 = vmul.f32 %v1147, 0.2
    %v1611 = vmul.f32 %v1149, 0.2
    %v1612 = vmul.f32 %v1340, 0.2
    %v1613 = vmul.f32 %v1342, 0.2
    %v1614 = vmul.f32 %v1151, 0.2
    %v1615 = vmul.f32 %v1153, 0.2
    %v1616 = vmul.f32 %v1344, 0.2
    %v1617 = vmul.f32 %v1346, 0.2
    %v1618 = vmul.f32 %v1157, 0.2
    %v1619 = vmul.f32 %v1159, 0.2
    %v1620 = vmul.f32 %v1350, 0.2
    %v1621 = vmul.f32 %v1352, 0.2
    %v1622 = vmul.f32 %v1161, 0.2
    %v1623 = vmul.f32 %v1163, 0.2
    %v1624 = vmul.f32 %v1354, 0.2
    %v1625 = vmul.f32 %v1356, 0.2
    %v1626 = vmul.f32 %v1167, 0.2
    %v1627 = vmul.f32 %v1169, 0.2
    %v1628 = vmul.f32 %v1360, 0.2
    %v1629 = vmul.f32 %v1362, 0.2
    %v1630 = vmul.f32 %v1171, 0.2
    %v1631 = vmul.f32 %v1173, 0.2
    %v1632 = vmul.f32 %v1364, 0.2
    %v1633 = vmul.f32 %v1366, 0.2
    %v1634 = vmul.f32 %v1177, 0.2
    %v1635 = vmul.f32 %v1179, 0.2
    %v1636 = vmul.f32 %v1370, 0.2
    %v1637 = vmul.f32 %v1372, 0.2
    %v1638 = vmul.f32 %v1181, 0.2
    %v1639 = vmul.f32 %v1183, 0.2
    %v1640 = vmul.f32 %v1374, 0.2
    %v1641 = vmul.f32 %v1376, 0.2
    %v1642 = vmul.f32 %v1187, 0.2
    %v1643 = vmul.f32 %v1189, 0.2
    %v1644 = vmul.f32 %v1380, 0.2
    %v1645 = vmul.f32 %v1382, 0.2
    %v1646 = vmul.f32 %v1191, 0.2
    %v1647 = vmul.f32 %v1193, 0.2
    %v1648 = vmul.f32 %v1384, 0.2
    %v1649 = vmul.f32 %v1386, 0.2
    %v1650 = vmul.f32 %v1197, 0.2
    %v1651 = vmul.f32 %v1199, 0.2
    %v1652 = vmul.f32 %v1390, 0.2
    %v1653 = vmul.f32 %v1392, 0.2
    %v1654 = vmul.f32 %v1201, 0.2
    %v1655 = vmul.f32 %v1203, 0.2
    %v1656 = vmul.f32 %v1394, 0.2
    %v1657 = vmul.f32 %v1396, 0.2
    %v1658 = vmul.f32 %v1207, 0.2
    %v1659 = vmul.f32 %v1209, 0.2
    %v1660 = vmul.f32 %v1400, 0.2
    %v1661 = vmul.f32 %v1402, 0.2
    %v1662 = vmul.f32 %v1211, 0.2
    %v1663 = vmul.f32 %v1213, 0.2
    %v1664 = vmul.f32 %v1404, 0.2
    %v1665 = vmul.f32 %v1406, 0.2
    %v1666 = vmul.f32 %v1217, 0.2
    %v1667 = vmul.f32 %v1219, 0.2
    %v1668 = vmul.f32 %v1410, 0.2
    %v1669 = vmul.f32 %v1412, 0.2
    %v1670 = vmul.f32 %v1221, 0.2
    %v1671 = vmul.f32 %v1223, 0.2
    %v1672 = vmul.f32 %v1414, 0.2
    %v1673 = vmul.f32 %v1416, 0.2
    %v1674 = vsel %vm1418, %v1067, %v1546
    %v1675 = vsel %vm1419, %v1069, %v1547
    %v1676 = vsel %vm1420, %v1260, %v1548
    %v1677 = vsel %vm1421, %v1262, %v1549
    %v1678 = vsel %vm1422, %v1071, %v1550
    %v1679 = vsel %vm1423, %v1073, %v1551
    %v1680 = vsel %vm1424, %v1264, %v1552
    %v1681 = vsel %vm1425, %v1266, %v1553
    %v1682 = vsel %vm1426, %v1077, %v1554
    %v1683 = vsel %vm1427, %v1079, %v1555
    %v1684 = vsel %vm1428, %v1270, %v1556
    %v1685 = vsel %vm1429, %v1272, %v1557
    %v1686 = vsel %vm1430, %v1081, %v1558
    %v1687 = vsel %vm1431, %v1083, %v1559
    %v1688 = vsel %vm1432, %v1274, %v1560
    %v1689 = vsel %vm1433, %v1276, %v1561
    %v1690 = vsel %vm1434, %v1087, %v1562
    %v1691 = vsel %vm1435, %v1089, %v1563
    %v1692 = vsel %vm1436, %v1280, %v1564
    %v1693 = vsel %vm1437, %v1282, %v1565
    %v1694 = vsel %vm1438, %v1091, %v1566
    %v1695 = vsel %vm1439, %v1093, %v1567
    %v1696 = vsel %vm1440, %v1284, %v1568
    %v1697 = vsel %vm1441, %v1286, %v1569
    %v1698 = vsel %vm1442, %v1097, %v1570
    %v1699 = vsel %vm1443, %v1099, %v1571
    %v1700 = vsel %vm1444, %v1290, %v1572
    %v1701 = vsel %vm1445, %v1292, %v1573
    %v1702 = vsel %vm1446, %v1101, %v1574
    %v1703 = vsel %vm1447, %v1103, %v1575
    %v1704 = vsel %vm1448, %v1294, %v1576
    %v1705 = vsel %vm1449, %v1296, %v1577
    %v1706 = vsel %vm1450, %v1107, %v1578
    %v1707 = vsel %vm1451, %v1109, %v1579
    %v1708 = vsel %vm1452, %v1300, %v1580
    %v1709 = vsel %vm1453, %v1302, %v1581
    %v1710 = vsel %vm1454, %v1111, %v1582
    %v1711 = vsel %vm1455, %v1113, %v1583
    %v1712 = vsel %vm1456, %v1304, %v1584
    %v1713 = vsel %vm1457, %v1306, %v1585
    %v1714 = vsel %vm1458, %v1117, %v1586
    %v1715 = vsel %vm1459, %v1119, %v1587
    %v1716 = vsel %vm1460, %v1310, %v1588
    %v1717 = vsel %vm1461, %v1312, %v1589
    %v1718 = vsel %vm1462, %v1121, %v1590
    %v1719 = vsel %vm1463, %v1123, %v1591
    %v1720 = vsel %vm1464, %v1314, %v1592
    %v1721 = vsel %vm1465, %v1316, %v1593
    %v1722 = vsel %vm1466, %v1127, %v1594
    %v1723 = vsel %vm1467, %v1129, %v1595
    %v1724 = vsel %vm1468, %v1320, %v1596
    %v1725 = vsel %vm1469, %v1322, %v1597
    %v1726 = vsel %vm1470, %v1131, %v1598
    %v1727 = vsel %vm1471, %v1133, %v1599
    %v1728 = vsel %vm1472, %v1324, %v1600
    %v1729 = vsel %vm1473, %v1326, %v1601
    %v1730 = vsel %vm1474, %v1137, %v1602
    %v1731 = vsel %vm1475, %v1139, %v1603
    %v1732 = vsel %vm1476, %v1330, %v1604
    %v1733 = vsel %vm1477, %v1332, %v1605
    %v1734 = vsel %vm1478, %v1141, %v1606
    %v1735 = vsel %vm1479, %v1143, %v1607
    %v1736 = vsel %vm1480, %v1334, %v1608
    %v1737 = vsel %vm1481, %v1336, %v1609
    %v1738 = vsel %vm1482, %v1147, %v1610
    %v1739 = vsel %vm1483, %v1149, %v1611
    %v1740 = vsel %vm1484, %v1340, %v1612
    %v1741 = vsel %vm1485, %v1342, %v1613
    %v1742 = vsel %vm1486, %v1151, %v1614
    %v1743 = vsel %vm1487, %v1153, %v1615
    %v1744 = vsel %vm1488, %v1344, %v1616
    %v1745 = vsel %vm1489, %v1346, %v1617
    %v1746 = vsel %vm1490, %v1157, %v1618
    %v1747 = vsel %vm1491, %v1159, %v1619
    %v1748 = vsel %vm1492, %v1350, %v1620
    %v1749 = vsel %vm1493, %v1352, %v1621
    %v1750 = vsel %vm1494, %v1161, %v1622
    %v1751 = vsel %vm1495, %v1163, %v1623
    %v1752 = vsel %vm1496, %v1354, %v1624
    %v1753 = vsel %vm1497, %v1356, %v1625
    %v1754 = vsel %vm1498, %v1167, %v1626
    %v1755 = vsel %vm1499, %v1169, %v1627
    %v1756 = vsel %vm1500, %v1360, %v1628
    %v1757 = vsel %vm1501, %v1362, %v1629
    %v1758 = vsel %vm1502, %v1171, %v1630
    %v1759 = vsel %vm1503, %v1173, %v1631
    %v1760 = vsel %vm1504, %v1364, %v1632
    %v1761 = vsel %vm1505, %v1366, %v1633
    %v1762 = vsel %vm1506, %v1177, %v1634
    %v1763 = vsel %vm1507, %v1179, %v1635
    %v1764 = vsel %vm1508, %v1370, %v1636
    %v1765 = vsel %vm1509, %v1372, %v1637
    %v1766 = vsel %vm1510, %v1181, %v1638
    %v1767 = vsel %vm1511, %v1183, %v1639
    %v1768 = vsel %vm1512, %v1374, %v1640
    %v1769 = vsel %vm1513, %v1376, %v1641
    %v1770 = vsel %vm1514, %v1187, %v1642
    %v1771 = vsel %vm1515, %v1189, %v1643
    %v1772 = vsel %vm1516, %v1380, %v1644
    %v1773 = vsel %vm1517, %v1382, %v1645
    %v1774 = vsel %vm1518, %v1191, %v1646
    %v1775 = vsel %vm1519, %v1193, %v1647
    %v1776 = vsel %vm1520, %v1384, %v1648
    %v1777 = vsel %vm1521, %v1386, %v1649
    %v1778 = vsel %vm1522, %v1197, %v1650
    %v1779 = vsel %vm1523, %v1199, %v1651
    %v1780 = vsel %vm1524, %v1390, %v1652
    %v1781 = vsel %vm1525, %v1392, %v1653
    %v1782 = vsel %vm1526, %v1201, %v1654
    %v1783 = vsel %vm1527, %v1203, %v1655
    %v1784 = vsel %vm1528, %v1394, %v1656
    %v1785 = vsel %vm1529, %v1396, %v1657
    %v1786 = vsel %vm1530, %v1207, %v1658
    %v1787 = vsel %vm1531, %v1209, %v1659
    %v1788 = vsel %vm1532, %v1400, %v1660
    %v1789 = vsel %vm1533, %v1402, %v1661
    %v1790 = vsel %vm1534, %v1211, %v1662
    %v1791 = vsel %vm1535, %v1213, %v1663
    %v1792 = vsel %vm1536, %v1404, %v1664
    %v1793 = vsel %vm1537, %v1406, %v1665
    %v1794 = vsel %vm1538, %v1217, %v1666
    %v1795 = vsel %vm1539, %v1219, %v1667
    %v1796 = vsel %vm1540, %v1410, %v1668
    %v1797 = vsel %vm1541, %v1412, %v1669
    %v1798 = vsel %vm1542, %v1221, %v1670
    %v1799 = vsel %vm1543, %v1223, %v1671
    %v1800 = vsel %vm1544, %v1414, %v1672
    %v1801 = vsel %vm1545, %v1416, %v1673
    %v1802 = vpack.c.bf16 %v1678, %v1674
    %v1803 = vpack.c.bf16 %v1679, %v1675
    %v1804 = vpack.c.bf16 %v1680, %v1676
    %v1805 = vpack.c.bf16 %v1681, %v1677
    %v1806 = vpack.c.bf16 %v1686, %v1682
    %v1807 = vpack.c.bf16 %v1687, %v1683
    %v1808 = vpack.c.bf16 %v1688, %v1684
    %v1809 = vpack.c.bf16 %v1689, %v1685
    %v1810 = vpack.c.bf16 %v1694, %v1690
    %v1811 = vpack.c.bf16 %v1695, %v1691
    %v1812 = vpack.c.bf16 %v1696, %v1692
    %v1813 = vpack.c.bf16 %v1697, %v1693
    %v1814 = vpack.c.bf16 %v1702, %v1698
    %v1815 = vpack.c.bf16 %v1703, %v1699
    %v1816 = vpack.c.bf16 %v1704, %v1700
    %v1817 = vpack.c.bf16 %v1705, %v1701
    %v1818 = vpack.c.bf16 %v1710, %v1706
    %v1819 = vpack.c.bf16 %v1711, %v1707
    %v1820 = vpack.c.bf16 %v1712, %v1708
    %v1821 = vpack.c.bf16 %v1713, %v1709
    %v1822 = vpack.c.bf16 %v1718, %v1714
    %v1823 = vpack.c.bf16 %v1719, %v1715
    %v1824 = vpack.c.bf16 %v1720, %v1716
    %v1825 = vpack.c.bf16 %v1721, %v1717
    %v1826 = vpack.c.bf16 %v1726, %v1722
    %v1827 = vpack.c.bf16 %v1727, %v1723
    %v1828 = vpack.c.bf16 %v1728, %v1724
    %v1829 = vpack.c.bf16 %v1729, %v1725
    %v1830 = vpack.c.bf16 %v1734, %v1730
    %v1831 = vpack.c.bf16 %v1735, %v1731
    %v1832 = vpack.c.bf16 %v1736, %v1732
    %v1833 = vpack.c.bf16 %v1737, %v1733
    %v1834 = vpack.c.bf16 %v1742, %v1738
    %v1835 = vpack.c.bf16 %v1743, %v1739
    %v1836 = vpack.c.bf16 %v1744, %v1740
    %v1837 = vpack.c.bf16 %v1745, %v1741
    %v1838 = vpack.c.bf16 %v1750, %v1746
    %v1839 = vpack.c.bf16 %v1751, %v1747
    %v1840 = vpack.c.bf16 %v1752, %v1748
    %v1841 = vpack.c.bf16 %v1753, %v1749
    %v1842 = vpack.c.bf16 %v1758, %v1754
    %v1843 = vpack.c.bf16 %v1759, %v1755
    %v1844 = vpack.c.bf16 %v1760, %v1756
    %v1845 = vpack.c.bf16 %v1761, %v1757
    %v1846 = vpack.c.bf16 %v1766, %v1762
    %v1847 = vpack.c.bf16 %v1767, %v1763
    %v1848 = vpack.c.bf16 %v1768, %v1764
    %v1849 = vpack.c.bf16 %v1769, %v1765
    %v1850 = vpack.c.bf16 %v1774, %v1770
    %v1851 = vpack.c.bf16 %v1775, %v1771
    %v1852 = vpack.c.bf16 %v1776, %v1772
    %v1853 = vpack.c.bf16 %v1777, %v1773
    %v1854 = vpack.c.bf16 %v1782, %v1778
    %v1855 = vpack.c.bf16 %v1783, %v1779
    %v1856 = vpack.c.bf16 %v1784, %v1780
    %v1857 = vpack.c.bf16 %v1785, %v1781
    %v1858 = vpack.c.bf16 %v1790, %v1786
    %v1859 = vpack.c.bf16 %v1791, %v1787
    %v1860 = vpack.c.bf16 %v1792, %v1788
    %v1861 = vpack.c.bf16 %v1793, %v1789
    %v1862 = vpack.c.bf16 %v1798, %v1794
    %v1863 = vpack.c.bf16 %v1799, %v1795
    %v1864 = vpack.c.bf16 %v1800, %v1796
    %v1865 = vpack.c.bf16 %v1801, %v1797
    %v1866 = vld [vmem:[#allocation5] sm:$0xff]
    %v1867 = vld [vmem:[#allocation5 + $0x8] sm:$0xff]
    %v1868 = vld [vmem:[#allocation5 + $0x10] sm:$0xff]
    %v1869 = vld [vmem:[#allocation5 + $0x18] sm:$0xf]
    %v1870 = vld [vmem:[#allocation5 + $0x1c] sm:$0xff]
    %v1871 = vld [vmem:[#allocation5 + $0x24] sm:$0xff]
    %v1872 = vld [vmem:[#allocation5 + $0x2c] sm:$0xff]
    %v1873 = vld [vmem:[#allocation5 + $0x34] sm:$0xf]
    %v1874 = vld [vmem:[#allocation5 + $0x38] sm:$0xff]
    %v1875 = vld [vmem:[#allocation5 + $0x40] sm:$0xff]
    %v1876 = vld [vmem:[#allocation5 + $0x48] sm:$0xff]
    %v1877 = vld [vmem:[#allocation5 + $0x50] sm:$0xf]
    %v1878 = vld [vmem:[#allocation5 + $0x54] sm:$0xff]
    %v1879 = vld [vmem:[#allocation5 + $0x5c] sm:$0xff]
    %v1880 = vld [vmem:[#allocation5 + $0x64] sm:$0xff]
    %v1881 = vld [vmem:[#allocation5 + $0x6c] sm:$0xf]
    %v1882 = vld [vmem:[#allocation5 + $0x70] sm:$0xff]
    %v1883 = vld [vmem:[#allocation5 + $0x78] sm:$0xff]
    %v1884 = vld [vmem:[#allocation5 + $0x80] sm:$0xff]
    %v1885 = vld [vmem:[#allocation5 + $0x88] sm:$0xf]
    %v1886 = vld [vmem:[#allocation5 + $0x8c] sm:$0xff]
    %v1887 = vld [vmem:[#allocation5 + $0x94] sm:$0xff]
    %v1888 = vld [vmem:[#allocation5 + $0x9c] sm:$0xff]
    %v1889 = vld [vmem:[#allocation5 + $0xa4] sm:$0xf]
    %v1890 = vld [vmem:[#allocation5 + $0xa8] sm:$0xff]
    %v1891 = vld [vmem:[#allocation5 + $0xb0] sm:$0xff]
    %v1892 = vld [vmem:[#allocation5 + $0xb8] sm:$0xff]
    %v1893 = vld [vmem:[#allocation5 + $0xc0] sm:$0xf]
    %v1894 = vld [vmem:[#allocation5 + $0xc4] sm:$0xff]
    %v1895 = vld [vmem:[#allocation5 + $0xcc] sm:$0xff]
    %v1896 = vld [vmem:[#allocation5 + $0xd4] sm:$0xff]
    %v1897 = vld [vmem:[#allocation5 + $0xdc] sm:$0xf]
    %v1898 = vld [vmem:[#allocation5 + $0xe0] sm:$0xff]
    %v1899 = vld [vmem:[#allocation5 + $0xe8] sm:$0xff]
    %v1900 = vld [vmem:[#allocation5 + $0xf0] sm:$0xff]
    %v1901 = vld [vmem:[#allocation5 + $0xf8] sm:$0xf]
    %v1902 = vld [vmem:[#allocation5 + $0xfc] sm:$0xff]
    %v1903 = vld [vmem:[#allocation5 + $0x104] sm:$0xff]
    %v1904 = vld [vmem:[#allocation5 + $0x10c] sm:$0xff]
    %v1905 = vld [vmem:[#allocation5 + $0x114] sm:$0xf]
    %v1906 = vld [vmem:[#allocation5 + $0x118] sm:$0xff]
    %v1907 = vld [vmem:[#allocation5 + $0x120] sm:$0xff]
    %v1908 = vld [vmem:[#allocation5 + $0x128] sm:$0xff]
    %v1909 = vld [vmem:[#allocation5 + $0x130] sm:$0xf]
    %v1910 = vld [vmem:[#allocation5 + $0x134] sm:$0xff]
    %v1911 = vld [vmem:[#allocation5 + $0x13c] sm:$0xff]
    %v1912 = vld [vmem:[#allocation5 + $0x144] sm:$0xff]
    %v1913 = vld [vmem:[#allocation5 + $0x14c] sm:$0xf]
    %v1914 = vld [vmem:[#allocation5 + $0x150] sm:$0xff]
    %v1915 = vld [vmem:[#allocation5 + $0x158] sm:$0xff]
    %v1916 = vld [vmem:[#allocation5 + $0x160] sm:$0xff]
    %v1917 = vld [vmem:[#allocation5 + $0x168] sm:$0xf]
    %v1918 = vld [vmem:[#allocation5 + $0x16c] sm:$0xff]
    %v1919 = vld [vmem:[#allocation5 + $0x174] sm:$0xff]
    %v1920 = vld [vmem:[#allocation5 + $0x17c] sm:$0xff]
    %v1921 = vld [vmem:[#allocation5 + $0x184] sm:$0xf]
    %v1922 = vld [vmem:[#allocation5 + $0x188] sm:$0xff]
    %v1923 = vld [vmem:[#allocation5 + $0x190] sm:$0xff]
    %v1924 = vld [vmem:[#allocation5 + $0x198] sm:$0xff]
    %v1925 = vld [vmem:[#allocation5 + $0x1a0] sm:$0xf]
    %v1926 = vld [vmem:[#allocation5 + $0x1a4] sm:$0xff]
    %v1927 = vld [vmem:[#allocation5 + $0x1ac] sm:$0xff]
    %v1928 = vld [vmem:[#allocation5 + $0x1b4] sm:$0xff]
    %v1929 = vld [vmem:[#allocation5 + $0x1bc] sm:$0xf]
    %v1930 = vld [vmem:[#allocation5 + $0x1c0] sm:$0xff]
    %v1931 = vld [vmem:[#allocation5 + $0x1c8] sm:$0xff]
    %v1932 = vld [vmem:[#allocation5 + $0x1d0] sm:$0xff]
    %v1933 = vld [vmem:[#allocation5 + $0x1d8] sm:$0xf]
    %v1934 = vld [vmem:[#allocation5 + $0x1dc] sm:$0xff]
    %v1935 = vld [vmem:[#allocation5 + $0x1e4] sm:$0xff]
    %v1936 = vld [vmem:[#allocation5 + $0x1ec] sm:$0xff]
    %v1937 = vld [vmem:[#allocation5 + $0x1f4] sm:$0xf]
    %v1938 = vld [vmem:[#allocation5 + $0x1f8] sm:$0xff]
    %v1939 = vld [vmem:[#allocation5 + $0x200] sm:$0xff]
    %v1940 = vld [vmem:[#allocation5 + $0x208] sm:$0xff]
    %v1941 = vld [vmem:[#allocation5 + $0x210] sm:$0xf]
    %v1942 = vld [vmem:[#allocation5 + $0x214] sm:$0xff]
    %v1943 = vld [vmem:[#allocation5 + $0x21c] sm:$0xff]
    %v1944 = vld [vmem:[#allocation5 + $0x224] sm:$0xff]
    %v1945 = vld [vmem:[#allocation5 + $0x22c] sm:$0xf]
    %v1946 = vld [vmem:[#allocation5 + $0x230] sm:$0xff]
    %v1947 = vld [vmem:[#allocation5 + $0x238] sm:$0xff]
    %v1948 = vld [vmem:[#allocation5 + $0x240] sm:$0xff]
    %v1949 = vld [vmem:[#allocation5 + $0x248] sm:$0xf]
    %v1950 = vld [vmem:[#allocation5 + $0x24c] sm:$0xff]
    %v1951 = vld [vmem:[#allocation5 + $0x254] sm:$0xff]
    %v1952 = vld [vmem:[#allocation5 + $0x25c] sm:$0xff]
    %v1953 = vld [vmem:[#allocation5 + $0x264] sm:$0xf]
    %v1954 = vld [vmem:[#allocation5 + $0x268] sm:$0xff]
    %v1955 = vld [vmem:[#allocation5 + $0x270] sm:$0xff]
    %v1956 = vld [vmem:[#allocation5 + $0x278] sm:$0xff]
    %v1957 = vld [vmem:[#allocation5 + $0x280] sm:$0xf]
    %v1958 = vld [vmem:[#allocation5 + $0x284] sm:$0xff]
    %v1959 = vld [vmem:[#allocation5 + $0x28c] sm:$0xff]
    %v1960 = vld [vmem:[#allocation5 + $0x294] sm:$0xff]
    %v1961 = vld [vmem:[#allocation5 + $0x29c] sm:$0xf]
    %v1962 = vld [vmem:[#allocation5 + $0x2a0] sm:$0xff]
    %v1963 = vld [vmem:[#allocation5 + $0x2a8] sm:$0xff]
    %v1964 = vld [vmem:[#allocation5 + $0x2b0] sm:$0xff]
    %v1965 = vld [vmem:[#allocation5 + $0x2b8] sm:$0xf]
    %v1966 = vld [vmem:[#allocation5 + $0x2bc] sm:$0xff]
    %v1967 = vld [vmem:[#allocation5 + $0x2c4] sm:$0xff]
    %v1968 = vld [vmem:[#allocation5 + $0x2cc] sm:$0xff]
    %v1969 = vld [vmem:[#allocation5 + $0x2d4] sm:$0xf]
    %v1970 = vld [vmem:[#allocation5 + $0x2d8] sm:$0xff]
    %v1971 = vld [vmem:[#allocation5 + $0x2e0] sm:$0xff]
    %v1972 = vld [vmem:[#allocation5 + $0x2e8] sm:$0xff]
    %v1973 = vld [vmem:[#allocation5 + $0x2f0] sm:$0xf]
    %v1974 = vld [vmem:[#allocation5 + $0x2f4] sm:$0xff]
    %v1975 = vld [vmem:[#allocation5 + $0x2fc] sm:$0xff]
    %v1976 = vld [vmem:[#allocation5 + $0x304] sm:$0xff]
    %v1977 = vld [vmem:[#allocation5 + $0x30c] sm:$0xf]
    %v1978 = vld [vmem:[#allocation5 + $0x310] sm:$0xff]
    %v1979 = vld [vmem:[#allocation5 + $0x318] sm:$0xff]
    %v1980 = vld [vmem:[#allocation5 + $0x320] sm:$0xff]
    %v1981 = vld [vmem:[#allocation5 + $0x328] sm:$0xf]
    %v1982 = vld [vmem:[#allocation5 + $0x32c] sm:$0xff]
    %v1983 = vld [vmem:[#allocation5 + $0x334] sm:$0xff]
    %v1984 = vld [vmem:[#allocation5 + $0x33c] sm:$0xff]
    %v1985 = vld [vmem:[#allocation5 + $0x344] sm:$0xf]
    %v1986 = vld [vmem:[#allocation5 + $0x348] sm:$0xff]
    %v1987 = vld [vmem:[#allocation5 + $0x350] sm:$0xff]
    %v1988 = vld [vmem:[#allocation5 + $0x358] sm:$0xff]
    %v1989 = vld [vmem:[#allocation5 + $0x360] sm:$0xf]
    %v1990 = vld [vmem:[#allocation5 + $0x364] sm:$0xff]
    %v1991 = vld [vmem:[#allocation5 + $0x36c] sm:$0xff]
    %v1992 = vld [vmem:[#allocation5 + $0x374] sm:$0xff]
    %v1993 = vld [vmem:[#allocation5 + $0x37c] sm:$0xf]
    %v1994 = vld [vmem:[#allocation5 + $0x380] sm:$0xff]
    %v1995 = vld [vmem:[#allocation5 + $0x388] sm:$0xff]
    %v1996 = vld [vmem:[#allocation5 + $0x390] sm:$0xff]
    %v1997 = vld [vmem:[#allocation5 + $0x398] sm:$0xf]
    %v1998 = vld [vmem:[#allocation5 + $0x39c] sm:$0xff]
    %v1999 = vld [vmem:[#allocation5 + $0x3a4] sm:$0xff]
    %v2000 = vld [vmem:[#allocation5 + $0x3ac] sm:$0xff]
    %v2001 = vld [vmem:[#allocation5 + $0x3b4] sm:$0xf]
    %v2002 = vld [vmem:[#allocation5 + $0x3b8] sm:$0xff]
    %v2003 = vld [vmem:[#allocation5 + $0x3c0] sm:$0xff]
    %v2004 = vld [vmem:[#allocation5 + $0x3c8] sm:$0xff]
    %v2005 = vld [vmem:[#allocation5 + $0x3d0] sm:$0xf]
    %v2006 = vld [vmem:[#allocation5 + $0x3d4] sm:$0xff]
    %v2007 = vld [vmem:[#allocation5 + $0x3dc] sm:$0xff]
    %v2008 = vld [vmem:[#allocation5 + $0x3e4] sm:$0xff]
    %v2009 = vld [vmem:[#allocation5 + $0x3ec] sm:$0xf]
    %v2010 = vld [vmem:[#allocation5 + $0x3f0] sm:$0xff]
    %v2011 = vld [vmem:[#allocation5 + $0x3f8] sm:$0xff]
    %v2012 = vld [vmem:[#allocation5 + $0x400] sm:$0xff]
    %v2013 = vld [vmem:[#allocation5 + $0x408] sm:$0xf]
    %v2014 = vld [vmem:[#allocation5 + $0x40c] sm:$0xff]
    %v2015 = vld [vmem:[#allocation5 + $0x414] sm:$0xff]
    %v2016 = vld [vmem:[#allocation5 + $0x41c] sm:$0xff]
    %v2017 = vld [vmem:[#allocation5 + $0x424] sm:$0xf]
    %v2018 = vld [vmem:[#allocation5 + $0x428] sm:$0xff]
    %v2019 = vld [vmem:[#allocation5 + $0x430] sm:$0xff]
    %v2020 = vld [vmem:[#allocation5 + $0x438] sm:$0xff]
    %v2021 = vld [vmem:[#allocation5 + $0x440] sm:$0xf]
    %v2022 = vld [vmem:[#allocation5 + $0x444] sm:$0xff]
    %v2023 = vld [vmem:[#allocation5 + $0x44c] sm:$0xff]
    %v2024 = vld [vmem:[#allocation5 + $0x454] sm:$0xff]
    %v2025 = vld [vmem:[#allocation5 + $0x45c] sm:$0xf]
    %v2026 = vld [vmem:[#allocation5 + $0x460] sm:$0xff]
    %v2027 = vld [vmem:[#allocation5 + $0x468] sm:$0xff]
    %v2028 = vld [vmem:[#allocation5 + $0x470] sm:$0xff]
    %v2029 = vld [vmem:[#allocation5 + $0x478] sm:$0xf]
    %v2030 = vld [vmem:[#allocation5 + $0x47c] sm:$0xff]
    %v2031 = vld [vmem:[#allocation5 + $0x484] sm:$0xff]
    %v2032 = vld [vmem:[#allocation5 + $0x48c] sm:$0xff]
    %v2033 = vld [vmem:[#allocation5 + $0x494] sm:$0xf]
    %v2034 = vld [vmem:[#allocation5 + $0x498] sm:$0xff]
    %v2035 = vld [vmem:[#allocation5 + $0x4a0] sm:$0xff]
    %v2036 = vld [vmem:[#allocation5 + $0x4a8] sm:$0xff]
    %v2037 = vld [vmem:[#allocation5 + $0x4b0] sm:$0xf]
    %v2038 = vld [vmem:[#allocation5 + $0x4b4] sm:$0xff]
    %v2039 = vld [vmem:[#allocation5 + $0x4bc] sm:$0xff]
    %v2040 = vld [vmem:[#allocation5 + $0x4c4] sm:$0xff]
    %v2041 = vld [vmem:[#allocation5 + $0x4cc] sm:$0xf]
    %v2042 = vld [vmem:[#allocation5 + $0x4d0] sm:$0xff]
    %v2043 = vld [vmem:[#allocation5 + $0x4d8] sm:$0xff]
    %v2044 = vld [vmem:[#allocation5 + $0x4e0] sm:$0xff]
    %v2045 = vld [vmem:[#allocation5 + $0x4e8] sm:$0xf]
    %v2046 = vld [vmem:[#allocation5 + $0x4ec] sm:$0xff]
    %v2047 = vld [vmem:[#allocation5 + $0x4f4] sm:$0xff]
    %v2048 = vld [vmem:[#allocation5 + $0x4fc] sm:$0xff]
    %v2049 = vld [vmem:[#allocation5 + $0x504] sm:$0xf]
    %v2050 = vld [vmem:[#allocation5 + $0x508] sm:$0xff]
    %v2051 = vld [vmem:[#allocation5 + $0x510] sm:$0xff]
    %v2052 = vld [vmem:[#allocation5 + $0x518] sm:$0xff]
    %v2053 = vld [vmem:[#allocation5 + $0x520] sm:$0xf]
    %v2054 = vld [vmem:[#allocation5 + $0x524] sm:$0xff]
    %v2055 = vld [vmem:[#allocation5 + $0x52c] sm:$0xff]
    %v2056 = vld [vmem:[#allocation5 + $0x534] sm:$0xff]
    %v2057 = vld [vmem:[#allocation5 + $0x53c] sm:$0xf]
    %v2058 = vld [vmem:[#allocation5 + $0x540] sm:$0xff]
    %v2059 = vld [vmem:[#allocation5 + $0x548] sm:$0xff]
    %v2060 = vld [vmem:[#allocation5 + $0x550] sm:$0xff]
    %v2061 = vld [vmem:[#allocation5 + $0x558] sm:$0xf]
    %v2062 = vld [vmem:[#allocation5 + $0x55c] sm:$0xff]
    %v2063 = vld [vmem:[#allocation5 + $0x564] sm:$0xff]
    %v2064 = vld [vmem:[#allocation5 + $0x56c] sm:$0xff]
    %v2065 = vld [vmem:[#allocation5 + $0x574] sm:$0xf]
    %v2066 = vld [vmem:[#allocation5 + $0x578] sm:$0xff]
    %v2067 = vld [vmem:[#allocation5 + $0x580] sm:$0xff]
    %v2068 = vld [vmem:[#allocation5 + $0x588] sm:$0xff]
    %v2069 = vld [vmem:[#allocation5 + $0x590] sm:$0xf]
    %v2070 = vld [vmem:[#allocation5 + $0x594] sm:$0xff]
    %v2071 = vld [vmem:[#allocation5 + $0x59c] sm:$0xff]
    %v2072 = vld [vmem:[#allocation5 + $0x5a4] sm:$0xff]
    %v2073 = vld [vmem:[#allocation5 + $0x5ac] sm:$0xf]
    %v2074 = vld [vmem:[#allocation5 + $0x5b0] sm:$0xff]
    %v2075 = vld [vmem:[#allocation5 + $0x5b8] sm:$0xff]
    %v2076 = vld [vmem:[#allocation5 + $0x5c0] sm:$0xff]
    %v2077 = vld [vmem:[#allocation5 + $0x5c8] sm:$0xf]
    %v2078 = vld [vmem:[#allocation5 + $0x5cc] sm:$0xff]
    %v2079 = vld [vmem:[#allocation5 + $0x5d4] sm:$0xff]
    %v2080 = vld [vmem:[#allocation5 + $0x5dc] sm:$0xff]
    %v2081 = vld [vmem:[#allocation5 + $0x5e4] sm:$0xf]
    %v2082 = vld [vmem:[#allocation5 + $0x5e8] sm:$0xff]
    %v2083 = vld [vmem:[#allocation5 + $0x5f0] sm:$0xff]
    %v2084 = vld [vmem:[#allocation5 + $0x5f8] sm:$0xff]
    %v2085 = vld [vmem:[#allocation5 + $0x600] sm:$0xf]
    %v2086 = vld [vmem:[#allocation5 + $0x604] sm:$0xff]
    %v2087 = vld [vmem:[#allocation5 + $0x60c] sm:$0xff]
    %v2088 = vld [vmem:[#allocation5 + $0x614] sm:$0xff]
    %v2089 = vld [vmem:[#allocation5 + $0x61c] sm:$0xf]
    %v2090 = vld [vmem:[#allocation5 + $0x620] sm:$0xff]
    %v2091 = vld [vmem:[#allocation5 + $0x628] sm:$0xff]
    %v2092 = vld [vmem:[#allocation5 + $0x630] sm:$0xff]
    %v2093 = vld [vmem:[#allocation5 + $0x638] sm:$0xf]
    %v2094 = vld [vmem:[#allocation5 + $0x63c] sm:$0xff]
    %v2095 = vld [vmem:[#allocation5 + $0x644] sm:$0xff]
    %v2096 = vld [vmem:[#allocation5 + $0x64c] sm:$0xff]
    %v2097 = vld [vmem:[#allocation5 + $0x654] sm:$0xf]
    %v2098 = vld [vmem:[#allocation5 + $0x658] sm:$0xff]
    %v2099 = vld [vmem:[#allocation5 + $0x660] sm:$0xff]
    %v2100 = vld [vmem:[#allocation5 + $0x668] sm:$0xff]
    %v2101 = vld [vmem:[#allocation5 + $0x670] sm:$0xf]
    %v2102 = vld [vmem:[#allocation5 + $0x674] sm:$0xff]
    %v2103 = vld [vmem:[#allocation5 + $0x67c] sm:$0xff]
    %v2104 = vld [vmem:[#allocation5 + $0x684] sm:$0xff]
    %v2105 = vld [vmem:[#allocation5 + $0x68c] sm:$0xf]
    %v2106 = vld [vmem:[#allocation5 + $0x690] sm:$0xff]
    %v2107 = vld [vmem:[#allocation5 + $0x698] sm:$0xff]
    %v2108 = vld [vmem:[#allocation5 + $0x6a0] sm:$0xff]
    %v2109 = vld [vmem:[#allocation5 + $0x6a8] sm:$0xf]
    %v2110 = vld [vmem:[#allocation5 + $0x6ac] sm:$0xff]
    %v2111 = vld [vmem:[#allocation5 + $0x6b4] sm:$0xff]
    %v2112 = vld [vmem:[#allocation5 + $0x6bc] sm:$0xff]
    %v2113 = vld [vmem:[#allocation5 + $0x6c4] sm:$0xf]
    %v2114 = vld [vmem:[#allocation5 + $0x6c8] sm:$0xff]
    %v2115 = vld [vmem:[#allocation5 + $0x6d0] sm:$0xff]
    %v2116 = vld [vmem:[#allocation5 + $0x6d8] sm:$0xff]
    %v2117 = vld [vmem:[#allocation5 + $0x6e0] sm:$0xf]
    %v2118 = vld [vmem:[#allocation5 + $0x6e4] sm:$0xff]
    %v2119 = vld [vmem:[#allocation5 + $0x6ec] sm:$0xff]
    %v2120 = vld [vmem:[#allocation5 + $0x6f4] sm:$0xff]
    %v2121 = vld [vmem:[#allocation5 + $0x6fc] sm:$0xf]
    %v2124 = vlaneseq
    %v2125 = vshrl.u32 %v2124, 7
    %v2126 = vsub.s32 2, %v2125
    %v2127 = vrot.slane %v82, %v2126
    %v2128 = vlaneseq
    %v2129 = vshrl.u32 %v2128, 7
    %v2130 = vsub.s32 6, %v2129
    %v2131 = vrot.slane %v82, %v2130
    %v2132 = vlaneseq
    %v2133 = vshrl.u32 %v2132, 7
    %v2134 = vsub.s32 2, %v2133
    %v2135 = vrot.slane %v83, %v2134
    %v2136 = vlaneseq
    %v2137 = vshrl.u32 %v2136, 7
    %v2138 = vsub.s32 6, %v2137
    %v2139 = vrot.slane %v83, %v2138
    %v2140 = vlaneseq
    %v2141 = vshrl.u32 %v2140, 7
    %v2142 = vsub.s32 2, %v2141
    %v2143 = vrot.slane %v84, %v2142
    %v2144 = vlaneseq
    %v2145 = vshrl.u32 %v2144, 7
    %v2146 = vsub.s32 6, %v2145
    %v2147 = vrot.slane %v84, %v2146
    %v2148 = vlaneseq
    %v2149 = vshrl.u32 %v2148, 7
    %v2150 = vsub.s32 2, %v2149
    %v2151 = vrot.slane %v85, %v2150
    %v2159 = vlaneseq
    %v2160 = vshrl.u32 %v2159, 7
    %v2161 = vsub.s32 2, %v2160
    %v2162 = vrot.slane %v2127, %v2161
    %v2163 = vlaneseq
    %v2164 = vshrl.u32 %v2163, 7
    %v2165 = vsub.s32 2, %v2164
    %v2166 = vrot.slane %v2131, %v2165
    %v2167 = vlaneseq
    %v2168 = vshrl.u32 %v2167, 7
    %v2169 = vsub.s32 2, %v2168
    %v2170 = vrot.slane %v2135, %v2169
    %v2171 = vlaneseq
    %v2172 = vshrl.u32 %v2171, 7
    %v2173 = vsub.s32 2, %v2172
    %v2174 = vrot.slane %v2139, %v2173
    %v2175 = vlaneseq
    %v2176 = vshrl.u32 %v2175, 7
    %v2177 = vsub.s32 2, %v2176
    %v2178 = vrot.slane %v2143, %v2177
    %v2179 = vlaneseq
    %v2180 = vshrl.u32 %v2179, 7
    %v2181 = vsub.s32 2, %v2180
    %v2182 = vrot.slane %v2147, %v2181
    %v2183 = vlaneseq
    %v2184 = vshrl.u32 %v2183, 7
    %v2185 = vsub.s32 2, %v2184
    %v2186 = vrot.slane %v2151, %v2185
    %v2443 = vunpack.c.l.b16 %v1866
    %v2444 = vunpack.c.h.b16 %v1866
    %v2445 = vunpack.c.l.b16 %v1867
    %v2446 = vunpack.c.h.b16 %v1867
    %v2447 = vunpack.c.l.b16 %v1868
    %v2448 = vunpack.c.h.b16 %v1868
    %v2449 = vunpack.c.l.b16 %v1869
    %v2450 = vunpack.c.l.b16 %v1870
    %v2451 = vunpack.c.h.b16 %v1870
    %v2452 = vunpack.c.l.b16 %v1871
    %v2453 = vunpack.c.h.b16 %v1871
    %v2454 = vunpack.c.l.b16 %v1872
    %v2455 = vunpack.c.h.b16 %v1872
    %v2456 = vunpack.c.l.b16 %v1873
    %v2457 = vunpack.c.l.b16 %v1874
    %v2458 = vunpack.c.h.b16 %v1874
    %v2459 = vunpack.c.l.b16 %v1875
    %v2460 = vunpack.c.h.b16 %v1875
    %v2461 = vunpack.c.l.b16 %v1876
    %v2462 = vunpack.c.h.b16 %v1876
    %v2463 = vunpack.c.l.b16 %v1877
    %v2464 = vunpack.c.l.b16 %v1878
    %v2465 = vunpack.c.h.b16 %v1878
    %v2466 = vunpack.c.l.b16 %v1879
    %v2467 = vunpack.c.h.b16 %v1879
    %v2468 = vunpack.c.l.b16 %v1880
    %v2469 = vunpack.c.h.b16 %v1880
    %v2470 = vunpack.c.l.b16 %v1881
    %v2471 = vunpack.c.l.b16 %v1882
    %v2472 = vunpack.c.h.b16 %v1882
    %v2473 = vunpack.c.l.b16 %v1883
    %v2474 = vunpack.c.h.b16 %v1883
    %v2475 = vunpack.c.l.b16 %v1884
    %v2476 = vunpack.c.h.b16 %v1884
    %v2477 = vunpack.c.l.b16 %v1885
    %v2478 = vunpack.c.l.b16 %v1886
    %v2479 = vunpack.c.h.b16 %v1886
    %v2480 = vunpack.c.l.b16 %v1887
    %v2481 = vunpack.c.h.b16 %v1887
    %v2482 = vunpack.c.l.b16 %v1888
    %v2483 = vunpack.c.h.b16 %v1888
    %v2484 = vunpack.c.l.b16 %v1889
    %v2485 = vunpack.c.l.b16 %v1890
    %v2486 = vunpack.c.h.b16 %v1890
    %v2487 = vunpack.c.l.b16 %v1891
    %v2488 = vunpack.c.h.b16 %v1891
    %v2489 = vunpack.c.l.b16 %v1892
    %v2490 = vunpack.c.h.b16 %v1892
    %v2491 = vunpack.c.l.b16 %v1893
    %v2492 = vunpack.c.l.b16 %v1894
    %v2493 = vunpack.c.h.b16 %v1894
    %v2494 = vunpack.c.l.b16 %v1895
    %v2495 = vunpack.c.h.b16 %v1895
    %v2496 = vunpack.c.l.b16 %v1896
    %v2497 = vunpack.c.h.b16 %v1896
    %v2498 = vunpack.c.l.b16 %v1897
    %v2499 = vunpack.c.l.b16 %v1898
    %v2500 = vunpack.c.h.b16 %v1898
    %v2501 = vunpack.c.l.b16 %v1899
    %v2502 = vunpack.c.h.b16 %v1899
    %v2503 = vunpack.c.l.b16 %v1900
    %v2504 = vunpack.c.h.b16 %v1900
    %v2505 = vunpack.c.l.b16 %v1901
    %v2506 = vunpack.c.l.b16 %v1902
    %v2507 = vunpack.c.h.b16 %v1902
    %v2508 = vunpack.c.l.b16 %v1903
    %v2509 = vunpack.c.h.b16 %v1903
    %v2510 = vunpack.c.l.b16 %v1904
    %v2511 = vunpack.c.h.b16 %v1904
    %v2512 = vunpack.c.l.b16 %v1905
    %v2513 = vunpack.c.l.b16 %v1906
    %v2514 = vunpack.c.h.b16 %v1906
    %v2515 = vunpack.c.l.b16 %v1907
    %v2516 = vunpack.c.h.b16 %v1907
    %v2517 = vunpack.c.l.b16 %v1908
    %v2518 = vunpack.c.h.b16 %v1908
    %v2519 = vunpack.c.l.b16 %v1909
    %v2520 = vunpack.c.l.b16 %v1910
    %v2521 = vunpack.c.h.b16 %v1910
    %v2522 = vunpack.c.l.b16 %v1911
    %v2523 = vunpack.c.h.b16 %v1911
    %v2524 = vunpack.c.l.b16 %v1912
    %v2525 = vunpack.c.h.b16 %v1912
    %v2526 = vunpack.c.l.b16 %v1913
    %v2527 = vunpack.c.l.b16 %v1914
    %v2528 = vunpack.c.h.b16 %v1914
    %v2529 = vunpack.c.l.b16 %v1915
    %v2530 = vunpack.c.h.b16 %v1915
    %v2531 = vunpack.c.l.b16 %v1916
    %v2532 = vunpack.c.h.b16 %v1916
    %v2533 = vunpack.c.l.b16 %v1917
    %v2534 = vunpack.c.l.b16 %v1918
    %v2535 = vunpack.c.h.b16 %v1918
    %v2536 = vunpack.c.l.b16 %v1919
    %v2537 = vunpack.c.h.b16 %v1919
    %v2538 = vunpack.c.l.b16 %v1920
    %v2539 = vunpack.c.h.b16 %v1920
    %v2540 = vunpack.c.l.b16 %v1921
    %v2541 = vunpack.c.l.b16 %v1922
    %v2542 = vunpack.c.h.b16 %v1922
    %v2543 = vunpack.c.l.b16 %v1923
    %v2544 = vunpack.c.h.b16 %v1923
    %v2545 = vunpack.c.l.b16 %v1924
    %v2546 = vunpack.c.h.b16 %v1924
    %v2547 = vunpack.c.l.b16 %v1925
    %v2548 = vunpack.c.l.b16 %v1926
    %v2549 = vunpack.c.h.b16 %v1926
    %v2550 = vunpack.c.l.b16 %v1927
    %v2551 = vunpack.c.h.b16 %v1927
    %v2552 = vunpack.c.l.b16 %v1928
    %v2553 = vunpack.c.h.b16 %v1928
    %v2554 = vunpack.c.l.b16 %v1929
    %v2555 = vunpack.c.l.b16 %v1930
    %v2556 = vunpack.c.h.b16 %v1930
    %v2557 = vunpack.c.l.b16 %v1931
    %v2558 = vunpack.c.h.b16 %v1931
    %v2559 = vunpack.c.l.b16 %v1932
    %v2560 = vunpack.c.h.b16 %v1932
    %v2561 = vunpack.c.l.b16 %v1933
    %v2562 = vunpack.c.l.b16 %v1934
    %v2563 = vunpack.c.h.b16 %v1934
    %v2564 = vunpack.c.l.b16 %v1935
    %v2565 = vunpack.c.h.b16 %v1935
    %v2566 = vunpack.c.l.b16 %v1936
    %v2567 = vunpack.c.h.b16 %v1936
    %v2568 = vunpack.c.l.b16 %v1937
    %v2569 = vunpack.c.l.b16 %v1938
    %v2570 = vunpack.c.h.b16 %v1938
    %v2571 = vunpack.c.l.b16 %v1939
    %v2572 = vunpack.c.h.b16 %v1939
    %v2573 = vunpack.c.l.b16 %v1940
    %v2574 = vunpack.c.h.b16 %v1940
    %v2575 = vunpack.c.l.b16 %v1941
    %v2576 = vunpack.c.l.b16 %v1942
    %v2577 = vunpack.c.h.b16 %v1942
    %v2578 = vunpack.c.l.b16 %v1943
    %v2579 = vunpack.c.h.b16 %v1943
    %v2580 = vunpack.c.l.b16 %v1944
    %v2581 = vunpack.c.h.b16 %v1944
    %v2582 = vunpack.c.l.b16 %v1945
    %v2583 = vunpack.c.l.b16 %v1946
    %v2584 = vunpack.c.h.b16 %v1946
    %v2585 = vunpack.c.l.b16 %v1947
    %v2586 = vunpack.c.h.b16 %v1947
    %v2587 = vunpack.c.l.b16 %v1948
    %v2588 = vunpack.c.h.b16 %v1948
    %v2589 = vunpack.c.l.b16 %v1949
    %v2590 = vunpack.c.l.b16 %v1950
    %v2591 = vunpack.c.h.b16 %v1950
    %v2592 = vunpack.c.l.b16 %v1951
    %v2593 = vunpack.c.h.b16 %v1951
    %v2594 = vunpack.c.l.b16 %v1952
    %v2595 = vunpack.c.h.b16 %v1952
    %v2596 = vunpack.c.l.b16 %v1953
    %v2597 = vunpack.c.l.b16 %v1954
    %v2598 = vunpack.c.h.b16 %v1954
    %v2599 = vunpack.c.l.b16 %v1955
    %v2600 = vunpack.c.h.b16 %v1955
    %v2601 = vunpack.c.l.b16 %v1956
    %v2602 = vunpack.c.h.b16 %v1956
    %v2603 = vunpack.c.l.b16 %v1957
    %v2604 = vunpack.c.l.b16 %v1958
    %v2605 = vunpack.c.h.b16 %v1958
    %v2606 = vunpack.c.l.b16 %v1959
    %v2607 = vunpack.c.h.b16 %v1959
    %v2608 = vunpack.c.l.b16 %v1960
    %v2609 = vunpack.c.h.b16 %v1960
    %v2610 = vunpack.c.l.b16 %v1961
    %v2611 = vunpack.c.l.b16 %v1962
    %v2612 = vunpack.c.h.b16 %v1962
    %v2613 = vunpack.c.l.b16 %v1963
    %v2614 = vunpack.c.h.b16 %v1963
    %v2615 = vunpack.c.l.b16 %v1964
    %v2616 = vunpack.c.h.b16 %v1964
    %v2617 = vunpack.c.l.b16 %v1965
    %v2618 = vunpack.c.l.b16 %v1966
    %v2619 = vunpack.c.h.b16 %v1966
    %v2620 = vunpack.c.l.b16 %v1967
    %v2621 = vunpack.c.h.b16 %v1967
    %v2622 = vunpack.c.l.b16 %v1968
    %v2623 = vunpack.c.h.b16 %v1968
    %v2624 = vunpack.c.l.b16 %v1969
    %v2625 = vunpack.c.l.b16 %v1970
    %v2626 = vunpack.c.h.b16 %v1970
    %v2627 = vunpack.c.l.b16 %v1971
    %v2628 = vunpack.c.h.b16 %v1971
    %v2629 = vunpack.c.l.b16 %v1972
    %v2630 = vunpack.c.h.b16 %v1972
    %v2631 = vunpack.c.l.b16 %v1973
    %v2632 = vunpack.c.l.b16 %v1974
    %v2633 = vunpack.c.h.b16 %v1974
    %v2634 = vunpack.c.l.b16 %v1975
    %v2635 = vunpack.c.h.b16 %v1975
    %v2636 = vunpack.c.l.b16 %v1976
    %v2637 = vunpack.c.h.b16 %v1976
    %v2638 = vunpack.c.l.b16 %v1977
    %v2639 = vunpack.c.l.b16 %v1978
    %v2640 = vunpack.c.h.b16 %v1978
    %v2641 = vunpack.c.l.b16 %v1979
    %v2642 = vunpack.c.h.b16 %v1979
    %v2643 = vunpack.c.l.b16 %v1980
    %v2644 = vunpack.c.h.b16 %v1980
    %v2645 = vunpack.c.l.b16 %v1981
    %v2646 = vunpack.c.l.b16 %v1982
    %v2647 = vunpack.c.h.b16 %v1982
    %v2648 = vunpack.c.l.b16 %v1983
    %v2649 = vunpack.c.h.b16 %v1983
    %v2650 = vunpack.c.l.b16 %v1984
    %v2651 = vunpack.c.h.b16 %v1984
    %v2652 = vunpack.c.l.b16 %v1985
    %v2653 = vunpack.c.l.b16 %v1986
    %v2654 = vunpack.c.h.b16 %v1986
    %v2655 = vunpack.c.l.b16 %v1987
    %v2656 = vunpack.c.h.b16 %v1987
    %v2657 = vunpack.c.l.b16 %v1988
    %v2658 = vunpack.c.h.b16 %v1988
    %v2659 = vunpack.c.l.b16 %v1989
    %v2660 = vunpack.c.l.b16 %v1990
    %v2661 = vunpack.c.h.b16 %v1990
    %v2662 = vunpack.c.l.b16 %v1991
    %v2663 = vunpack.c.h.b16 %v1991
    %v2664 = vunpack.c.l.b16 %v1992
    %v2665 = vunpack.c.h.b16 %v1992
    %v2666 = vunpack.c.l.b16 %v1993
    %v2667 = vunpack.c.l.b16 %v1994
    %v2668 = vunpack.c.h.b16 %v1994
    %v2669 = vunpack.c.l.b16 %v1995
    %v2670 = vunpack.c.h.b16 %v1995
    %v2671 = vunpack.c.l.b16 %v1996
    %v2672 = vunpack.c.h.b16 %v1996
    %v2673 = vunpack.c.l.b16 %v1997
    %v2674 = vunpack.c.l.b16 %v1998
    %v2675 = vunpack.c.h.b16 %v1998
    %v2676 = vunpack.c.l.b16 %v1999
    %v2677 = vunpack.c.h.b16 %v1999
    %v2678 = vunpack.c.l.b16 %v2000
    %v2679 = vunpack.c.h.b16 %v2000
    %v2680 = vunpack.c.l.b16 %v2001
    %v2681 = vunpack.c.l.b16 %v2002
    %v2682 = vunpack.c.h.b16 %v2002
    %v2683 = vunpack.c.l.b16 %v2003
    %v2684 = vunpack.c.h.b16 %v2003
    %v2685 = vunpack.c.l.b16 %v2004
    %v2686 = vunpack.c.h.b16 %v2004
    %v2687 = vunpack.c.l.b16 %v2005
    %v2688 = vunpack.c.l.b16 %v2006
    %v2689 = vunpack.c.h.b16 %v2006
    %v2690 = vunpack.c.l.b16 %v2007
    %v2691 = vunpack.c.h.b16 %v2007
    %v2692 = vunpack.c.l.b16 %v2008
    %v2693 = vunpack.c.h.b16 %v2008
    %v2694 = vunpack.c.l.b16 %v2009
    %v2695 = vunpack.c.l.b16 %v2010
    %v2696 = vunpack.c.h.b16 %v2010
    %v2697 = vunpack.c.l.b16 %v2011
    %v2698 = vunpack.c.h.b16 %v2011
    %v2699 = vunpack.c.l.b16 %v2012
    %v2700 = vunpack.c.h.b16 %v2012
    %v2701 = vunpack.c.l.b16 %v2013
    %v2702 = vunpack.c.l.b16 %v2014
    %v2703 = vunpack.c.h.b16 %v2014
    %v2704 = vunpack.c.l.b16 %v2015
    %v2705 = vunpack.c.h.b16 %v2015
    %v2706 = vunpack.c.l.b16 %v2016
    %v2707 = vunpack.c.h.b16 %v2016
    %v2708 = vunpack.c.l.b16 %v2017
    %v2709 = vunpack.c.l.b16 %v2018
    %v2710 = vunpack.c.h.b16 %v2018
    %v2711 = vunpack.c.l.b16 %v2019
    %v2712 = vunpack.c.h.b16 %v2019
    %v2713 = vunpack.c.l.b16 %v2020
    %v2714 = vunpack.c.h.b16 %v2020
    %v2715 = vunpack.c.l.b16 %v2021
    %v2716 = vunpack.c.l.b16 %v2022
    %v2717 = vunpack.c.h.b16 %v2022
    %v2718 = vunpack.c.l.b16 %v2023
    %v2719 = vunpack.c.h.b16 %v2023
    %v2720 = vunpack.c.l.b16 %v2024
    %v2721 = vunpack.c.h.b16 %v2024
    %v2722 = vunpack.c.l.b16 %v2025
    %v2723 = vunpack.c.l.b16 %v2026
    %v2724 = vunpack.c.h.b16 %v2026
    %v2725 = vunpack.c.l.b16 %v2027
    %v2726 = vunpack.c.h.b16 %v2027
    %v2727 = vunpack.c.l.b16 %v2028
    %v2728 = vunpack.c.h.b16 %v2028
    %v2729 = vunpack.c.l.b16 %v2029
    %v2730 = vunpack.c.l.b16 %v2030
    %v2731 = vunpack.c.h.b16 %v2030
    %v2732 = vunpack.c.l.b16 %v2031
    %v2733 = vunpack.c.h.b16 %v2031
    %v2734 = vunpack.c.l.b16 %v2032
    %v2735 = vunpack.c.h.b16 %v2032
    %v2736 = vunpack.c.l.b16 %v2033
    %v2737 = vunpack.c.l.b16 %v2034
    %v2738 = vunpack.c.h.b16 %v2034
    %v2739 = vunpack.c.l.b16 %v2035
    %v2740 = vunpack.c.h.b16 %v2035
    %v2741 = vunpack.c.l.b16 %v2036
    %v2742 = vunpack.c.h.b16 %v2036
    %v2743 = vunpack.c.l.b16 %v2037
    %v2744 = vunpack.c.l.b16 %v2038
    %v2745 = vunpack.c.h.b16 %v2038
    %v2746 = vunpack.c.l.b16 %v2039
    %v2747 = vunpack.c.h.b16 %v2039
    %v2748 = vunpack.c.l.b16 %v2040
    %v2749 = vunpack.c.h.b16 %v2040
    %v2750 = vunpack.c.l.b16 %v2041
    %v2751 = vunpack.c.l.b16 %v2042
    %v2752 = vunpack.c.h.b16 %v2042
    %v2753 = vunpack.c.l.b16 %v2043
    %v2754 = vunpack.c.h.b16 %v2043
    %v2755 = vunpack.c.l.b16 %v2044
    %v2756 = vunpack.c.h.b16 %v2044
    %v2757 = vunpack.c.l.b16 %v2045
    %v2758 = vunpack.c.l.b16 %v2046
    %v2759 = vunpack.c.h.b16 %v2046
    %v2760 = vunpack.c.l.b16 %v2047
    %v2761 = vunpack.c.h.b16 %v2047
    %v2762 = vunpack.c.l.b16 %v2048
    %v2763 = vunpack.c.h.b16 %v2048
    %v2764 = vunpack.c.l.b16 %v2049
    %v2765 = vunpack.c.l.b16 %v2050
    %v2766 = vunpack.c.h.b16 %v2050
    %v2767 = vunpack.c.l.b16 %v2051
    %v2768 = vunpack.c.h.b16 %v2051
    %v2769 = vunpack.c.l.b16 %v2052
    %v2770 = vunpack.c.h.b16 %v2052
    %v2771 = vunpack.c.l.b16 %v2053
    %v2772 = vunpack.c.l.b16 %v2054
    %v2773 = vunpack.c.h.b16 %v2054
    %v2774 = vunpack.c.l.b16 %v2055
    %v2775 = vunpack.c.h.b16 %v2055
    %v2776 = vunpack.c.l.b16 %v2056
    %v2777 = vunpack.c.h.b16 %v2056
    %v2778 = vunpack.c.l.b16 %v2057
    %v2779 = vunpack.c.l.b16 %v2058
    %v2780 = vunpack.c.h.b16 %v2058
    %v2781 = vunpack.c.l.b16 %v2059
    %v2782 = vunpack.c.h.b16 %v2059
    %v2783 = vunpack.c.l.b16 %v2060
    %v2784 = vunpack.c.h.b16 %v2060
    %v2785 = vunpack.c.l.b16 %v2061
    %v2786 = vunpack.c.l.b16 %v2062
    %v2787 = vunpack.c.h.b16 %v2062
    %v2788 = vunpack.c.l.b16 %v2063
    %v2789 = vunpack.c.h.b16 %v2063
    %v2790 = vunpack.c.l.b16 %v2064
    %v2791 = vunpack.c.h.b16 %v2064
    %v2792 = vunpack.c.l.b16 %v2065
    %v2793 = vunpack.c.l.b16 %v2066
    %v2794 = vunpack.c.h.b16 %v2066
    %v2795 = vunpack.c.l.b16 %v2067
    %v2796 = vunpack.c.h.b16 %v2067
    %v2797 = vunpack.c.l.b16 %v2068
    %v2798 = vunpack.c.h.b16 %v2068
    %v2799 = vunpack.c.l.b16 %v2069
    %v2800 = vunpack.c.l.b16 %v2070
    %v2801 = vunpack.c.h.b16 %v2070
    %v2802 = vunpack.c.l.b16 %v2071
    %v2803 = vunpack.c.h.b16 %v2071
    %v2804 = vunpack.c.l.b16 %v2072
    %v2805 = vunpack.c.h.b16 %v2072
    %v2806 = vunpack.c.l.b16 %v2073
    %v2807 = vunpack.c.l.b16 %v2074
    %v2808 = vunpack.c.h.b16 %v2074
    %v2809 = vunpack.c.l.b16 %v2075
    %v2810 = vunpack.c.h.b16 %v2075
    %v2811 = vunpack.c.l.b16 %v2076
    %v2812 = vunpack.c.h.b16 %v2076
    %v2813 = vunpack.c.l.b16 %v2077
    %v2814 = vunpack.c.l.b16 %v2078
    %v2815 = vunpack.c.h.b16 %v2078
    %v2816 = vunpack.c.l.b16 %v2079
    %v2817 = vunpack.c.h.b16 %v2079
    %v2818 = vunpack.c.l.b16 %v2080
    %v2819 = vunpack.c.h.b16 %v2080
    %v2820 = vunpack.c.l.b16 %v2081
    %v2821 = vunpack.c.l.b16 %v2082
    %v2822 = vunpack.c.h.b16 %v2082
    %v2823 = vunpack.c.l.b16 %v2083
    %v2824 = vunpack.c.h.b16 %v2083
    %v2825 = vunpack.c.l.b16 %v2084
    %v2826 = vunpack.c.h.b16 %v2084
    %v2827 = vunpack.c.l.b16 %v2085
    %v2828 = vunpack.c.l.b16 %v2086
    %v2829 = vunpack.c.h.b16 %v2086
    %v2830 = vunpack.c.l.b16 %v2087
    %v2831 = vunpack.c.h.b16 %v2087
    %v2832 = vunpack.c.l.b16 %v2088
    %v2833 = vunpack.c.h.b16 %v2088
    %v2834 = vunpack.c.l.b16 %v2089
    %v2835 = vunpack.c.l.b16 %v2090
    %v2836 = vunpack.c.h.b16 %v2090
    %v2837 = vunpack.c.l.b16 %v2091
    %v2838 = vunpack.c.h.b16 %v2091
    %v2839 = vunpack.c.l.b16 %v2092
    %v2840 = vunpack.c.h.b16 %v2092
    %v2841 = vunpack.c.l.b16 %v2093
    %v2842 = vunpack.c.l.b16 %v2094
    %v2843 = vunpack.c.h.b16 %v2094
    %v2844 = vunpack.c.l.b16 %v2095
    %v2845 = vunpack.c.h.b16 %v2095
    %v2846 = vunpack.c.l.b16 %v2096
    %v2847 = vunpack.c.h.b16 %v2096
    %v2848 = vunpack.c.l.b16 %v2097
    %v2849 = vunpack.c.l.b16 %v2098
    %v2850 = vunpack.c.h.b16 %v2098
    %v2851 = vunpack.c.l.b16 %v2099
    %v2852 = vunpack.c.h.b16 %v2099
    %v2853 = vunpack.c.l.b16 %v2100
    %v2854 = vunpack.c.h.b16 %v2100
    %v2855 = vunpack.c.l.b16 %v2101
    %v2856 = vunpack.c.l.b16 %v2102
    %v2857 = vunpack.c.h.b16 %v2102
    %v2858 = vunpack.c.l.b16 %v2103
    %v2859 = vunpack.c.h.b16 %v2103
    %v2860 = vunpack.c.l.b16 %v2104
    %v2861 = vunpack.c.h.b16 %v2104
    %v2862 = vunpack.c.l.b16 %v2105
    %v2863 = vunpack.c.l.b16 %v2106
    %v2864 = vunpack.c.h.b16 %v2106
    %v2865 = vunpack.c.l.b16 %v2107
    %v2866 = vunpack.c.h.b16 %v2107
    %v2867 = vunpack.c.l.b16 %v2108
    %v2868 = vunpack.c.h.b16 %v2108
    %v2869 = vunpack.c.l.b16 %v2109
    %v2870 = vunpack.c.l.b16 %v2110
    %v2871 = vunpack.c.h.b16 %v2110
    %v2872 = vunpack.c.l.b16 %v2111
    %v2873 = vunpack.c.h.b16 %v2111
    %v2874 = vunpack.c.l.b16 %v2112
    %v2875 = vunpack.c.h.b16 %v2112
    %v2876 = vunpack.c.l.b16 %v2113
    %v2877 = vunpack.c.l.b16 %v2114
    %v2878 = vunpack.c.h.b16 %v2114
    %v2879 = vunpack.c.l.b16 %v2115
    %v2880 = vunpack.c.h.b16 %v2115
    %v2881 = vunpack.c.l.b16 %v2116
    %v2882 = vunpack.c.h.b16 %v2116
    %v2883 = vunpack.c.l.b16 %v2117
    %v2884 = vunpack.c.l.b16 %v2118
    %v2885 = vunpack.c.h.b16 %v2118
    %v2886 = vunpack.c.l.b16 %v2119
    %v2887 = vunpack.c.h.b16 %v2119
    %v2888 = vunpack.c.l.b16 %v2120
    %v2889 = vunpack.c.h.b16 %v2120
    %v2890 = vunpack.c.l.b16 %v2121
    %v2891 = vpack.c.b16 %v2450, %v2443
    %v2892 = vpack.c.b16 %v2451, %v2444
    %v2893 = vpack.c.b16 %v2452, %v2445
    %v2894 = vpack.c.b16 %v2453, %v2446
    %v2895 = vpack.c.b16 %v2454, %v2447
    %v2896 = vpack.c.b16 %v2455, %v2448
    %v2897 = vpack.c.b16 %v2456, %v2449
    %v2898 = vpack.c.b16 %v2464, %v2457
    %v2899 = vpack.c.b16 %v2465, %v2458
    %v2900 = vpack.c.b16 %v2466, %v2459
    %v2901 = vpack.c.b16 %v2467, %v2460
    %v2902 = vpack.c.b16 %v2468, %v2461
    %v2903 = vpack.c.b16 %v2469, %v2462
    %v2904 = vpack.c.b16 %v2470, %v2463
    %v2905 = vpack.c.b16 %v2478, %v2471
    %v2906 = vpack.c.b16 %v2479, %v2472
    %v2907 = vpack.c.b16 %v2480, %v2473
    %v2908 = vpack.c.b16 %v2481, %v2474
    %v2909 = vpack.c.b16 %v2482, %v2475
    %v2910 = vpack.c.b16 %v2483, %v2476
    %v2911 = vpack.c.b16 %v2484, %v2477
    %v2912 = vpack.c.b16 %v2492, %v2485
    %v2913 = vpack.c.b16 %v2493, %v2486
    %v2914 = vpack.c.b16 %v2494, %v2487
    %v2915 = vpack.c.b16 %v2495, %v2488
    %v2916 = vpack.c.b16 %v2496, %v2489
    %v2917 = vpack.c.b16 %v2497, %v2490
    %v2918 = vpack.c.b16 %v2498, %v2491
    %v2919 = vpack.c.b16 %v2506, %v2499
    %v2920 = vpack.c.b16 %v2507, %v2500
    %v2921 = vpack.c.b16 %v2508, %v2501
    %v2922 = vpack.c.b16 %v2509, %v2502
    %v2923 = vpack.c.b16 %v2510, %v2503
    %v2924 = vpack.c.b16 %v2511, %v2504
    %v2925 = vpack.c.b16 %v2512, %v2505
    %v2926 = vpack.c.b16 %v2520, %v2513
    %v2927 = vpack.c.b16 %v2521, %v2514
    %v2928 = vpack.c.b16 %v2522, %v2515
    %v2929 = vpack.c.b16 %v2523, %v2516
    %v2930 = vpack.c.b16 %v2524, %v2517
    %v2931 = vpack.c.b16 %v2525, %v2518
    %v2932 = vpack.c.b16 %v2526, %v2519
    %v2933 = vpack.c.b16 %v2534, %v2527
    %v2934 = vpack.c.b16 %v2535, %v2528
    %v2935 = vpack.c.b16 %v2536, %v2529
    %v2936 = vpack.c.b16 %v2537, %v2530
    %v2937 = vpack.c.b16 %v2538, %v2531
    %v2938 = vpack.c.b16 %v2539, %v2532
    %v2939 = vpack.c.b16 %v2540, %v2533
    %v2940 = vpack.c.b16 %v2548, %v2541
    %v2941 = vpack.c.b16 %v2549, %v2542
    %v2942 = vpack.c.b16 %v2550, %v2543
    %v2943 = vpack.c.b16 %v2551, %v2544
    %v2944 = vpack.c.b16 %v2552, %v2545
    %v2945 = vpack.c.b16 %v2553, %v2546
    %v2946 = vpack.c.b16 %v2554, %v2547
    %v2947 = vpack.c.b16 %v2562, %v2555
    %v2948 = vpack.c.b16 %v2563, %v2556
    %v2949 = vpack.c.b16 %v2564, %v2557
    %v2950 = vpack.c.b16 %v2565, %v2558
    %v2951 = vpack.c.b16 %v2566, %v2559
    %v2952 = vpack.c.b16 %v2567, %v2560
    %v2953 = vpack.c.b16 %v2568, %v2561
    %v2954 = vpack.c.b16 %v2576, %v2569
    %v2955 = vpack.c.b16 %v2577, %v2570
    %v2956 = vpack.c.b16 %v2578, %v2571
    %v2957 = vpack.c.b16 %v2579, %v2572
    %v2958 = vpack.c.b16 %v2580, %v2573
    %v2959 = vpack.c.b16 %v2581, %v2574
    %v2960 = vpack.c.b16 %v2582, %v2575
    %v2961 = vpack.c.b16 %v2590, %v2583
    %v2962 = vpack.c.b16 %v2591, %v2584
    %v2963 = vpack.c.b16 %v2592, %v2585
    %v2964 = vpack.c.b16 %v2593, %v2586
    %v2965 = vpack.c.b16 %v2594, %v2587
    %v2966 = vpack.c.b16 %v2595, %v2588
    %v2967 = vpack.c.b16 %v2596, %v2589
    %v2968 = vpack.c.b16 %v2604, %v2597
    %v2969 = vpack.c.b16 %v2605, %v2598
    %v2970 = vpack.c.b16 %v2606, %v2599
    %v2971 = vpack.c.b16 %v2607, %v2600
    %v2972 = vpack.c.b16 %v2608, %v2601
    %v2973 = vpack.c.b16 %v2609, %v2602
    %v2974 = vpack.c.b16 %v2610, %v2603
    %v2975 = vpack.c.b16 %v2618, %v2611
    %v2976 = vpack.c.b16 %v2619, %v2612
    %v2977 = vpack.c.b16 %v2620, %v2613
    %v2978 = vpack.c.b16 %v2621, %v2614
    %v2979 = vpack.c.b16 %v2622, %v2615
    %v2980 = vpack.c.b16 %v2623, %v2616
    %v2981 = vpack.c.b16 %v2624, %v2617
    %v2982 = vpack.c.b16 %v2632, %v2625
    %v2983 = vpack.c.b16 %v2633, %v2626
    %v2984 = vpack.c.b16 %v2634, %v2627
    %v2985 = vpack.c.b16 %v2635, %v2628
    %v2986 = vpack.c.b16 %v2636, %v2629
    %v2987 = vpack.c.b16 %v2637, %v2630
    %v2988 = vpack.c.b16 %v2638, %v2631
    %v2989 = vpack.c.b16 %v2646, %v2639
    %v2990 = vpack.c.b16 %v2647, %v2640
    %v2991 = vpack.c.b16 %v2648, %v2641
    %v2992 = vpack.c.b16 %v2649, %v2642
    %v2993 = vpack.c.b16 %v2650, %v2643
    %v2994 = vpack.c.b16 %v2651, %v2644
    %v2995 = vpack.c.b16 %v2652, %v2645
    %v2996 = vpack.c.b16 %v2660, %v2653
    %v2997 = vpack.c.b16 %v2661, %v2654
    %v2998 = vpack.c.b16 %v2662, %v2655
    %v2999 = vpack.c.b16 %v2663, %v2656
    %v3000 = vpack.c.b16 %v2664, %v2657
    %v3001 = vpack.c.b16 %v2665, %v2658
    %v3002 = vpack.c.b16 %v2666, %v2659
    %v3003 = vpack.c.b16 %v2674, %v2667
    %v3004 = vpack.c.b16 %v2675, %v2668
    %v3005 = vpack.c.b16 %v2676, %v2669
    %v3006 = vpack.c.b16 %v2677, %v2670
    %v3007 = vpack.c.b16 %v2678, %v2671
    %v3008 = vpack.c.b16 %v2679, %v2672
    %v3009 = vpack.c.b16 %v2680, %v2673
    %v3010 = vpack.c.b16 %v2688, %v2681
    %v3011 = vpack.c.b16 %v2689, %v2682
    %v3012 = vpack.c.b16 %v2690, %v2683
    %v3013 = vpack.c.b16 %v2691, %v2684
    %v3014 = vpack.c.b16 %v2692, %v2685
    %v3015 = vpack.c.b16 %v2693, %v2686
    %v3016 = vpack.c.b16 %v2694, %v2687
    %v3017 = vpack.c.b16 %v2702, %v2695
    %v3018 = vpack.c.b16 %v2703, %v2696
    %v3019 = vpack.c.b16 %v2704, %v2697
    %v3020 = vpack.c.b16 %v2705, %v2698
    %v3021 = vpack.c.b16 %v2706, %v2699
    %v3022 = vpack.c.b16 %v2707, %v2700
    %v3023 = vpack.c.b16 %v2708, %v2701
    %v3024 = vpack.c.b16 %v2716, %v2709
    %v3025 = vpack.c.b16 %v2717, %v2710
    %v3026 = vpack.c.b16 %v2718, %v2711
    %v3027 = vpack.c.b16 %v2719, %v2712
    %v3028 = vpack.c.b16 %v2720, %v2713
    %v3029 = vpack.c.b16 %v2721, %v2714
    %v3030 = vpack.c.b16 %v2722, %v2715
    %v3031 = vpack.c.b16 %v2730, %v2723
    %v3032 = vpack.c.b16 %v2731, %v2724
    %v3033 = vpack.c.b16 %v2732, %v2725
    %v3034 = vpack.c.b16 %v2733, %v2726
    %v3035 = vpack.c.b16 %v2734, %v2727
    %v3036 = vpack.c.b16 %v2735, %v2728
    %v3037 = vpack.c.b16 %v2736, %v2729
    %v3038 = vpack.c.b16 %v2744, %v2737
    %v3039 = vpack.c.b16 %v2745, %v2738
    %v3040 = vpack.c.b16 %v2746, %v2739
    %v3041 = vpack.c.b16 %v2747, %v2740
    %v3042 = vpack.c.b16 %v2748, %v2741
    %v3043 = vpack.c.b16 %v2749, %v2742
    %v3044 = vpack.c.b16 %v2750, %v2743
    %v3045 = vpack.c.b16 %v2758, %v2751
    %v3046 = vpack.c.b16 %v2759, %v2752
    %v3047 = vpack.c.b16 %v2760, %v2753
    %v3048 = vpack.c.b16 %v2761, %v2754
    %v3049 = vpack.c.b16 %v2762, %v2755
    %v3050 = vpack.c.b16 %v2763, %v2756
    %v3051 = vpack.c.b16 %v2764, %v2757
    %v3052 = vpack.c.b16 %v2772, %v2765
    %v3053 = vpack.c.b16 %v2773, %v2766
    %v3054 = vpack.c.b16 %v2774, %v2767
    %v3055 = vpack.c.b16 %v2775, %v2768
    %v3056 = vpack.c.b16 %v2776, %v2769
    %v3057 = vpack.c.b16 %v2777, %v2770
    %v3058 = vpack.c.b16 %v2778, %v2771
    %v3059 = vpack.c.b16 %v2786, %v2779
    %v3060 = vpack.c.b16 %v2787, %v2780
    %v3061 = vpack.c.b16 %v2788, %v2781
    %v3062 = vpack.c.b16 %v2789, %v2782
    %v3063 = vpack.c.b16 %v2790, %v2783
    %v3064 = vpack.c.b16 %v2791, %v2784
    %v3065 = vpack.c.b16 %v2792, %v2785
    %v3066 = vpack.c.b16 %v2800, %v2793
    %v3067 = vpack.c.b16 %v2801, %v2794
    %v3068 = vpack.c.b16 %v2802, %v2795
    %v3069 = vpack.c.b16 %v2803, %v2796
    %v3070 = vpack.c.b16 %v2804, %v2797
    %v3071 = vpack.c.b16 %v2805, %v2798
    %v3072 = vpack.c.b16 %v2806, %v2799
    %v3073 = vpack.c.b16 %v2814, %v2807
    %v3074 = vpack.c.b16 %v2815, %v2808
    %v3075 = vpack.c.b16 %v2816, %v2809
    %v3076 = vpack.c.b16 %v2817, %v2810
    %v3077 = vpack.c.b16 %v2818, %v2811
    %v3078 = vpack.c.b16 %v2819, %v2812
    %v3079 = vpack.c.b16 %v2820, %v2813
    %v3080 = vpack.c.b16 %v2828, %v2821
    %v3081 = vpack.c.b16 %v2829, %v2822
    %v3082 = vpack.c.b16 %v2830, %v2823
    %v3083 = vpack.c.b16 %v2831, %v2824
    %v3084 = vpack.c.b16 %v2832, %v2825
    %v3085 = vpack.c.b16 %v2833, %v2826
    %v3086 = vpack.c.b16 %v2834, %v2827
    %v3087 = vpack.c.b16 %v2842, %v2835
    %v3088 = vpack.c.b16 %v2843, %v2836
    %v3089 = vpack.c.b16 %v2844, %v2837
    %v3090 = vpack.c.b16 %v2845, %v2838
    %v3091 = vpack.c.b16 %v2846, %v2839
    %v3092 = vpack.c.b16 %v2847, %v2840
    %v3093 = vpack.c.b16 %v2848, %v2841
    %v3094 = vpack.c.b16 %v2856, %v2849
    %v3095 = vpack.c.b16 %v2857, %v2850
    %v3096 = vpack.c.b16 %v2858, %v2851
    %v3097 = vpack.c.b16 %v2859, %v2852
    %v3098 = vpack.c.b16 %v2860, %v2853
    %v3099 = vpack.c.b16 %v2861, %v2854
    %v3100 = vpack.c.b16 %v2862, %v2855
    %v3101 = vpack.c.b16 %v2870, %v2863
    %v3102 = vpack.c.b16 %v2871, %v2864
    %v3103 = vpack.c.b16 %v2872, %v2865
    %v3104 = vpack.c.b16 %v2873, %v2866
    %v3105 = vpack.c.b16 %v2874, %v2867
    %v3106 = vpack.c.b16 %v2875, %v2868
    %v3107 = vpack.c.b16 %v2876, %v2869
    %v3108 = vpack.c.b16 %v2884, %v2877
    %v3109 = vpack.c.b16 %v2885, %v2878
    %v3110 = vpack.c.b16 %v2886, %v2879
    %v3111 = vpack.c.b16 %v2887, %v2880
    %v3112 = vpack.c.b16 %v2888, %v2881
    %v3113 = vpack.c.b16 %v2889, %v2882
    %v3114 = vpack.c.b16 %v2890, %v2883
    %3339 = vmatprep.subr.bf16.mxu0 %v2941
    %3340 = vmatpush1.bf16.msra.mxu0 %v2940
    %3341 = vmatprep.subr.bf16.mxu0 %v2934
    %3342 = vmatpush1.bf16.msra.mxu0 %v2933
    %3343 = vmatprep.subr.bf16.mxu0 %v2927
    %3344 = vmatpush1.bf16.msra.mxu0 %v2926
    %3345 = vmatprep.subr.bf16.mxu0 %v2920
    %3346 = vmatpush1.bf16.msra.mxu0 %v2919
    %3347 = vmatprep.subr.bf16.mxu0 %v2913
    %3348 = vmatpush1.bf16.msra.mxu0 %v2912
    %3349 = vmatprep.subr.bf16.mxu0 %v2906
    %3350 = vmatpush1.bf16.msra.mxu0 %v2905
    %3351 = vmatprep.subr.bf16.mxu0 %v2899
    %3352 = vmatpush1.bf16.msra.mxu0 %v2898
    %3353 = vmatprep.subr.bf16.mxu0 %v2892
    %3354 = vmatpush1.bf16.msra.mxu0 %v2891
    %3355 = vmatprep.subr.bf16.mxu0 %v2997
    %3356 = vmatpush2.bf16.msra.mxu0 %v2996
    %3357 = vmatprep.subr.bf16.mxu0 %v2990
    %3358 = vmatpush2.bf16.msra.mxu0 %v2989
    %3359 = vmatprep.subr.bf16.mxu0 %v2983
    %3360 = vmatpush2.bf16.msra.mxu0 %v2982
    %3361 = vmatprep.subr.bf16.mxu0 %v2976
    %3362 = vmatpush2.bf16.msra.mxu0 %v2975
    %3363 = vmatprep.subr.bf16.mxu0 %v2969
    %3364 = vmatpush2.bf16.msra.mxu0 %v2968
    %3365 = vmatprep.subr.bf16.mxu0 %v2962
    %3366 = vmatpush2.bf16.msra.mxu0 %v2961
    %3367 = vmatprep.subr.bf16.mxu0 %v2955
    %3368 = vmatpush2.bf16.msra.mxu0 %v2954
    %3369 = vmatprep.subr.bf16.mxu0 %v2948
    %3370 = vmatpush2.bf16.msra.mxu0 %v2947
    %3371 = vmatprep.mubr.bf16.mxu0 %v1803
    %3372 = vmatmul.mubr.bf16.gmra.mxu0 %v1802
    %v3373 = vpop.f32.mrf.mxu0
    %v3374 = vadd.f32 %v2162, %v3373
    %v3375 = vpop.f32.mrf.mxu0
    %v3376 = vadd.f32 %v2166, %v3375
    %v3377 = vpop.f32.mrf.mxu0
    %v3378 = vadd.f32 %v2162, %v3377
    %v3379 = vpop.f32.mrf.mxu0
    %v3380 = vadd.f32 %v2166, %v3379
    %3381 = vmatprep.mubr.bf16.mxu0 %v1807
    %3382 = vmatmul.mubr.bf16.gmra.mxu0 %v1806
    %v3383 = vpop.f32.mrf.mxu0
    %v3384 = vadd.f32 %v2162, %v3383
    %v3385 = vpop.f32.mrf.mxu0
    %v3386 = vadd.f32 %v2166, %v3385
    %v3387 = vpop.f32.mrf.mxu0
    %v3388 = vadd.f32 %v2162, %v3387
    %v3389 = vpop.f32.mrf.mxu0
    %v3390 = vadd.f32 %v2166, %v3389
    %3391 = vmatprep.mubr.bf16.mxu0 %v1811
    %3392 = vmatmul.mubr.bf16.gmra.mxu0 %v1810
    %v3393 = vpop.f32.mrf.mxu0
    %v3394 = vadd.f32 %v2162, %v3393
    %v3395 = vpop.f32.mrf.mxu0
    %v3396 = vadd.f32 %v2166, %v3395
    %v3397 = vpop.f32.mrf.mxu0
    %v3398 = vadd.f32 %v2162, %v3397
    %v3399 = vpop.f32.mrf.mxu0
    %v3400 = vadd.f32 %v2166, %v3399
    %3401 = vmatprep.mubr.bf16.mxu0 %v1815
    %3402 = vmatmul.mubr.bf16.gmra.mxu0 %v1814
    %v3403 = vpop.f32.mrf.mxu0
    %v3404 = vadd.f32 %v2162, %v3403
    %v3405 = vpop.f32.mrf.mxu0
    %v3406 = vadd.f32 %v2166, %v3405
    %v3407 = vpop.f32.mrf.mxu0
    %v3408 = vadd.f32 %v2162, %v3407
    %v3409 = vpop.f32.mrf.mxu0
    %v3410 = vadd.f32 %v2166, %v3409
    %3411 = vmatprep.mubr.bf16.mxu0 %v1819
    %3412 = vmatmul.mubr.bf16.gmra.mxu0 %v1818
    %v3413 = vpop.f32.mrf.mxu0
    %v3414 = vadd.f32 %v2162, %v3413
    %v3415 = vpop.f32.mrf.mxu0
    %v3416 = vadd.f32 %v2166, %v3415
    %v3417 = vpop.f32.mrf.mxu0
    %v3418 = vadd.f32 %v2162, %v3417
    %v3419 = vpop.f32.mrf.mxu0
    %v3420 = vadd.f32 %v2166, %v3419
    %3421 = vmatprep.mubr.bf16.mxu0 %v1823
    %3422 = vmatmul.mubr.bf16.gmra.mxu0 %v1822
    %v3423 = vpop.f32.mrf.mxu0
    %v3424 = vadd.f32 %v2162, %v3423
    %v3425 = vpop.f32.mrf.mxu0
    %v3426 = vadd.f32 %v2166, %v3425
    %v3427 = vpop.f32.mrf.mxu0
    %v3428 = vadd.f32 %v2162, %v3427
    %v3429 = vpop.f32.mrf.mxu0
    %v3430 = vadd.f32 %v2166, %v3429
    %3431 = vmatprep.mubr.bf16.mxu0 %v1827
    %3432 = vmatmul.mubr.bf16.gmra.mxu0 %v1826
    %v3433 = vpop.f32.mrf.mxu0
    %v3434 = vadd.f32 %v2162, %v3433
    %v3435 = vpop.f32.mrf.mxu0
    %v3436 = vadd.f32 %v2166, %v3435
    %v3437 = vpop.f32.mrf.mxu0
    %v3438 = vadd.f32 %v2162, %v3437
    %v3439 = vpop.f32.mrf.mxu0
    %v3440 = vadd.f32 %v2166, %v3439
    %3441 = vmatprep.mubr.bf16.mxu0 %v1831
    %3442 = vmatmul.mubr.bf16.gmra.mxu0 %v1830
    %v3443 = vpop.f32.mrf.mxu0
    %v3444 = vadd.f32 %v2162, %v3443
    %v3445 = vpop.f32.mrf.mxu0
    %v3446 = vadd.f32 %v2166, %v3445
    %v3447 = vpop.f32.mrf.mxu0
    %v3448 = vadd.f32 %v2162, %v3447
    %v3449 = vpop.f32.mrf.mxu0
    %v3450 = vadd.f32 %v2166, %v3449
    %3451 = vmatprep.mubr.bf16.mxu0 %v1835
    %3452 = vmatmul.mubr.bf16.gmra.mxu0 %v1834
    %v3453 = vpop.f32.mrf.mxu0
    %v3454 = vadd.f32 %v2162, %v3453
    %v3455 = vpop.f32.mrf.mxu0
    %v3456 = vadd.f32 %v2166, %v3455
    %v3457 = vpop.f32.mrf.mxu0
    %v3458 = vadd.f32 %v2162, %v3457
    %v3459 = vpop.f32.mrf.mxu0
    %v3460 = vadd.f32 %v2166, %v3459
    %3461 = vmatprep.mubr.bf16.mxu0 %v1839
    %3462 = vmatmul.mubr.bf16.gmra.mxu0 %v1838
    %v3463 = vpop.f32.mrf.mxu0
    %v3464 = vadd.f32 %v2162, %v3463
    %v3465 = vpop.f32.mrf.mxu0
    %v3466 = vadd.f32 %v2166, %v3465
    %v3467 = vpop.f32.mrf.mxu0
    %v3468 = vadd.f32 %v2162, %v3467
    %v3469 = vpop.f32.mrf.mxu0
    %v3470 = vadd.f32 %v2166, %v3469
    %3471 = vmatprep.mubr.bf16.mxu0 %v1843
    %3472 = vmatmul.mubr.bf16.gmra.mxu0 %v1842
    %v3473 = vpop.f32.mrf.mxu0
    %v3474 = vadd.f32 %v2162, %v3473
    %v3475 = vpop.f32.mrf.mxu0
    %v3476 = vadd.f32 %v2166, %v3475
    %v3477 = vpop.f32.mrf.mxu0
    %v3478 = vadd.f32 %v2162, %v3477
    %v3479 = vpop.f32.mrf.mxu0
    %v3480 = vadd.f32 %v2166, %v3479
    %3481 = vmatprep.mubr.bf16.mxu0 %v1847
    %3482 = vmatmul.mubr.bf16.gmra.mxu0 %v1846
    %v3483 = vpop.f32.mrf.mxu0
    %v3484 = vadd.f32 %v2162, %v3483
    %v3485 = vpop.f32.mrf.mxu0
    %v3486 = vadd.f32 %v2166, %v3485
    %v3487 = vpop.f32.mrf.mxu0
    %v3488 = vadd.f32 %v2162, %v3487
    %v3489 = vpop.f32.mrf.mxu0
    %v3490 = vadd.f32 %v2166, %v3489
    %3491 = vmatprep.mubr.bf16.mxu0 %v1851
    %3492 = vmatmul.mubr.bf16.gmra.mxu0 %v1850
    %v3493 = vpop.f32.mrf.mxu0
    %v3494 = vadd.f32 %v2162, %v3493
    %v3495 = vpop.f32.mrf.mxu0
    %v3496 = vadd.f32 %v2166, %v3495
    %v3497 = vpop.f32.mrf.mxu0
    %v3498 = vadd.f32 %v2162, %v3497
    %v3499 = vpop.f32.mrf.mxu0
    %v3500 = vadd.f32 %v2166, %v3499
    %3501 = vmatprep.mubr.bf16.mxu0 %v1855
    %3502 = vmatmul.mubr.bf16.gmra.mxu0 %v1854
    %v3503 = vpop.f32.mrf.mxu0
    %v3504 = vadd.f32 %v2162, %v3503
    %v3505 = vpop.f32.mrf.mxu0
    %v3506 = vadd.f32 %v2166, %v3505
    %v3507 = vpop.f32.mrf.mxu0
    %v3508 = vadd.f32 %v2162, %v3507
    %v3509 = vpop.f32.mrf.mxu0
    %v3510 = vadd.f32 %v2166, %v3509
    %3511 = vmatprep.mubr.bf16.mxu0 %v1859
    %3512 = vmatmul.mubr.bf16.gmra.mxu0 %v1858
    %v3513 = vpop.f32.mrf.mxu0
    %v3514 = vadd.f32 %v2162, %v3513
    %v3515 = vpop.f32.mrf.mxu0
    %v3516 = vadd.f32 %v2166, %v3515
    %v3517 = vpop.f32.mrf.mxu0
    %v3518 = vadd.f32 %v2162, %v3517
    %v3519 = vpop.f32.mrf.mxu0
    %v3520 = vadd.f32 %v2166, %v3519
    %3521 = vmatprep.mubr.bf16.mxu0 %v1863
    %3522 = vmatmul.mubr.bf16.gmra.mxu0 %v1862
    %v3523 = vpop.f32.mrf.mxu0
    %v3524 = vadd.f32 %v2162, %v3523
    %v3525 = vpop.f32.mrf.mxu0
    %v3526 = vadd.f32 %v2166, %v3525
    %v3527 = vpop.f32.mrf.mxu0
    %v3528 = vadd.f32 %v2162, %v3527
    %v3529 = vpop.f32.mrf.mxu0
    %v3530 = vadd.f32 %v2166, %v3529
    %3531 = vdwg.mxu0
    %3532 = vmatprep.subr.bf16.mxu0 %v3053
    %3533 = vmatpush1.bf16.msra.mxu0 %v3052
    %3534 = vmatprep.subr.bf16.mxu0 %v3046
    %3535 = vmatpush1.bf16.msra.mxu0 %v3045
    %3536 = vmatprep.subr.bf16.mxu0 %v3039
    %3537 = vmatpush1.bf16.msra.mxu0 %v3038
    %3538 = vmatprep.subr.bf16.mxu0 %v3032
    %3539 = vmatpush1.bf16.msra.mxu0 %v3031
    %3540 = vmatprep.subr.bf16.mxu0 %v3025
    %3541 = vmatpush1.bf16.msra.mxu0 %v3024
    %3542 = vmatprep.subr.bf16.mxu0 %v3018
    %3543 = vmatpush1.bf16.msra.mxu0 %v3017
    %3544 = vmatprep.subr.bf16.mxu0 %v3011
    %3545 = vmatpush1.bf16.msra.mxu0 %v3010
    %3546 = vmatprep.subr.bf16.mxu0 %v3004
    %3547 = vmatpush1.bf16.msra.mxu0 %v3003
    %3548 = vmatprep.subr.bf16.mxu0 %v3109
    %3549 = vmatpush2.bf16.msra.mxu0 %v3108
    %3550 = vmatprep.subr.bf16.mxu0 %v3102
    %3551 = vmatpush2.bf16.msra.mxu0 %v3101
    %3552 = vmatprep.subr.bf16.mxu0 %v3095
    %3553 = vmatpush2.bf16.msra.mxu0 %v3094
    %3554 = vmatprep.subr.bf16.mxu0 %v3088
    %3555 = vmatpush2.bf16.msra.mxu0 %v3087
    %3556 = vmatprep.subr.bf16.mxu0 %v3081
    %3557 = vmatpush2.bf16.msra.mxu0 %v3080
    %3558 = vmatprep.subr.bf16.mxu0 %v3074
    %3559 = vmatpush2.bf16.msra.mxu0 %v3073
    %3560 = vmatprep.subr.bf16.mxu0 %v3067
    %3561 = vmatpush2.bf16.msra.mxu0 %v3066
    %3562 = vmatprep.subr.bf16.mxu0 %v3060
    %3563 = vmatpush2.bf16.msra.mxu0 %v3059
    %3564 = vmatprep.mubr.bf16.mxu0 %v1805
    %3565 = vmatmul.mubr.bf16.gmra.mxu0 %v1804
    %v3566 = vpop.f32.mrf.mxu0
    %v3567 = vadd.f32 %v3374, %v3566
    %v3568 = vpop.f32.mrf.mxu0
    %v3569 = vadd.f32 %v3376, %v3568
    %v3570 = vpop.f32.mrf.mxu0
    %v3571 = vadd.f32 %v3378, %v3570
    %v3572 = vpop.f32.mrf.mxu0
    %v3573 = vadd.f32 %v3380, %v3572
    %3574 = vmatprep.mubr.bf16.mxu0 %v1809
    %3575 = vmatmul.mubr.bf16.gmra.mxu0 %v1808
    %v3576 = vpop.f32.mrf.mxu0
    %v3577 = vadd.f32 %v3384, %v3576
    %v3578 = vpop.f32.mrf.mxu0
    %v3579 = vadd.f32 %v3386, %v3578
    %v3580 = vpop.f32.mrf.mxu0
    %v3581 = vadd.f32 %v3388, %v3580
    %v3582 = vpop.f32.mrf.mxu0
    %v3583 = vadd.f32 %v3390, %v3582
    %3584 = vmatprep.mubr.bf16.mxu0 %v1813
    %3585 = vmatmul.mubr.bf16.gmra.mxu0 %v1812
    %v3586 = vpop.f32.mrf.mxu0
    %v3587 = vadd.f32 %v3394, %v3586
    %v3588 = vpop.f32.mrf.mxu0
    %v3589 = vadd.f32 %v3396, %v3588
    %v3590 = vpop.f32.mrf.mxu0
    %v3591 = vadd.f32 %v3398, %v3590
    %v3592 = vpop.f32.mrf.mxu0
    %v3593 = vadd.f32 %v3400, %v3592
    %3594 = vmatprep.mubr.bf16.mxu0 %v1817
    %3595 = vmatmul.mubr.bf16.gmra.mxu0 %v1816
    %v3596 = vpop.f32.mrf.mxu0
    %v3597 = vadd.f32 %v3404, %v3596
    %v3598 = vpop.f32.mrf.mxu0
    %v3599 = vadd.f32 %v3406, %v3598
    %v3600 = vpop.f32.mrf.mxu0
    %v3601 = vadd.f32 %v3408, %v3600
    %v3602 = vpop.f32.mrf.mxu0
    %v3603 = vadd.f32 %v3410, %v3602
    %3604 = vmatprep.mubr.bf16.mxu0 %v1821
    %3605 = vmatmul.mubr.bf16.gmra.mxu0 %v1820
    %v3606 = vpop.f32.mrf.mxu0
    %v3607 = vadd.f32 %v3414, %v3606
    %v3608 = vpop.f32.mrf.mxu0
    %v3609 = vadd.f32 %v3416, %v3608
    %v3610 = vpop.f32.mrf.mxu0
    %v3611 = vadd.f32 %v3418, %v3610
    %v3612 = vpop.f32.mrf.mxu0
    %v3613 = vadd.f32 %v3420, %v3612
    %3614 = vmatprep.mubr.bf16.mxu0 %v1825
    %3615 = vmatmul.mubr.bf16.gmra.mxu0 %v1824
    %v3616 = vpop.f32.mrf.mxu0
    %v3617 = vadd.f32 %v3424, %v3616
    %v3618 = vpop.f32.mrf.mxu0
    %v3619 = vadd.f32 %v3426, %v3618
    %v3620 = vpop.f32.mrf.mxu0
    %v3621 = vadd.f32 %v3428, %v3620
    %v3622 = vpop.f32.mrf.mxu0
    %v3623 = vadd.f32 %v3430, %v3622
    %3624 = vmatprep.mubr.bf16.mxu0 %v1829
    %3625 = vmatmul.mubr.bf16.gmra.mxu0 %v1828
    %v3626 = vpop.f32.mrf.mxu0
    %v3627 = vadd.f32 %v3434, %v3626
    %v3628 = vpop.f32.mrf.mxu0
    %v3629 = vadd.f32 %v3436, %v3628
    %v3630 = vpop.f32.mrf.mxu0
    %v3631 = vadd.f32 %v3438, %v3630
    %v3632 = vpop.f32.mrf.mxu0
    %v3633 = vadd.f32 %v3440, %v3632
    %3634 = vmatprep.mubr.bf16.mxu0 %v1833
    %3635 = vmatmul.mubr.bf16.gmra.mxu0 %v1832
    %v3636 = vpop.f32.mrf.mxu0
    %v3637 = vadd.f32 %v3444, %v3636
    %v3638 = vpop.f32.mrf.mxu0
    %v3639 = vadd.f32 %v3446, %v3638
    %v3640 = vpop.f32.mrf.mxu0
    %v3641 = vadd.f32 %v3448, %v3640
    %v3642 = vpop.f32.mrf.mxu0
    %v3643 = vadd.f32 %v3450, %v3642
    %3644 = vmatprep.mubr.bf16.mxu0 %v1837
    %3645 = vmatmul.mubr.bf16.gmra.mxu0 %v1836
    %v3646 = vpop.f32.mrf.mxu0
    %v3647 = vadd.f32 %v3454, %v3646
    %v3648 = vpop.f32.mrf.mxu0
    %v3649 = vadd.f32 %v3456, %v3648
    %v3650 = vpop.f32.mrf.mxu0
    %v3651 = vadd.f32 %v3458, %v3650
    %v3652 = vpop.f32.mrf.mxu0
    %v3653 = vadd.f32 %v3460, %v3652
    %3654 = vmatprep.mubr.bf16.mxu0 %v1841
    %3655 = vmatmul.mubr.bf16.gmra.mxu0 %v1840
    %v3656 = vpop.f32.mrf.mxu0
    %v3657 = vadd.f32 %v3464, %v3656
    %v3658 = vpop.f32.mrf.mxu0
    %v3659 = vadd.f32 %v3466, %v3658
    %v3660 = vpop.f32.mrf.mxu0
    %v3661 = vadd.f32 %v3468, %v3660
    %v3662 = vpop.f32.mrf.mxu0
    %v3663 = vadd.f32 %v3470, %v3662
    %3664 = vmatprep.mubr.bf16.mxu0 %v1845
    %3665 = vmatmul.mubr.bf16.gmra.mxu0 %v1844
    %v3666 = vpop.f32.mrf.mxu0
    %v3667 = vadd.f32 %v3474, %v3666
    %v3668 = vpop.f32.mrf.mxu0
    %v3669 = vadd.f32 %v3476, %v3668
    %v3670 = vpop.f32.mrf.mxu0
    %v3671 = vadd.f32 %v3478, %v3670
    %v3672 = vpop.f32.mrf.mxu0
    %v3673 = vadd.f32 %v3480, %v3672
    %3674 = vmatprep.mubr.bf16.mxu0 %v1849
    %3675 = vmatmul.mubr.bf16.gmra.mxu0 %v1848
    %v3676 = vpop.f32.mrf.mxu0
    %v3677 = vadd.f32 %v3484, %v3676
    %v3678 = vpop.f32.mrf.mxu0
    %v3679 = vadd.f32 %v3486, %v3678
    %v3680 = vpop.f32.mrf.mxu0
    %v3681 = vadd.f32 %v3488, %v3680
    %v3682 = vpop.f32.mrf.mxu0
    %v3683 = vadd.f32 %v3490, %v3682
    %3684 = vmatprep.mubr.bf16.mxu0 %v1853
    %3685 = vmatmul.mubr.bf16.gmra.mxu0 %v1852
    %v3686 = vpop.f32.mrf.mxu0
    %v3687 = vadd.f32 %v3494, %v3686
    %v3688 = vpop.f32.mrf.mxu0
    %v3689 = vadd.f32 %v3496, %v3688
    %v3690 = vpop.f32.mrf.mxu0
    %v3691 = vadd.f32 %v3498, %v3690
    %v3692 = vpop.f32.mrf.mxu0
    %v3693 = vadd.f32 %v3500, %v3692
    %3694 = vmatprep.mubr.bf16.mxu0 %v1857
    %3695 = vmatmul.mubr.bf16.gmra.mxu0 %v1856
    %v3696 = vpop.f32.mrf.mxu0
    %v3697 = vadd.f32 %v3504, %v3696
    %v3698 = vpop.f32.mrf.mxu0
    %v3699 = vadd.f32 %v3506, %v3698
    %v3700 = vpop.f32.mrf.mxu0
    %v3701 = vadd.f32 %v3508, %v3700
    %v3702 = vpop.f32.mrf.mxu0
    %v3703 = vadd.f32 %v3510, %v3702
    %3704 = vmatprep.mubr.bf16.mxu0 %v1861
    %3705 = vmatmul.mubr.bf16.gmra.mxu0 %v1860
    %v3706 = vpop.f32.mrf.mxu0
    %v3707 = vadd.f32 %v3514, %v3706
    %v3708 = vpop.f32.mrf.mxu0
    %v3709 = vadd.f32 %v3516, %v3708
    %v3710 = vpop.f32.mrf.mxu0
    %v3711 = vadd.f32 %v3518, %v3710
    %v3712 = vpop.f32.mrf.mxu0
    %v3713 = vadd.f32 %v3520, %v3712
    %3714 = vmatprep.mubr.bf16.mxu0 %v1865
    %3715 = vmatmul.mubr.bf16.gmra.mxu0 %v1864
    %v3716 = vpop.f32.mrf.mxu0
    %v3717 = vadd.f32 %v3524, %v3716
    %v3718 = vpop.f32.mrf.mxu0
    %v3719 = vadd.f32 %v3526, %v3718
    %v3720 = vpop.f32.mrf.mxu0
    %v3721 = vadd.f32 %v3528, %v3720
    %v3722 = vpop.f32.mrf.mxu0
    %v3723 = vadd.f32 %v3530, %v3722
    %3724 = vdwg.mxu0
    %3725 = vmatprep.subr.bf16.mxu0 %v2943
    %3726 = vmatpush1.bf16.msra.mxu0 %v2942
    %3727 = vmatprep.subr.bf16.mxu0 %v2936
    %3728 = vmatpush1.bf16.msra.mxu0 %v2935
    %3729 = vmatprep.subr.bf16.mxu0 %v2929
    %3730 = vmatpush1.bf16.msra.mxu0 %v2928
    %3731 = vmatprep.subr.bf16.mxu0 %v2922
    %3732 = vmatpush1.bf16.msra.mxu0 %v2921
    %3733 = vmatprep.subr.bf16.mxu0 %v2915
    %3734 = vmatpush1.bf16.msra.mxu0 %v2914
    %3735 = vmatprep.subr.bf16.mxu0 %v2908
    %3736 = vmatpush1.bf16.msra.mxu0 %v2907
    %3737 = vmatprep.subr.bf16.mxu0 %v2901
    %3738 = vmatpush1.bf16.msra.mxu0 %v2900
    %3739 = vmatprep.subr.bf16.mxu0 %v2894
    %3740 = vmatpush1.bf16.msra.mxu0 %v2893
    %3741 = vmatprep.subr.bf16.mxu0 %v2999
    %3742 = vmatpush2.bf16.msra.mxu0 %v2998
    %3743 = vmatprep.subr.bf16.mxu0 %v2992
    %3744 = vmatpush2.bf16.msra.mxu0 %v2991
    %3745 = vmatprep.subr.bf16.mxu0 %v2985
    %3746 = vmatpush2.bf16.msra.mxu0 %v2984
    %3747 = vmatprep.subr.bf16.mxu0 %v2978
    %3748 = vmatpush2.bf16.msra.mxu0 %v2977
    %3749 = vmatprep.subr.bf16.mxu0 %v2971
    %3750 = vmatpush2.bf16.msra.mxu0 %v2970
    %3751 = vmatprep.subr.bf16.mxu0 %v2964
    %3752 = vmatpush2.bf16.msra.mxu0 %v2963
    %3753 = vmatprep.subr.bf16.mxu0 %v2957
    %3754 = vmatpush2.bf16.msra.mxu0 %v2956
    %3755 = vmatprep.subr.bf16.mxu0 %v2950
    %3756 = vmatpush2.bf16.msra.mxu0 %v2949
    %3757 = vmatprep.mubr.bf16.mxu0 %v1803
    %3758 = vmatmul.mubr.bf16.gmra.mxu0 %v1802
    %v3759 = vpop.f32.mrf.mxu0
    %v3760 = vadd.f32 %v2170, %v3759
    %v3761 = vpop.f32.mrf.mxu0
    %v3762 = vadd.f32 %v2174, %v3761
    %v3763 = vpop.f32.mrf.mxu0
    %v3764 = vadd.f32 %v2170, %v3763
    %v3765 = vpop.f32.mrf.mxu0
    %v3766 = vadd.f32 %v2174, %v3765
    %3767 = vmatprep.mubr.bf16.mxu0 %v1807
    %3768 = vmatmul.mubr.bf16.gmra.mxu0 %v1806
    %v3769 = vpop.f32.mrf.mxu0
    %v3770 = vadd.f32 %v2170, %v3769
    %v3771 = vpop.f32.mrf.mxu0
    %v3772 = vadd.f32 %v2174, %v3771
    %v3773 = vpop.f32.mrf.mxu0
    %v3774 = vadd.f32 %v2170, %v3773
    %v3775 = vpop.f32.mrf.mxu0
    %v3776 = vadd.f32 %v2174, %v3775
    %3777 = vmatprep.mubr.bf16.mxu0 %v1811
    %3778 = vmatmul.mubr.bf16.gmra.mxu0 %v1810
    %v3779 = vpop.f32.mrf.mxu0
    %v3780 = vadd.f32 %v2170, %v3779
    %v3781 = vpop.f32.mrf.mxu0
    %v3782 = vadd.f32 %v2174, %v3781
    %v3783 = vpop.f32.mrf.mxu0
    %v3784 = vadd.f32 %v2170, %v3783
    %v3785 = vpop.f32.mrf.mxu0
    %v3786 = vadd.f32 %v2174, %v3785
    %3787 = vmatprep.mubr.bf16.mxu0 %v1815
    %3788 = vmatmul.mubr.bf16.gmra.mxu0 %v1814
    %v3789 = vpop.f32.mrf.mxu0
    %v3790 = vadd.f32 %v2170, %v3789
    %v3791 = vpop.f32.mrf.mxu0
    %v3792 = vadd.f32 %v2174, %v3791
    %v3793 = vpop.f32.mrf.mxu0
    %v3794 = vadd.f32 %v2170, %v3793
    %v3795 = vpop.f32.mrf.mxu0
    %v3796 = vadd.f32 %v2174, %v3795
    %3797 = vmatprep.mubr.bf16.mxu0 %v1819
    %3798 = vmatmul.mubr.bf16.gmra.mxu0 %v1818
    %v3799 = vpop.f32.mrf.mxu0
    %v3800 = vadd.f32 %v2170, %v3799
    %v3801 = vpop.f32.mrf.mxu0
    %v3802 = vadd.f32 %v2174, %v3801
    %v3803 = vpop.f32.mrf.mxu0
    %v3804 = vadd.f32 %v2170, %v3803
    %v3805 = vpop.f32.mrf.mxu0
    %v3806 = vadd.f32 %v2174, %v3805
    %3807 = vmatprep.mubr.bf16.mxu0 %v1823
    %3808 = vmatmul.mubr.bf16.gmra.mxu0 %v1822
    %v3809 = vpop.f32.mrf.mxu0
    %v3810 = vadd.f32 %v2170, %v3809
    %v3811 = vpop.f32.mrf.mxu0
    %v3812 = vadd.f32 %v2174, %v3811
    %v3813 = vpop.f32.mrf.mxu0
    %v3814 = vadd.f32 %v2170, %v3813
    %v3815 = vpop.f32.mrf.mxu0
    %v3816 = vadd.f32 %v2174, %v3815
    %3817 = vmatprep.mubr.bf16.mxu0 %v1827
    %3818 = vmatmul.mubr.bf16.gmra.mxu0 %v1826
    %v3819 = vpop.f32.mrf.mxu0
    %v3820 = vadd.f32 %v2170, %v3819
    %v3821 = vpop.f32.mrf.mxu0
    %v3822 = vadd.f32 %v2174, %v3821
    %v3823 = vpop.f32.mrf.mxu0
    %v3824 = vadd.f32 %v2170, %v3823
    %v3825 = vpop.f32.mrf.mxu0
    %v3826 = vadd.f32 %v2174, %v3825
    %3827 = vmatprep.mubr.bf16.mxu0 %v1831
    %3828 = vmatmul.mubr.bf16.gmra.mxu0 %v1830
    %v3829 = vpop.f32.mrf.mxu0
    %v3830 = vadd.f32 %v2170, %v3829
    %v3831 = vpop.f32.mrf.mxu0
    %v3832 = vadd.f32 %v2174, %v3831
    %v3833 = vpop.f32.mrf.mxu0
    %v3834 = vadd.f32 %v2170, %v3833
    %v3835 = vpop.f32.mrf.mxu0
    %v3836 = vadd.f32 %v2174, %v3835
    %3837 = vmatprep.mubr.bf16.mxu0 %v1835
    %3838 = vmatmul.mubr.bf16.gmra.mxu0 %v1834
    %v3839 = vpop.f32.mrf.mxu0
    %v3840 = vadd.f32 %v2170, %v3839
    %v3841 = vpop.f32.mrf.mxu0
    %v3842 = vadd.f32 %v2174, %v3841
    %v3843 = vpop.f32.mrf.mxu0
    %v3844 = vadd.f32 %v2170, %v3843
    %v3845 = vpop.f32.mrf.mxu0
    %v3846 = vadd.f32 %v2174, %v3845
    %3847 = vmatprep.mubr.bf16.mxu0 %v1839
    %3848 = vmatmul.mubr.bf16.gmra.mxu0 %v1838
    %v3849 = vpop.f32.mrf.mxu0
    %v3850 = vadd.f32 %v2170, %v3849
    %v3851 = vpop.f32.mrf.mxu0
    %v3852 = vadd.f32 %v2174, %v3851
    %v3853 = vpop.f32.mrf.mxu0
    %v3854 = vadd.f32 %v2170, %v3853
    %v3855 = vpop.f32.mrf.mxu0
    %v3856 = vadd.f32 %v2174, %v3855
    %3857 = vmatprep.mubr.bf16.mxu0 %v1843
    %3858 = vmatmul.mubr.bf16.gmra.mxu0 %v1842
    %v3859 = vpop.f32.mrf.mxu0
    %v3860 = vadd.f32 %v2170, %v3859
    %v3861 = vpop.f32.mrf.mxu0
    %v3862 = vadd.f32 %v2174, %v3861
    %v3863 = vpop.f32.mrf.mxu0
    %v3864 = vadd.f32 %v2170, %v3863
    %v3865 = vpop.f32.mrf.mxu0
    %v3866 = vadd.f32 %v2174, %v3865
    %3867 = vmatprep.mubr.bf16.mxu0 %v1847
    %3868 = vmatmul.mubr.bf16.gmra.mxu0 %v1846
    %v3869 = vpop.f32.mrf.mxu0
    %v3870 = vadd.f32 %v2170, %v3869
    %v3871 = vpop.f32.mrf.mxu0
    %v3872 = vadd.f32 %v2174, %v3871
    %v3873 = vpop.f32.mrf.mxu0
    %v3874 = vadd.f32 %v2170, %v3873
    %v3875 = vpop.f32.mrf.mxu0
    %v3876 = vadd.f32 %v2174, %v3875
    %3877 = vmatprep.mubr.bf16.mxu0 %v1851
    %3878 = vmatmul.mubr.bf16.gmra.mxu0 %v1850
    %v3879 = vpop.f32.mrf.mxu0
    %v3880 = vadd.f32 %v2170, %v3879
    %v3881 = vpop.f32.mrf.mxu0
    %v3882 = vadd.f32 %v2174, %v3881
    %v3883 = vpop.f32.mrf.mxu0
    %v3884 = vadd.f32 %v2170, %v3883
    %v3885 = vpop.f32.mrf.mxu0
    %v3886 = vadd.f32 %v2174, %v3885
    %3887 = vmatprep.mubr.bf16.mxu0 %v1855
    %3888 = vmatmul.mubr.bf16.gmra.mxu0 %v1854
    %v3889 = vpop.f32.mrf.mxu0
    %v3890 = vadd.f32 %v2170, %v3889
    %v3891 = vpop.f32.mrf.mxu0
    %v3892 = vadd.f32 %v2174, %v3891
    %v3893 = vpop.f32.mrf.mxu0
    %v3894 = vadd.f32 %v2170, %v3893
    %v3895 = vpop.f32.mrf.mxu0
    %v3896 = vadd.f32 %v2174, %v3895
    %3897 = vmatprep.mubr.bf16.mxu0 %v1859
    %3898 = vmatmul.mubr.bf16.gmra.mxu0 %v1858
    %v3899 = vpop.f32.mrf.mxu0
    %v3900 = vadd.f32 %v2170, %v3899
    %v3901 = vpop.f32.mrf.mxu0
    %v3902 = vadd.f32 %v2174, %v3901
    %v3903 = vpop.f32.mrf.mxu0
    %v3904 = vadd.f32 %v2170, %v3903
    %v3905 = vpop.f32.mrf.mxu0
    %v3906 = vadd.f32 %v2174, %v3905
    %3907 = vmatprep.mubr.bf16.mxu0 %v1863
    %3908 = vmatmul.mubr.bf16.gmra.mxu0 %v1862
    %v3909 = vpop.f32.mrf.mxu0
    %v3910 = vadd.f32 %v2170, %v3909
    %v3911 = vpop.f32.mrf.mxu0
    %v3912 = vadd.f32 %v2174, %v3911
    %v3913 = vpop.f32.mrf.mxu0
    %v3914 = vadd.f32 %v2170, %v3913
    %v3915 = vpop.f32.mrf.mxu0
    %v3916 = vadd.f32 %v2174, %v3915
    %3917 = vdwg.mxu0
    %3918 = vmatprep.subr.bf16.mxu0 %v3055
    %3919 = vmatpush1.bf16.msra.mxu0 %v3054
    %3920 = vmatprep.subr.bf16.mxu0 %v3048
    %3921 = vmatpush1.bf16.msra.mxu0 %v3047
    %3922 = vmatprep.subr.bf16.mxu0 %v3041
    %3923 = vmatpush1.bf16.msra.mxu0 %v3040
    %3924 = vmatprep.subr.bf16.mxu0 %v3034
    %3925 = vmatpush1.bf16.msra.mxu0 %v3033
    %3926 = vmatprep.subr.bf16.mxu0 %v3027
    %3927 = vmatpush1.bf16.msra.mxu0 %v3026
    %3928 = vmatprep.subr.bf16.mxu0 %v3020
    %3929 = vmatpush1.bf16.msra.mxu0 %v3019
    %3930 = vmatprep.subr.bf16.mxu0 %v3013
    %3931 = vmatpush1.bf16.msra.mxu0 %v3012
    %3932 = vmatprep.subr.bf16.mxu0 %v3006
    %3933 = vmatpush1.bf16.msra.mxu0 %v3005
    %3934 = vmatprep.subr.bf16.mxu0 %v3111
    %3935 = vmatpush2.bf16.msra.mxu0 %v3110
    %3936 = vmatprep.subr.bf16.mxu0 %v3104
    %3937 = vmatpush2.bf16.msra.mxu0 %v3103
    %3938 = vmatprep.subr.bf16.mxu0 %v3097
    %3939 = vmatpush2.bf16.msra.mxu0 %v3096
    %3940 = vmatprep.subr.bf16.mxu0 %v3090
    %3941 = vmatpush2.bf16.msra.mxu0 %v3089
    %3942 = vmatprep.subr.bf16.mxu0 %v3083
    %3943 = vmatpush2.bf16.msra.mxu0 %v3082
    %3944 = vmatprep.subr.bf16.mxu0 %v3076
    %3945 = vmatpush2.bf16.msra.mxu0 %v3075
    %3946 = vmatprep.subr.bf16.mxu0 %v3069
    %3947 = vmatpush2.bf16.msra.mxu0 %v3068
    %3948 = vmatprep.subr.bf16.mxu0 %v3062
    %3949 = vmatpush2.bf16.msra.mxu0 %v3061
    %3950 = vmatprep.mubr.bf16.mxu0 %v1805
    %3951 = vmatmul.mubr.bf16.gmra.mxu0 %v1804
    %v3952 = vpop.f32.mrf.mxu0
    %v3953 = vadd.f32 %v3760, %v3952
    %v3954 = vpop.f32.mrf.mxu0
    %v3955 = vadd.f32 %v3762, %v3954
    %v3956 = vpop.f32.mrf.mxu0
    %v3957 = vadd.f32 %v3764, %v3956
    %v3958 = vpop.f32.mrf.mxu0
    %v3959 = vadd.f32 %v3766, %v3958
    %3960 = vmatprep.mubr.bf16.mxu0 %v1809
    %3961 = vmatmul.mubr.bf16.gmra.mxu0 %v1808
    %v3962 = vpop.f32.mrf.mxu0
    %v3963 = vadd.f32 %v3770, %v3962
    %v3964 = vpop.f32.mrf.mxu0
    %v3965 = vadd.f32 %v3772, %v3964
    %v3966 = vpop.f32.mrf.mxu0
    %v3967 = vadd.f32 %v3774, %v3966
    %v3968 = vpop.f32.mrf.mxu0
    %v3969 = vadd.f32 %v3776, %v3968
    %3970 = vmatprep.mubr.bf16.mxu0 %v1813
    %3971 = vmatmul.mubr.bf16.gmra.mxu0 %v1812
    %v3972 = vpop.f32.mrf.mxu0
    %v3973 = vadd.f32 %v3780, %v3972
    %v3974 = vpop.f32.mrf.mxu0
    %v3975 = vadd.f32 %v3782, %v3974
    %v3976 = vpop.f32.mrf.mxu0
    %v3977 = vadd.f32 %v3784, %v3976
    %v3978 = vpop.f32.mrf.mxu0
    %v3979 = vadd.f32 %v3786, %v3978
    %3980 = vmatprep.mubr.bf16.mxu0 %v1817
    %3981 = vmatmul.mubr.bf16.gmra.mxu0 %v1816
    %v3982 = vpop.f32.mrf.mxu0
    %v3983 = vadd.f32 %v3790, %v3982
    %v3984 = vpop.f32.mrf.mxu0
    %v3985 = vadd.f32 %v3792, %v3984
    %v3986 = vpop.f32.mrf.mxu0
    %v3987 = vadd.f32 %v3794, %v3986
    %v3988 = vpop.f32.mrf.mxu0
    %v3989 = vadd.f32 %v3796, %v3988
    %3990 = vmatprep.mubr.bf16.mxu0 %v1821
    %3991 = vmatmul.mubr.bf16.gmra.mxu0 %v1820
    %v3992 = vpop.f32.mrf.mxu0
    %v3993 = vadd.f32 %v3800, %v3992
    %v3994 = vpop.f32.mrf.mxu0
    %v3995 = vadd.f32 %v3802, %v3994
    %v3996 = vpop.f32.mrf.mxu0
    %v3997 = vadd.f32 %v3804, %v3996
    %v3998 = vpop.f32.mrf.mxu0
    %v3999 = vadd.f32 %v3806, %v3998
    %4000 = vmatprep.mubr.bf16.mxu0 %v1825
    %4001 = vmatmul.mubr.bf16.gmra.mxu0 %v1824
    %v4002 = vpop.f32.mrf.mxu0
    %v4003 = vadd.f32 %v3810, %v4002
    %v4004 = vpop.f32.mrf.mxu0
    %v4005 = vadd.f32 %v3812, %v4004
    %v4006 = vpop.f32.mrf.mxu0
    %v4007 = vadd.f32 %v3814, %v4006
    %v4008 = vpop.f32.mrf.mxu0
    %v4009 = vadd.f32 %v3816, %v4008
    %4010 = vmatprep.mubr.bf16.mxu0 %v1829
    %4011 = vmatmul.mubr.bf16.gmra.mxu0 %v1828
    %v4012 = vpop.f32.mrf.mxu0
    %v4013 = vadd.f32 %v3820, %v4012
    %v4014 = vpop.f32.mrf.mxu0
    %v4015 = vadd.f32 %v3822, %v4014
    %v4016 = vpop.f32.mrf.mxu0
    %v4017 = vadd.f32 %v3824, %v4016
    %v4018 = vpop.f32.mrf.mxu0
    %v4019 = vadd.f32 %v3826, %v4018
    %4020 = vmatprep.mubr.bf16.mxu0 %v1833
    %4021 = vmatmul.mubr.bf16.gmra.mxu0 %v1832
    %v4022 = vpop.f32.mrf.mxu0
    %v4023 = vadd.f32 %v3830, %v4022
    %v4024 = vpop.f32.mrf.mxu0
    %v4025 = vadd.f32 %v3832, %v4024
    %v4026 = vpop.f32.mrf.mxu0
    %v4027 = vadd.f32 %v3834, %v4026
    %v4028 = vpop.f32.mrf.mxu0
    %v4029 = vadd.f32 %v3836, %v4028
    %4030 = vmatprep.mubr.bf16.mxu0 %v1837
    %4031 = vmatmul.mubr.bf16.gmra.mxu0 %v1836
    %v4032 = vpop.f32.mrf.mxu0
    %v4033 = vadd.f32 %v3840, %v4032
    %v4034 = vpop.f32.mrf.mxu0
    %v4035 = vadd.f32 %v3842, %v4034
    %v4036 = vpop.f32.mrf.mxu0
    %v4037 = vadd.f32 %v3844, %v4036
    %v4038 = vpop.f32.mrf.mxu0
    %v4039 = vadd.f32 %v3846, %v4038
    %4040 = vmatprep.mubr.bf16.mxu0 %v1841
    %4041 = vmatmul.mubr.bf16.gmra.mxu0 %v1840
    %v4042 = vpop.f32.mrf.mxu0
    %v4043 = vadd.f32 %v3850, %v4042
    %v4044 = vpop.f32.mrf.mxu0
    %v4045 = vadd.f32 %v3852, %v4044
    %v4046 = vpop.f32.mrf.mxu0
    %v4047 = vadd.f32 %v3854, %v4046
    %v4048 = vpop.f32.mrf.mxu0
    %v4049 = vadd.f32 %v3856, %v4048
    %4050 = vmatprep.mubr.bf16.mxu0 %v1845
    %4051 = vmatmul.mubr.bf16.gmra.mxu0 %v1844
    %v4052 = vpop.f32.mrf.mxu0
    %v4053 = vadd.f32 %v3860, %v4052
    %v4054 = vpop.f32.mrf.mxu0
    %v4055 = vadd.f32 %v3862, %v4054
    %v4056 = vpop.f32.mrf.mxu0
    %v4057 = vadd.f32 %v3864, %v4056
    %v4058 = vpop.f32.mrf.mxu0
    %v4059 = vadd.f32 %v3866, %v4058
    %4060 = vmatprep.mubr.bf16.mxu0 %v1849
    %4061 = vmatmul.mubr.bf16.gmra.mxu0 %v1848
    %v4062 = vpop.f32.mrf.mxu0
    %v4063 = vadd.f32 %v3870, %v4062
    %v4064 = vpop.f32.mrf.mxu0
    %v4065 = vadd.f32 %v3872, %v4064
    %v4066 = vpop.f32.mrf.mxu0
    %v4067 = vadd.f32 %v3874, %v4066
    %v4068 = vpop.f32.mrf.mxu0
    %v4069 = vadd.f32 %v3876, %v4068
    %4070 = vmatprep.mubr.bf16.mxu0 %v1853
    %4071 = vmatmul.mubr.bf16.gmra.mxu0 %v1852
    %v4072 = vpop.f32.mrf.mxu0
    %v4073 = vadd.f32 %v3880, %v4072
    %v4074 = vpop.f32.mrf.mxu0
    %v4075 = vadd.f32 %v3882, %v4074
    %v4076 = vpop.f32.mrf.mxu0
    %v4077 = vadd.f32 %v3884, %v4076
    %v4078 = vpop.f32.mrf.mxu0
    %v4079 = vadd.f32 %v3886, %v4078
    %4080 = vmatprep.mubr.bf16.mxu0 %v1857
    %4081 = vmatmul.mubr.bf16.gmra.mxu0 %v1856
    %v4082 = vpop.f32.mrf.mxu0
    %v4083 = vadd.f32 %v3890, %v4082
    %v4084 = vpop.f32.mrf.mxu0
    %v4085 = vadd.f32 %v3892, %v4084
    %v4086 = vpop.f32.mrf.mxu0
    %v4087 = vadd.f32 %v3894, %v4086
    %v4088 = vpop.f32.mrf.mxu0
    %v4089 = vadd.f32 %v3896, %v4088
    %4090 = vmatprep.mubr.bf16.mxu0 %v1861
    %4091 = vmatmul.mubr.bf16.gmra.mxu0 %v1860
    %v4092 = vpop.f32.mrf.mxu0
    %v4093 = vadd.f32 %v3900, %v4092
    %v4094 = vpop.f32.mrf.mxu0
    %v4095 = vadd.f32 %v3902, %v4094
    %v4096 = vpop.f32.mrf.mxu0
    %v4097 = vadd.f32 %v3904, %v4096
    %v4098 = vpop.f32.mrf.mxu0
    %v4099 = vadd.f32 %v3906, %v4098
    %4100 = vmatprep.mubr.bf16.mxu0 %v1865
    %4101 = vmatmul.mubr.bf16.gmra.mxu0 %v1864
    %v4102 = vpop.f32.mrf.mxu0
    %v4103 = vadd.f32 %v3910, %v4102
    %v4104 = vpop.f32.mrf.mxu0
    %v4105 = vadd.f32 %v3912, %v4104
    %v4106 = vpop.f32.mrf.mxu0
    %v4107 = vadd.f32 %v3914, %v4106
    %v4108 = vpop.f32.mrf.mxu0
    %v4109 = vadd.f32 %v3916, %v4108
    %4110 = vdwg.mxu0
    %4111 = vmatprep.subr.bf16.mxu0 %v2945
    %4112 = vmatpush1.bf16.msra.mxu0 %v2944
    %4113 = vmatprep.subr.bf16.mxu0 %v2938
    %4114 = vmatpush1.bf16.msra.mxu0 %v2937
    %4115 = vmatprep.subr.bf16.mxu0 %v2931
    %4116 = vmatpush1.bf16.msra.mxu0 %v2930
    %4117 = vmatprep.subr.bf16.mxu0 %v2924
    %4118 = vmatpush1.bf16.msra.mxu0 %v2923
    %4119 = vmatprep.subr.bf16.mxu0 %v2917
    %4120 = vmatpush1.bf16.msra.mxu0 %v2916
    %4121 = vmatprep.subr.bf16.mxu0 %v2910
    %4122 = vmatpush1.bf16.msra.mxu0 %v2909
    %4123 = vmatprep.subr.bf16.mxu0 %v2903
    %4124 = vmatpush1.bf16.msra.mxu0 %v2902
    %4125 = vmatprep.subr.bf16.mxu0 %v2896
    %4126 = vmatpush1.bf16.msra.mxu0 %v2895
    %4127 = vmatprep.subr.bf16.mxu0 %v3001
    %4128 = vmatpush2.bf16.msra.mxu0 %v3000
    %4129 = vmatprep.subr.bf16.mxu0 %v2994
    %4130 = vmatpush2.bf16.msra.mxu0 %v2993
    %4131 = vmatprep.subr.bf16.mxu0 %v2987
    %4132 = vmatpush2.bf16.msra.mxu0 %v2986
    %4133 = vmatprep.subr.bf16.mxu0 %v2980
    %4134 = vmatpush2.bf16.msra.mxu0 %v2979
    %4135 = vmatprep.subr.bf16.mxu0 %v2973
    %4136 = vmatpush2.bf16.msra.mxu0 %v2972
    %4137 = vmatprep.subr.bf16.mxu0 %v2966
    %4138 = vmatpush2.bf16.msra.mxu0 %v2965
    %4139 = vmatprep.subr.bf16.mxu0 %v2959
    %4140 = vmatpush2.bf16.msra.mxu0 %v2958
    %4141 = vmatprep.subr.bf16.mxu0 %v2952
    %4142 = vmatpush2.bf16.msra.mxu0 %v2951
    %4143 = vmatprep.mubr.bf16.mxu0 %v1803
    %4144 = vmatmul.mubr.bf16.gmra.mxu0 %v1802
    %v4145 = vpop.f32.mrf.mxu0
    %v4146 = vadd.f32 %v2178, %v4145
    %v4147 = vpop.f32.mrf.mxu0
    %v4148 = vadd.f32 %v2182, %v4147
    %v4149 = vpop.f32.mrf.mxu0
    %v4150 = vadd.f32 %v2178, %v4149
    %v4151 = vpop.f32.mrf.mxu0
    %v4152 = vadd.f32 %v2182, %v4151
    %4153 = vmatprep.mubr.bf16.mxu0 %v1807
    %4154 = vmatmul.mubr.bf16.gmra.mxu0 %v1806
    %v4155 = vpop.f32.mrf.mxu0
    %v4156 = vadd.f32 %v2178, %v4155
    %v4157 = vpop.f32.mrf.mxu0
    %v4158 = vadd.f32 %v2182, %v4157
    %v4159 = vpop.f32.mrf.mxu0
    %v4160 = vadd.f32 %v2178, %v4159
    %v4161 = vpop.f32.mrf.mxu0
    %v4162 = vadd.f32 %v2182, %v4161
    %4163 = vmatprep.mubr.bf16.mxu0 %v1811
    %4164 = vmatmul.mubr.bf16.gmra.mxu0 %v1810
    %v4165 = vpop.f32.mrf.mxu0
    %v4166 = vadd.f32 %v2178, %v4165
    %v4167 = vpop.f32.mrf.mxu0
    %v4168 = vadd.f32 %v2182, %v4167
    %v4169 = vpop.f32.mrf.mxu0
    %v4170 = vadd.f32 %v2178, %v4169
    %v4171 = vpop.f32.mrf.mxu0
    %v4172 = vadd.f32 %v2182, %v4171
    %4173 = vmatprep.mubr.bf16.mxu0 %v1815
    %4174 = vmatmul.mubr.bf16.gmra.mxu0 %v1814
    %v4175 = vpop.f32.mrf.mxu0
    %v4176 = vadd.f32 %v2178, %v4175
    %v4177 = vpop.f32.mrf.mxu0
    %v4178 = vadd.f32 %v2182, %v4177
    %v4179 = vpop.f32.mrf.mxu0
    %v4180 = vadd.f32 %v2178, %v4179
    %v4181 = vpop.f32.mrf.mxu0
    %v4182 = vadd.f32 %v2182, %v4181
    %4183 = vmatprep.mubr.bf16.mxu0 %v1819
    %4184 = vmatmul.mubr.bf16.gmra.mxu0 %v1818
    %v4185 = vpop.f32.mrf.mxu0
    %v4186 = vadd.f32 %v2178, %v4185
    %v4187 = vpop.f32.mrf.mxu0
    %v4188 = vadd.f32 %v2182, %v4187
    %v4189 = vpop.f32.mrf.mxu0
    %v4190 = vadd.f32 %v2178, %v4189
    %v4191 = vpop.f32.mrf.mxu0
    %v4192 = vadd.f32 %v2182, %v4191
    %4193 = vmatprep.mubr.bf16.mxu0 %v1823
    %4194 = vmatmul.mubr.bf16.gmra.mxu0 %v1822
    %v4195 = vpop.f32.mrf.mxu0
    %v4196 = vadd.f32 %v2178, %v4195
    %v4197 = vpop.f32.mrf.mxu0
    %v4198 = vadd.f32 %v2182, %v4197
    %v4199 = vpop.f32.mrf.mxu0
    %v4200 = vadd.f32 %v2178, %v4199
    %v4201 = vpop.f32.mrf.mxu0
    %v4202 = vadd.f32 %v2182, %v4201
    %4203 = vmatprep.mubr.bf16.mxu0 %v1827
    %4204 = vmatmul.mubr.bf16.gmra.mxu0 %v1826
    %v4205 = vpop.f32.mrf.mxu0
    %v4206 = vadd.f32 %v2178, %v4205
    %v4207 = vpop.f32.mrf.mxu0
    %v4208 = vadd.f32 %v2182, %v4207
    %v4209 = vpop.f32.mrf.mxu0
    %v4210 = vadd.f32 %v2178, %v4209
    %v4211 = vpop.f32.mrf.mxu0
    %v4212 = vadd.f32 %v2182, %v4211
    %4213 = vmatprep.mubr.bf16.mxu0 %v1831
    %4214 = vmatmul.mubr.bf16.gmra.mxu0 %v1830
    %v4215 = vpop.f32.mrf.mxu0
    %v4216 = vadd.f32 %v2178, %v4215
    %v4217 = vpop.f32.mrf.mxu0
    %v4218 = vadd.f32 %v2182, %v4217
    %v4219 = vpop.f32.mrf.mxu0
    %v4220 = vadd.f32 %v2178, %v4219
    %v4221 = vpop.f32.mrf.mxu0
    %v4222 = vadd.f32 %v2182, %v4221
    %4223 = vmatprep.mubr.bf16.mxu0 %v1835
    %4224 = vmatmul.mubr.bf16.gmra.mxu0 %v1834
    %v4225 = vpop.f32.mrf.mxu0
    %v4226 = vadd.f32 %v2178, %v4225
    %v4227 = vpop.f32.mrf.mxu0
    %v4228 = vadd.f32 %v2182, %v4227
    %v4229 = vpop.f32.mrf.mxu0
    %v4230 = vadd.f32 %v2178, %v4229
    %v4231 = vpop.f32.mrf.mxu0
    %v4232 = vadd.f32 %v2182, %v4231
    %4233 = vmatprep.mubr.bf16.mxu0 %v1839
    %4234 = vmatmul.mubr.bf16.gmra.mxu0 %v1838
    %v4235 = vpop.f32.mrf.mxu0
    %v4236 = vadd.f32 %v2178, %v4235
    %v4237 = vpop.f32.mrf.mxu0
    %v4238 = vadd.f32 %v2182, %v4237
    %v4239 = vpop.f32.mrf.mxu0
    %v4240 = vadd.f32 %v2178, %v4239
    %v4241 = vpop.f32.mrf.mxu0
    %v4242 = vadd.f32 %v2182, %v4241
    %4243 = vmatprep.mubr.bf16.mxu0 %v1843
    %4244 = vmatmul.mubr.bf16.gmra.mxu0 %v1842
    %v4245 = vpop.f32.mrf.mxu0
    %v4246 = vadd.f32 %v2178, %v4245
    %v4247 = vpop.f32.mrf.mxu0
    %v4248 = vadd.f32 %v2182, %v4247
    %v4249 = vpop.f32.mrf.mxu0
    %v4250 = vadd.f32 %v2178, %v4249
    %v4251 = vpop.f32.mrf.mxu0
    %v4252 = vadd.f32 %v2182, %v4251
    %4253 = vmatprep.mubr.bf16.mxu0 %v1847
    %4254 = vmatmul.mubr.bf16.gmra.mxu0 %v1846
    %v4255 = vpop.f32.mrf.mxu0
    %v4256 = vadd.f32 %v2178, %v4255
    %v4257 = vpop.f32.mrf.mxu0
    %v4258 = vadd.f32 %v2182, %v4257
    %v4259 = vpop.f32.mrf.mxu0
    %v4260 = vadd.f32 %v2178, %v4259
    %v4261 = vpop.f32.mrf.mxu0
    %v4262 = vadd.f32 %v2182, %v4261
    %4263 = vmatprep.mubr.bf16.mxu0 %v1851
    %4264 = vmatmul.mubr.bf16.gmra.mxu0 %v1850
    %v4265 = vpop.f32.mrf.mxu0
    %v4266 = vadd.f32 %v2178, %v4265
    %v4267 = vpop.f32.mrf.mxu0
    %v4268 = vadd.f32 %v2182, %v4267
    %v4269 = vpop.f32.mrf.mxu0
    %v4270 = vadd.f32 %v2178, %v4269
    %v4271 = vpop.f32.mrf.mxu0
    %v4272 = vadd.f32 %v2182, %v4271
    %4273 = vmatprep.mubr.bf16.mxu0 %v1855
    %4274 = vmatmul.mubr.bf16.gmra.mxu0 %v1854
    %v4275 = vpop.f32.mrf.mxu0
    %v4276 = vadd.f32 %v2178, %v4275
    %v4277 = vpop.f32.mrf.mxu0
    %v4278 = vadd.f32 %v2182, %v4277
    %v4279 = vpop.f32.mrf.mxu0
    %v4280 = vadd.f32 %v2178, %v4279
    %v4281 = vpop.f32.mrf.mxu0
    %v4282 = vadd.f32 %v2182, %v4281
    %4283 = vmatprep.mubr.bf16.mxu0 %v1859
    %4284 = vmatmul.mubr.bf16.gmra.mxu0 %v1858
    %v4285 = vpop.f32.mrf.mxu0
    %v4286 = vadd.f32 %v2178, %v4285
    %v4287 = vpop.f32.mrf.mxu0
    %v4288 = vadd.f32 %v2182, %v4287
    %v4289 = vpop.f32.mrf.mxu0
    %v4290 = vadd.f32 %v2178, %v4289
    %v4291 = vpop.f32.mrf.mxu0
    %v4292 = vadd.f32 %v2182, %v4291
    %4293 = vmatprep.mubr.bf16.mxu0 %v1863
    %4294 = vmatmul.mubr.bf16.gmra.mxu0 %v1862
    %v4295 = vpop.f32.mrf.mxu0
    %v4296 = vadd.f32 %v2178, %v4295
    %v4297 = vpop.f32.mrf.mxu0
    %v4298 = vadd.f32 %v2182, %v4297
    %v4299 = vpop.f32.mrf.mxu0
    %v4300 = vadd.f32 %v2178, %v4299
    %v4301 = vpop.f32.mrf.mxu0
    %v4302 = vadd.f32 %v2182, %v4301
    %4303 = vdwg.mxu0
    %4304 = vmatprep.subr.bf16.mxu0 %v3057
    %4305 = vmatpush1.bf16.msra.mxu0 %v3056
    %4306 = vmatprep.subr.bf16.mxu0 %v3050
    %4307 = vmatpush1.bf16.msra.mxu0 %v3049
    %4308 = vmatprep.subr.bf16.mxu0 %v3043
    %4309 = vmatpush1.bf16.msra.mxu0 %v3042
    %4310 = vmatprep.subr.bf16.mxu0 %v3036
    %4311 = vmatpush1.bf16.msra.mxu0 %v3035
    %4312 = vmatprep.subr.bf16.mxu0 %v3029
    %4313 = vmatpush1.bf16.msra.mxu0 %v3028
    %4314 = vmatprep.subr.bf16.mxu0 %v3022
    %4315 = vmatpush1.bf16.msra.mxu0 %v3021
    %4316 = vmatprep.subr.bf16.mxu0 %v3015
    %4317 = vmatpush1.bf16.msra.mxu0 %v3014
    %4318 = vmatprep.subr.bf16.mxu0 %v3008
    %4319 = vmatpush1.bf16.msra.mxu0 %v3007
    %4320 = vmatprep.subr.bf16.mxu0 %v3113
    %4321 = vmatpush2.bf16.msra.mxu0 %v3112
    %4322 = vmatprep.subr.bf16.mxu0 %v3106
    %4323 = vmatpush2.bf16.msra.mxu0 %v3105
    %4324 = vmatprep.subr.bf16.mxu0 %v3099
    %4325 = vmatpush2.bf16.msra.mxu0 %v3098
    %4326 = vmatprep.subr.bf16.mxu0 %v3092
    %4327 = vmatpush2.bf16.msra.mxu0 %v3091
    %4328 = vmatprep.subr.bf16.mxu0 %v3085
    %4329 = vmatpush2.bf16.msra.mxu0 %v3084
    %4330 = vmatprep.subr.bf16.mxu0 %v3078
    %4331 = vmatpush2.bf16.msra.mxu0 %v3077
    %4332 = vmatprep.subr.bf16.mxu0 %v3071
    %4333 = vmatpush2.bf16.msra.mxu0 %v3070
    %4334 = vmatprep.subr.bf16.mxu0 %v3064
    %4335 = vmatpush2.bf16.msra.mxu0 %v3063
    %4336 = vmatprep.mubr.bf16.mxu0 %v1805
    %4337 = vmatmul.mubr.bf16.gmra.mxu0 %v1804
    %v4338 = vpop.f32.mrf.mxu0
    %v4339 = vadd.f32 %v4146, %v4338
    %v4340 = vpop.f32.mrf.mxu0
    %v4341 = vadd.f32 %v4148, %v4340
    %v4342 = vpop.f32.mrf.mxu0
    %v4343 = vadd.f32 %v4150, %v4342
    %v4344 = vpop.f32.mrf.mxu0
    %v4345 = vadd.f32 %v4152, %v4344
    %4346 = vmatprep.mubr.bf16.mxu0 %v1809
    %4347 = vmatmul.mubr.bf16.gmra.mxu0 %v1808
    %v4348 = vpop.f32.mrf.mxu0
    %v4349 = vadd.f32 %v4156, %v4348
    %v4350 = vpop.f32.mrf.mxu0
    %v4351 = vadd.f32 %v4158, %v4350
    %v4352 = vpop.f32.mrf.mxu0
    %v4353 = vadd.f32 %v4160, %v4352
    %v4354 = vpop.f32.mrf.mxu0
    %v4355 = vadd.f32 %v4162, %v4354
    %4356 = vmatprep.mubr.bf16.mxu0 %v1813
    %4357 = vmatmul.mubr.bf16.gmra.mxu0 %v1812
    %v4358 = vpop.f32.mrf.mxu0
    %v4359 = vadd.f32 %v4166, %v4358
    %v4360 = vpop.f32.mrf.mxu0
    %v4361 = vadd.f32 %v4168, %v4360
    %v4362 = vpop.f32.mrf.mxu0
    %v4363 = vadd.f32 %v4170, %v4362
    %v4364 = vpop.f32.mrf.mxu0
    %v4365 = vadd.f32 %v4172, %v4364
    %4366 = vmatprep.mubr.bf16.mxu0 %v1817
    %4367 = vmatmul.mubr.bf16.gmra.mxu0 %v1816
    %v4368 = vpop.f32.mrf.mxu0
    %v4369 = vadd.f32 %v4176, %v4368
    %v4370 = vpop.f32.mrf.mxu0
    %v4371 = vadd.f32 %v4178, %v4370
    %v4372 = vpop.f32.mrf.mxu0
    %v4373 = vadd.f32 %v4180, %v4372
    %v4374 = vpop.f32.mrf.mxu0
    %v4375 = vadd.f32 %v4182, %v4374
    %4376 = vmatprep.mubr.bf16.mxu0 %v1821
    %4377 = vmatmul.mubr.bf16.gmra.mxu0 %v1820
    %v4378 = vpop.f32.mrf.mxu0
    %v4379 = vadd.f32 %v4186, %v4378
    %v4380 = vpop.f32.mrf.mxu0
    %v4381 = vadd.f32 %v4188, %v4380
    %v4382 = vpop.f32.mrf.mxu0
    %v4383 = vadd.f32 %v4190, %v4382
    %v4384 = vpop.f32.mrf.mxu0
    %v4385 = vadd.f32 %v4192, %v4384
    %4386 = vmatprep.mubr.bf16.mxu0 %v1825
    %4387 = vmatmul.mubr.bf16.gmra.mxu0 %v1824
    %v4388 = vpop.f32.mrf.mxu0
    %v4389 = vadd.f32 %v4196, %v4388
    %v4390 = vpop.f32.mrf.mxu0
    %v4391 = vadd.f32 %v4198, %v4390
    %v4392 = vpop.f32.mrf.mxu0
    %v4393 = vadd.f32 %v4200, %v4392
    %v4394 = vpop.f32.mrf.mxu0
    %v4395 = vadd.f32 %v4202, %v4394
    %4396 = vmatprep.mubr.bf16.mxu0 %v1829
    %4397 = vmatmul.mubr.bf16.gmra.mxu0 %v1828
    %v4398 = vpop.f32.mrf.mxu0
    %v4399 = vadd.f32 %v4206, %v4398
    %v4400 = vpop.f32.mrf.mxu0
    %v4401 = vadd.f32 %v4208, %v4400
    %v4402 = vpop.f32.mrf.mxu0
    %v4403 = vadd.f32 %v4210, %v4402
    %v4404 = vpop.f32.mrf.mxu0
    %v4405 = vadd.f32 %v4212, %v4404
    %4406 = vmatprep.mubr.bf16.mxu0 %v1833
    %4407 = vmatmul.mubr.bf16.gmra.mxu0 %v1832
    %v4408 = vpop.f32.mrf.mxu0
    %v4409 = vadd.f32 %v4216, %v4408
    %v4410 = vpop.f32.mrf.mxu0
    %v4411 = vadd.f32 %v4218, %v4410
    %v4412 = vpop.f32.mrf.mxu0
    %v4413 = vadd.f32 %v4220, %v4412
    %v4414 = vpop.f32.mrf.mxu0
    %v4415 = vadd.f32 %v4222, %v4414
    %4416 = vmatprep.mubr.bf16.mxu0 %v1837
    %4417 = vmatmul.mubr.bf16.gmra.mxu0 %v1836
    %v4418 = vpop.f32.mrf.mxu0
    %v4419 = vadd.f32 %v4226, %v4418
    %v4420 = vpop.f32.mrf.mxu0
    %v4421 = vadd.f32 %v4228, %v4420
    %v4422 = vpop.f32.mrf.mxu0
    %v4423 = vadd.f32 %v4230, %v4422
    %v4424 = vpop.f32.mrf.mxu0
    %v4425 = vadd.f32 %v4232, %v4424
    %4426 = vmatprep.mubr.bf16.mxu0 %v1841
    %4427 = vmatmul.mubr.bf16.gmra.mxu0 %v1840
    %v4428 = vpop.f32.mrf.mxu0
    %v4429 = vadd.f32 %v4236, %v4428
    %v4430 = vpop.f32.mrf.mxu0
    %v4431 = vadd.f32 %v4238, %v4430
    %v4432 = vpop.f32.mrf.mxu0
    %v4433 = vadd.f32 %v4240, %v4432
    %v4434 = vpop.f32.mrf.mxu0
    %v4435 = vadd.f32 %v4242, %v4434
    %4436 = vmatprep.mubr.bf16.mxu0 %v1845
    %4437 = vmatmul.mubr.bf16.gmra.mxu0 %v1844
    %v4438 = vpop.f32.mrf.mxu0
    %v4439 = vadd.f32 %v4246, %v4438
    %v4440 = vpop.f32.mrf.mxu0
    %v4441 = vadd.f32 %v4248, %v4440
    %v4442 = vpop.f32.mrf.mxu0
    %v4443 = vadd.f32 %v4250, %v4442
    %v4444 = vpop.f32.mrf.mxu0
    %v4445 = vadd.f32 %v4252, %v4444
    %4446 = vmatprep.mubr.bf16.mxu0 %v1849
    %4447 = vmatmul.mubr.bf16.gmra.mxu0 %v1848
    %v4448 = vpop.f32.mrf.mxu0
    %v4449 = vadd.f32 %v4256, %v4448
    %v4450 = vpop.f32.mrf.mxu0
    %v4451 = vadd.f32 %v4258, %v4450
    %v4452 = vpop.f32.mrf.mxu0
    %v4453 = vadd.f32 %v4260, %v4452
    %v4454 = vpop.f32.mrf.mxu0
    %v4455 = vadd.f32 %v4262, %v4454
    %4456 = vmatprep.mubr.bf16.mxu0 %v1853
    %4457 = vmatmul.mubr.bf16.gmra.mxu0 %v1852
    %v4458 = vpop.f32.mrf.mxu0
    %v4459 = vadd.f32 %v4266, %v4458
    %v4460 = vpop.f32.mrf.mxu0
    %v4461 = vadd.f32 %v4268, %v4460
    %v4462 = vpop.f32.mrf.mxu0
    %v4463 = vadd.f32 %v4270, %v4462
    %v4464 = vpop.f32.mrf.mxu0
    %v4465 = vadd.f32 %v4272, %v4464
    %4466 = vmatprep.mubr.bf16.mxu0 %v1857
    %4467 = vmatmul.mubr.bf16.gmra.mxu0 %v1856
    %v4468 = vpop.f32.mrf.mxu0
    %v4469 = vadd.f32 %v4276, %v4468
    %v4470 = vpop.f32.mrf.mxu0
    %v4471 = vadd.f32 %v4278, %v4470
    %v4472 = vpop.f32.mrf.mxu0
    %v4473 = vadd.f32 %v4280, %v4472
    %v4474 = vpop.f32.mrf.mxu0
    %v4475 = vadd.f32 %v4282, %v4474
    %4476 = vmatprep.mubr.bf16.mxu0 %v1861
    %4477 = vmatmul.mubr.bf16.gmra.mxu0 %v1860
    %v4478 = vpop.f32.mrf.mxu0
    %v4479 = vadd.f32 %v4286, %v4478
    %v4480 = vpop.f32.mrf.mxu0
    %v4481 = vadd.f32 %v4288, %v4480
    %v4482 = vpop.f32.mrf.mxu0
    %v4483 = vadd.f32 %v4290, %v4482
    %v4484 = vpop.f32.mrf.mxu0
    %v4485 = vadd.f32 %v4292, %v4484
    %4486 = vmatprep.mubr.bf16.mxu0 %v1865
    %4487 = vmatmul.mubr.bf16.gmra.mxu0 %v1864
    %v4488 = vpop.f32.mrf.mxu0
    %v4489 = vadd.f32 %v4296, %v4488
    %v4490 = vpop.f32.mrf.mxu0
    %v4491 = vadd.f32 %v4298, %v4490
    %v4492 = vpop.f32.mrf.mxu0
    %v4493 = vadd.f32 %v4300, %v4492
    %v4494 = vpop.f32.mrf.mxu0
    %v4495 = vadd.f32 %v4302, %v4494
    %4496 = vdwg.mxu0
    %4497 = vmatprep.subr.bf16.mxu0 0
    %4498 = vmatpush1.bf16.msra.mxu0 %v2946
    %4499 = vmatprep.subr.bf16.mxu0 0
    %4500 = vmatpush1.bf16.msra.mxu0 %v2939
    %4501 = vmatprep.subr.bf16.mxu0 0
    %4502 = vmatpush1.bf16.msra.mxu0 %v2932
    %4503 = vmatprep.subr.bf16.mxu0 0
    %4504 = vmatpush1.bf16.msra.mxu0 %v2925
    %4505 = vmatprep.subr.bf16.mxu0 0
    %4506 = vmatpush1.bf16.msra.mxu0 %v2918
    %4507 = vmatprep.subr.bf16.mxu0 0
    %4508 = vmatpush1.bf16.msra.mxu0 %v2911
    %4509 = vmatprep.subr.bf16.mxu0 0
    %4510 = vmatpush1.bf16.msra.mxu0 %v2904
    %4511 = vmatprep.subr.bf16.mxu0 0
    %4512 = vmatpush1.bf16.msra.mxu0 %v2897
    %4513 = vmatprep.subr.bf16.mxu0 0
    %4514 = vmatpush2.bf16.msra.mxu0 %v3002
    %4515 = vmatprep.subr.bf16.mxu0 0
    %4516 = vmatpush2.bf16.msra.mxu0 %v2995
    %4517 = vmatprep.subr.bf16.mxu0 0
    %4518 = vmatpush2.bf16.msra.mxu0 %v2988
    %4519 = vmatprep.subr.bf16.mxu0 0
    %4520 = vmatpush2.bf16.msra.mxu0 %v2981
    %4521 = vmatprep.subr.bf16.mxu0 0
    %4522 = vmatpush2.bf16.msra.mxu0 %v2974
    %4523 = vmatprep.subr.bf16.mxu0 0
    %4524 = vmatpush2.bf16.msra.mxu0 %v2967
    %4525 = vmatprep.subr.bf16.mxu0 0
    %4526 = vmatpush2.bf16.msra.mxu0 %v2960
    %4527 = vmatprep.subr.bf16.mxu0 0
    %4528 = vmatpush2.bf16.msra.mxu0 %v2953
    %4529 = vmatprep.mubr.bf16.mxu0 %v1803
    %4530 = vmatmul.mubr.bf16.gmra.mxu0 %v1802
    %v4531 = vpop.f32.mrf.mxu0
    %v4532 = vadd.f32 %v2186, %v4531
    %v4533 = vpop.f32.mrf.mxu0
    %v4534 = vpop.f32.mrf.mxu0
    %v4535 = vadd.f32 %v2186, %v4534
    %v4536 = vpop.f32.mrf.mxu0
    %4537 = vmatprep.mubr.bf16.mxu0 %v1807
    %4538 = vmatmul.mubr.bf16.gmra.mxu0 %v1806
    %v4539 = vpop.f32.mrf.mxu0
    %v4540 = vadd.f32 %v2186, %v4539
    %v4541 = vpop.f32.mrf.mxu0
    %v4542 = vpop.f32.mrf.mxu0
    %v4543 = vadd.f32 %v2186, %v4542
    %v4544 = vpop.f32.mrf.mxu0
    %4545 = vmatprep.mubr.bf16.mxu0 %v1811
    %4546 = vmatmul.mubr.bf16.gmra.mxu0 %v1810
    %v4547 = vpop.f32.mrf.mxu0
    %v4548 = vadd.f32 %v2186, %v4547
    %v4549 = vpop.f32.mrf.mxu0
    %v4550 = vpop.f32.mrf.mxu0
    %v4551 = vadd.f32 %v2186, %v4550
    %v4552 = vpop.f32.mrf.mxu0
    %4553 = vmatprep.mubr.bf16.mxu0 %v1815
    %4554 = vmatmul.mubr.bf16.gmra.mxu0 %v1814
    %v4555 = vpop.f32.mrf.mxu0
    %v4556 = vadd.f32 %v2186, %v4555
    %v4557 = vpop.f32.mrf.mxu0
    %v4558 = vpop.f32.mrf.mxu0
    %v4559 = vadd.f32 %v2186, %v4558
    %v4560 = vpop.f32.mrf.mxu0
    %4561 = vmatprep.mubr.bf16.mxu0 %v1819
    %4562 = vmatmul.mubr.bf16.gmra.mxu0 %v1818
    %v4563 = vpop.f32.mrf.mxu0
    %v4564 = vadd.f32 %v2186, %v4563
    %v4565 = vpop.f32.mrf.mxu0
    %v4566 = vpop.f32.mrf.mxu0
    %v4567 = vadd.f32 %v2186, %v4566
    %v4568 = vpop.f32.mrf.mxu0
    %4569 = vmatprep.mubr.bf16.mxu0 %v1823
    %4570 = vmatmul.mubr.bf16.gmra.mxu0 %v1822
    %v4571 = vpop.f32.mrf.mxu0
    %v4572 = vadd.f32 %v2186, %v4571
    %v4573 = vpop.f32.mrf.mxu0
    %v4574 = vpop.f32.mrf.mxu0
    %v4575 = vadd.f32 %v2186, %v4574
    %v4576 = vpop.f32.mrf.mxu0
    %4577 = vmatprep.mubr.bf16.mxu0 %v1827
    %4578 = vmatmul.mubr.bf16.gmra.mxu0 %v1826
    %v4579 = vpop.f32.mrf.mxu0
    %v4580 = vadd.f32 %v2186, %v4579
    %v4581 = vpop.f32.mrf.mxu0
    %v4582 = vpop.f32.mrf.mxu0
    %v4583 = vadd.f32 %v2186, %v4582
    %v4584 = vpop.f32.mrf.mxu0
    %4585 = vmatprep.mubr.bf16.mxu0 %v1831
    %4586 = vmatmul.mubr.bf16.gmra.mxu0 %v1830
    %v4587 = vpop.f32.mrf.mxu0
    %v4588 = vadd.f32 %v2186, %v4587
    %v4589 = vpop.f32.mrf.mxu0
    %v4590 = vpop.f32.mrf.mxu0
    %v4591 = vadd.f32 %v2186, %v4590
    %v4592 = vpop.f32.mrf.mxu0
    %4593 = vmatprep.mubr.bf16.mxu0 %v1835
    %4594 = vmatmul.mubr.bf16.gmra.mxu0 %v1834
    %v4595 = vpop.f32.mrf.mxu0
    %v4596 = vadd.f32 %v2186, %v4595
    %v4597 = vpop.f32.mrf.mxu0
    %v4598 = vpop.f32.mrf.mxu0
    %v4599 = vadd.f32 %v2186, %v4598
    %v4600 = vpop.f32.mrf.mxu0
    %4601 = vmatprep.mubr.bf16.mxu0 %v1839
    %4602 = vmatmul.mubr.bf16.gmra.mxu0 %v1838
    %v4603 = vpop.f32.mrf.mxu0
    %v4604 = vadd.f32 %v2186, %v4603
    %v4605 = vpop.f32.mrf.mxu0
    %v4606 = vpop.f32.mrf.mxu0
    %v4607 = vadd.f32 %v2186, %v4606
    %v4608 = vpop.f32.mrf.mxu0
    %4609 = vmatprep.mubr.bf16.mxu0 %v1843
    %4610 = vmatmul.mubr.bf16.gmra.mxu0 %v1842
    %v4611 = vpop.f32.mrf.mxu0
    %v4612 = vadd.f32 %v2186, %v4611
    %v4613 = vpop.f32.mrf.mxu0
    %v4614 = vpop.f32.mrf.mxu0
    %v4615 = vadd.f32 %v2186, %v4614
    %v4616 = vpop.f32.mrf.mxu0
    %4617 = vmatprep.mubr.bf16.mxu0 %v1847
    %4618 = vmatmul.mubr.bf16.gmra.mxu0 %v1846
    %v4619 = vpop.f32.mrf.mxu0
    %v4620 = vadd.f32 %v2186, %v4619
    %v4621 = vpop.f32.mrf.mxu0
    %v4622 = vpop.f32.mrf.mxu0
    %v4623 = vadd.f32 %v2186, %v4622
    %v4624 = vpop.f32.mrf.mxu0
    %4625 = vmatprep.mubr.bf16.mxu0 %v1851
    %4626 = vmatmul.mubr.bf16.gmra.mxu0 %v1850
    %v4627 = vpop.f32.mrf.mxu0
    %v4628 = vadd.f32 %v2186, %v4627
    %v4629 = vpop.f32.mrf.mxu0
    %v4630 = vpop.f32.mrf.mxu0
    %v4631 = vadd.f32 %v2186, %v4630
    %v4632 = vpop.f32.mrf.mxu0
    %4633 = vmatprep.mubr.bf16.mxu0 %v1855
    %4634 = vmatmul.mubr.bf16.gmra.mxu0 %v1854
    %v4635 = vpop.f32.mrf.mxu0
    %v4636 = vadd.f32 %v2186, %v4635
    %v4637 = vpop.f32.mrf.mxu0
    %v4638 = vpop.f32.mrf.mxu0
    %v4639 = vadd.f32 %v2186, %v4638
    %v4640 = vpop.f32.mrf.mxu0
    %4641 = vmatprep.mubr.bf16.mxu0 %v1859
    %4642 = vmatmul.mubr.bf16.gmra.mxu0 %v1858
    %v4643 = vpop.f32.mrf.mxu0
    %v4644 = vadd.f32 %v2186, %v4643
    %v4645 = vpop.f32.mrf.mxu0
    %v4646 = vpop.f32.mrf.mxu0
    %v4647 = vadd.f32 %v2186, %v4646
    %v4648 = vpop.f32.mrf.mxu0
    %4649 = vmatprep.mubr.bf16.mxu0 %v1863
    %4650 = vmatmul.mubr.bf16.gmra.mxu0 %v1862
    %v4651 = vpop.f32.mrf.mxu0
    %v4652 = vadd.f32 %v2186, %v4651
    %v4653 = vpop.f32.mrf.mxu0
    %v4654 = vpop.f32.mrf.mxu0
    %v4655 = vadd.f32 %v2186, %v4654
    %v4656 = vpop.f32.mrf.mxu0
    %4657 = vdwg.mxu0
    %4658 = vmatprep.subr.bf16.mxu0 0
    %4659 = vmatpush1.bf16.msra.mxu0 %v3058
    %4660 = vmatprep.subr.bf16.mxu0 0
    %4661 = vmatpush1.bf16.msra.mxu0 %v3051
    %4662 = vmatprep.subr.bf16.mxu0 0
    %4663 = vmatpush1.bf16.msra.mxu0 %v3044
    %4664 = vmatprep.subr.bf16.mxu0 0
    %4665 = vmatpush1.bf16.msra.mxu0 %v3037
    %4666 = vmatprep.subr.bf16.mxu0 0
    %4667 = vmatpush1.bf16.msra.mxu0 %v3030
    %4668 = vmatprep.subr.bf16.mxu0 0
    %4669 = vmatpush1.bf16.msra.mxu0 %v3023
    %4670 = vmatprep.subr.bf16.mxu0 0
    %4671 = vmatpush1.bf16.msra.mxu0 %v3016
    %4672 = vmatprep.subr.bf16.mxu0 0
    %4673 = vmatpush1.bf16.msra.mxu0 %v3009
    %4674 = vmatprep.subr.bf16.mxu0 0
    %4675 = vmatpush2.bf16.msra.mxu0 %v3114
    %4676 = vmatprep.subr.bf16.mxu0 0
    %4677 = vmatpush2.bf16.msra.mxu0 %v3107
    %4678 = vmatprep.subr.bf16.mxu0 0
    %4679 = vmatpush2.bf16.msra.mxu0 %v3100
    %4680 = vmatprep.subr.bf16.mxu0 0
    %4681 = vmatpush2.bf16.msra.mxu0 %v3093
    %4682 = vmatprep.subr.bf16.mxu0 0
    %4683 = vmatpush2.bf16.msra.mxu0 %v3086
    %4684 = vmatprep.subr.bf16.mxu0 0
    %4685 = vmatpush2.bf16.msra.mxu0 %v3079
    %4686 = vmatprep.subr.bf16.mxu0 0
    %4687 = vmatpush2.bf16.msra.mxu0 %v3072
    %4688 = vmatprep.subr.bf16.mxu0 0
    %4689 = vmatpush2.bf16.msra.mxu0 %v3065
    %4690 = vmatprep.mubr.bf16.mxu0 %v1805
    %4691 = vmatmul.mubr.bf16.gmra.mxu0 %v1804
    %v4692 = vpop.f32.mrf.mxu0
    %v4693 = vadd.f32 %v4532, %v4692
    %v4694 = vpop.f32.mrf.mxu0
    %v4695 = vpop.f32.mrf.mxu0
    %v4696 = vadd.f32 %v4535, %v4695
    %v4697 = vpop.f32.mrf.mxu0
    %4698 = vmatprep.mubr.bf16.mxu0 %v1809
    %4699 = vmatmul.mubr.bf16.gmra.mxu0 %v1808
    %v4700 = vpop.f32.mrf.mxu0
    %v4701 = vadd.f32 %v4540, %v4700
    %v4702 = vpop.f32.mrf.mxu0
    %v4703 = vpop.f32.mrf.mxu0
    %v4704 = vadd.f32 %v4543, %v4703
    %v4705 = vpop.f32.mrf.mxu0
    %4706 = vmatprep.mubr.bf16.mxu0 %v1813
    %4707 = vmatmul.mubr.bf16.gmra.mxu0 %v1812
    %v4708 = vpop.f32.mrf.mxu0
    %v4709 = vadd.f32 %v4548, %v4708
    %v4710 = vpop.f32.mrf.mxu0
    %v4711 = vpop.f32.mrf.mxu0
    %v4712 = vadd.f32 %v4551, %v4711
    %v4713 = vpop.f32.mrf.mxu0
    %4714 = vmatprep.mubr.bf16.mxu0 %v1817
    %4715 = vmatmul.mubr.bf16.gmra.mxu0 %v1816
    %v4716 = vpop.f32.mrf.mxu0
    %v4717 = vadd.f32 %v4556, %v4716
    %v4718 = vpop.f32.mrf.mxu0
    %v4719 = vpop.f32.mrf.mxu0
    %v4720 = vadd.f32 %v4559, %v4719
    %v4721 = vpop.f32.mrf.mxu0
    %4722 = vmatprep.mubr.bf16.mxu0 %v1821
    %4723 = vmatmul.mubr.bf16.gmra.mxu0 %v1820
    %v4724 = vpop.f32.mrf.mxu0
    %v4725 = vadd.f32 %v4564, %v4724
    %v4726 = vpop.f32.mrf.mxu0
    %v4727 = vpop.f32.mrf.mxu0
    %v4728 = vadd.f32 %v4567, %v4727
    %v4729 = vpop.f32.mrf.mxu0
    %4730 = vmatprep.mubr.bf16.mxu0 %v1825
    %4731 = vmatmul.mubr.bf16.gmra.mxu0 %v1824
    %v4732 = vpop.f32.mrf.mxu0
    %v4733 = vadd.f32 %v4572, %v4732
    %v4734 = vpop.f32.mrf.mxu0
    %v4735 = vpop.f32.mrf.mxu0
    %v4736 = vadd.f32 %v4575, %v4735
    %v4737 = vpop.f32.mrf.mxu0
    %4738 = vmatprep.mubr.bf16.mxu0 %v1829
    %4739 = vmatmul.mubr.bf16.gmra.mxu0 %v1828
    %v4740 = vpop.f32.mrf.mxu0
    %v4741 = vadd.f32 %v4580, %v4740
    %v4742 = vpop.f32.mrf.mxu0
    %v4743 = vpop.f32.mrf.mxu0
    %v4744 = vadd.f32 %v4583, %v4743
    %v4745 = vpop.f32.mrf.mxu0
    %4746 = vmatprep.mubr.bf16.mxu0 %v1833
    %4747 = vmatmul.mubr.bf16.gmra.mxu0 %v1832
    %v4748 = vpop.f32.mrf.mxu0
    %v4749 = vadd.f32 %v4588, %v4748
    %v4750 = vpop.f32.mrf.mxu0
    %v4751 = vpop.f32.mrf.mxu0
    %v4752 = vadd.f32 %v4591, %v4751
    %v4753 = vpop.f32.mrf.mxu0
    %4754 = vmatprep.mubr.bf16.mxu0 %v1837
    %4755 = vmatmul.mubr.bf16.gmra.mxu0 %v1836
    %v4756 = vpop.f32.mrf.mxu0
    %v4757 = vadd.f32 %v4596, %v4756
    %v4758 = vpop.f32.mrf.mxu0
    %v4759 = vpop.f32.mrf.mxu0
    %v4760 = vadd.f32 %v4599, %v4759
    %v4761 = vpop.f32.mrf.mxu0
    %4762 = vmatprep.mubr.bf16.mxu0 %v1841
    %4763 = vmatmul.mubr.bf16.gmra.mxu0 %v1840
    %v4764 = vpop.f32.mrf.mxu0
    %v4765 = vadd.f32 %v4604, %v4764
    %v4766 = vpop.f32.mrf.mxu0
    %v4767 = vpop.f32.mrf.mxu0
    %v4768 = vadd.f32 %v4607, %v4767
    %v4769 = vpop.f32.mrf.mxu0
    %4770 = vmatprep.mubr.bf16.mxu0 %v1845
    %4771 = vmatmul.mubr.bf16.gmra.mxu0 %v1844
    %v4772 = vpop.f32.mrf.mxu0
    %v4773 = vadd.f32 %v4612, %v4772
    %v4774 = vpop.f32.mrf.mxu0
    %v4775 = vpop.f32.mrf.mxu0
    %v4776 = vadd.f32 %v4615, %v4775
    %v4777 = vpop.f32.mrf.mxu0
    %4778 = vmatprep.mubr.bf16.mxu0 %v1849
    %4779 = vmatmul.mubr.bf16.gmra.mxu0 %v1848
    %v4780 = vpop.f32.mrf.mxu0
    %v4781 = vadd.f32 %v4620, %v4780
    %v4782 = vpop.f32.mrf.mxu0
    %v4783 = vpop.f32.mrf.mxu0
    %v4784 = vadd.f32 %v4623, %v4783
    %v4785 = vpop.f32.mrf.mxu0
    %4786 = vmatprep.mubr.bf16.mxu0 %v1853
    %4787 = vmatmul.mubr.bf16.gmra.mxu0 %v1852
    %v4788 = vpop.f32.mrf.mxu0
    %v4789 = vadd.f32 %v4628, %v4788
    %v4790 = vpop.f32.mrf.mxu0
    %v4791 = vpop.f32.mrf.mxu0
    %v4792 = vadd.f32 %v4631, %v4791
    %v4793 = vpop.f32.mrf.mxu0
    %4794 = vmatprep.mubr.bf16.mxu0 %v1857
    %4795 = vmatmul.mubr.bf16.gmra.mxu0 %v1856
    %v4796 = vpop.f32.mrf.mxu0
    %v4797 = vadd.f32 %v4636, %v4796
    %v4798 = vpop.f32.mrf.mxu0
    %v4799 = vpop.f32.mrf.mxu0
    %v4800 = vadd.f32 %v4639, %v4799
    %v4801 = vpop.f32.mrf.mxu0
    %4802 = vmatprep.mubr.bf16.mxu0 %v1861
    %4803 = vmatmul.mubr.bf16.gmra.mxu0 %v1860
    %v4804 = vpop.f32.mrf.mxu0
    %v4805 = vadd.f32 %v4644, %v4804
    %v4806 = vpop.f32.mrf.mxu0
    %v4807 = vpop.f32.mrf.mxu0
    %v4808 = vadd.f32 %v4647, %v4807
    %v4809 = vpop.f32.mrf.mxu0
    %4810 = vmatprep.mubr.bf16.mxu0 %v1865
    %4811 = vmatmul.mubr.bf16.gmra.mxu0 %v1864
    %v4812 = vpop.f32.mrf.mxu0
    %v4813 = vadd.f32 %v4652, %v4812
    %v4814 = vpop.f32.mrf.mxu0
    %v4815 = vpop.f32.mrf.mxu0
    %v4816 = vadd.f32 %v4655, %v4815
    %v4817 = vpop.f32.mrf.mxu0
    %4818 = vdwg.mxu0
    %4819 = vst [vmem:[#allocation7] sm:$0xff] %v3567
    %4820 = vst [vmem:[#allocation7 + $0x8] sm:$0xff] %v3569
    %4821 = vst [vmem:[#allocation7 + $0x10] sm:$0xff] %v3953
    %4822 = vst [vmem:[#allocation7 + $0x18] sm:$0xff] %v3955
    %4823 = vst [vmem:[#allocation7 + $0x20] sm:$0xff] %v4339
    %4824 = vst [vmem:[#allocation7 + $0x28] sm:$0xff] %v4341
    %4825 = vst [vmem:[#allocation7 + $0x30] sm:$0xff] %v4693
    %4826 = vst [vmem:[#allocation7 + $0x38] sm:$0xff] %v3571
    %4827 = vst [vmem:[#allocation7 + $0x40] sm:$0xff] %v3573
    %4828 = vst [vmem:[#allocation7 + $0x48] sm:$0xff] %v3957
    %4829 = vst [vmem:[#allocation7 + $0x50] sm:$0xff] %v3959
    %4830 = vst [vmem:[#allocation7 + $0x58] sm:$0xff] %v4343
    %4831 = vst [vmem:[#allocation7 + $0x60] sm:$0xff] %v4345
    %4832 = vst [vmem:[#allocation7 + $0x68] sm:$0xff] %v4696
    %4833 = vst [vmem:[#allocation7 + $0x70] sm:$0xff] %v3577
    %4834 = vst [vmem:[#allocation7 + $0x78] sm:$0xff] %v3579
    %4835 = vst [vmem:[#allocation7 + $0x80] sm:$0xff] %v3963
    %4836 = vst [vmem:[#allocation7 + $0x88] sm:$0xff] %v3965
    %4837 = vst [vmem:[#allocation7 + $0x90] sm:$0xff] %v4349
    %4838 = vst [vmem:[#allocation7 + $0x98] sm:$0xff] %v4351
    %4839 = vst [vmem:[#allocation7 + $0xa0] sm:$0xff] %v4701
    %4840 = vst [vmem:[#allocation7 + $0xa8] sm:$0xff] %v3581
    %4841 = vst [vmem:[#allocation7 + $0xb0] sm:$0xff] %v3583
    %4842 = vst [vmem:[#allocation7 + $0xb8] sm:$0xff] %v3967
    %4843 = vst [vmem:[#allocation7 + $0xc0] sm:$0xff] %v3969
    %4844 = vst [vmem:[#allocation7 + $0xc8] sm:$0xff] %v4353
    %4845 = vst [vmem:[#allocation7 + $0xd0] sm:$0xff] %v4355
    %4846 = vst [vmem:[#allocation7 + $0xd8] sm:$0xff] %v4704
    %4847 = vst [vmem:[#allocation7 + $0xe0] sm:$0xff] %v3587
    %4848 = vst [vmem:[#allocation7 + $0xe8] sm:$0xff] %v3589
    %4849 = vst [vmem:[#allocation7 + $0xf0] sm:$0xff] %v3973
    %4850 = vst [vmem:[#allocation7 + $0xf8] sm:$0xff] %v3975
    %4851 = vst [vmem:[#allocation7 + $0x100] sm:$0xff] %v4359
    %4852 = vst [vmem:[#allocation7 + $0x108] sm:$0xff] %v4361
    %4853 = vst [vmem:[#allocation7 + $0x110] sm:$0xff] %v4709
    %4854 = vst [vmem:[#allocation7 + $0x118] sm:$0xff] %v3591
    %4855 = vst [vmem:[#allocation7 + $0x120] sm:$0xff] %v3593
    %4856 = vst [vmem:[#allocation7 + $0x128] sm:$0xff] %v3977
    %4857 = vst [vmem:[#allocation7 + $0x130] sm:$0xff] %v3979
    %4858 = vst [vmem:[#allocation7 + $0x138] sm:$0xff] %v4363
    %4859 = vst [vmem:[#allocation7 + $0x140] sm:$0xff] %v4365
    %4860 = vst [vmem:[#allocation7 + $0x148] sm:$0xff] %v4712
    %4861 = vst [vmem:[#allocation7 + $0x150] sm:$0xff] %v3597
    %4862 = vst [vmem:[#allocation7 + $0x158] sm:$0xff] %v3599
    %4863 = vst [vmem:[#allocation7 + $0x160] sm:$0xff] %v3983
    %4864 = vst [vmem:[#allocation7 + $0x168] sm:$0xff] %v3985
    %4865 = vst [vmem:[#allocation7 + $0x170] sm:$0xff] %v4369
    %4866 = vst [vmem:[#allocation7 + $0x178] sm:$0xff] %v4371
    %4867 = vst [vmem:[#allocation7 + $0x180] sm:$0xff] %v4717
    %4868 = vst [vmem:[#allocation7 + $0x188] sm:$0xff] %v3601
    %4869 = vst [vmem:[#allocation7 + $0x190] sm:$0xff] %v3603
    %4870 = vst [vmem:[#allocation7 + $0x198] sm:$0xff] %v3987
    %4871 = vst [vmem:[#allocation7 + $0x1a0] sm:$0xff] %v3989
    %4872 = vst [vmem:[#allocation7 + $0x1a8] sm:$0xff] %v4373
    %4873 = vst [vmem:[#allocation7 + $0x1b0] sm:$0xff] %v4375
    %4874 = vst [vmem:[#allocation7 + $0x1b8] sm:$0xff] %v4720
    %4875 = vst [vmem:[#allocation7 + $0x1c0] sm:$0xff] %v3607
    %4876 = vst [vmem:[#allocation7 + $0x1c8] sm:$0xff] %v3609
    %4877 = vst [vmem:[#allocation7 + $0x1d0] sm:$0xff] %v3993
    %4878 = vst [vmem:[#allocation7 + $0x1d8] sm:$0xff] %v3995
    %4879 = vst [vmem:[#allocation7 + $0x1e0] sm:$0xff] %v4379
    %4880 = vst [vmem:[#allocation7 + $0x1e8] sm:$0xff] %v4381
    %4881 = vst [vmem:[#allocation7 + $0x1f0] sm:$0xff] %v4725
    %4882 = vst [vmem:[#allocation7 + $0x1f8] sm:$0xff] %v3611
    %4883 = vst [vmem:[#allocation7 + $0x200] sm:$0xff] %v3613
    %4884 = vst [vmem:[#allocation7 + $0x208] sm:$0xff] %v3997
    %4885 = vst [vmem:[#allocation7 + $0x210] sm:$0xff] %v3999
    %4886 = vst [vmem:[#allocation7 + $0x218] sm:$0xff] %v4383
    %4887 = vst [vmem:[#allocation7 + $0x220] sm:$0xff] %v4385
    %4888 = vst [vmem:[#allocation7 + $0x228] sm:$0xff] %v4728
    %4889 = vst [vmem:[#allocation7 + $0x230] sm:$0xff] %v3617
    %4890 = vst [vmem:[#allocation7 + $0x238] sm:$0xff] %v3619
    %4891 = vst [vmem:[#allocation7 + $0x240] sm:$0xff] %v4003
    %4892 = vst [vmem:[#allocation7 + $0x248] sm:$0xff] %v4005
    %4893 = vst [vmem:[#allocation7 + $0x250] sm:$0xff] %v4389
    %4894 = vst [vmem:[#allocation7 + $0x258] sm:$0xff] %v4391
    %4895 = vst [vmem:[#allocation7 + $0x260] sm:$0xff] %v4733
    %4896 = vst [vmem:[#allocation7 + $0x268] sm:$0xff] %v3621
    %4897 = vst [vmem:[#allocation7 + $0x270] sm:$0xff] %v3623
    %4898 = vst [vmem:[#allocation7 + $0x278] sm:$0xff] %v4007
    %4899 = vst [vmem:[#allocation7 + $0x280] sm:$0xff] %v4009
    %4900 = vst [vmem:[#allocation7 + $0x288] sm:$0xff] %v4393
    %4901 = vst [vmem:[#allocation7 + $0x290] sm:$0xff] %v4395
    %4902 = vst [vmem:[#allocation7 + $0x298] sm:$0xff] %v4736
    %4903 = vst [vmem:[#allocation7 + $0x2a0] sm:$0xff] %v3627
    %4904 = vst [vmem:[#allocation7 + $0x2a8] sm:$0xff] %v3629
    %4905 = vst [vmem:[#allocation7 + $0x2b0] sm:$0xff] %v4013
    %4906 = vst [vmem:[#allocation7 + $0x2b8] sm:$0xff] %v4015
    %4907 = vst [vmem:[#allocation7 + $0x2c0] sm:$0xff] %v4399
    %4908 = vst [vmem:[#allocation7 + $0x2c8] sm:$0xff] %v4401
    %4909 = vst [vmem:[#allocation7 + $0x2d0] sm:$0xff] %v4741
    %4910 = vst [vmem:[#allocation7 + $0x2d8] sm:$0xff] %v3631
    %4911 = vst [vmem:[#allocation7 + $0x2e0] sm:$0xff] %v3633
    %4912 = vst [vmem:[#allocation7 + $0x2e8] sm:$0xff] %v4017
    %4913 = vst [vmem:[#allocation7 + $0x2f0] sm:$0xff] %v4019
    %4914 = vst [vmem:[#allocation7 + $0x2f8] sm:$0xff] %v4403
    %4915 = vst [vmem:[#allocation7 + $0x300] sm:$0xff] %v4405
    %4916 = vst [vmem:[#allocation7 + $0x308] sm:$0xff] %v4744
    %4917 = vst [vmem:[#allocation7 + $0x310] sm:$0xff] %v3637
    %4918 = vst [vmem:[#allocation7 + $0x318] sm:$0xff] %v3639
    %4919 = vst [vmem:[#allocation7 + $0x320] sm:$0xff] %v4023
    %4920 = vst [vmem:[#allocation7 + $0x328] sm:$0xff] %v4025
    %4921 = vst [vmem:[#allocation7 + $0x330] sm:$0xff] %v4409
    %4922 = vst [vmem:[#allocation7 + $0x338] sm:$0xff] %v4411
    %4923 = vst [vmem:[#allocation7 + $0x340] sm:$0xff] %v4749
    %4924 = vst [vmem:[#allocation7 + $0x348] sm:$0xff] %v3641
    %4925 = vst [vmem:[#allocation7 + $0x350] sm:$0xff] %v3643
    %4926 = vst [vmem:[#allocation7 + $0x358] sm:$0xff] %v4027
    %4927 = vst [vmem:[#allocation7 + $0x360] sm:$0xff] %v4029
    %4928 = vst [vmem:[#allocation7 + $0x368] sm:$0xff] %v4413
    %4929 = vst [vmem:[#allocation7 + $0x370] sm:$0xff] %v4415
    %4930 = vst [vmem:[#allocation7 + $0x378] sm:$0xff] %v4752
    %4931 = vst [vmem:[#allocation7 + $0x380] sm:$0xff] %v3647
    %4932 = vst [vmem:[#allocation7 + $0x388] sm:$0xff] %v3649
    %4933 = vst [vmem:[#allocation7 + $0x390] sm:$0xff] %v4033
    %4934 = vst [vmem:[#allocation7 + $0x398] sm:$0xff] %v4035
    %4935 = vst [vmem:[#allocation7 + $0x3a0] sm:$0xff] %v4419
    %4936 = vst [vmem:[#allocation7 + $0x3a8] sm:$0xff] %v4421
    %4937 = vst [vmem:[#allocation7 + $0x3b0] sm:$0xff] %v4757
    %4938 = vst [vmem:[#allocation7 + $0x3b8] sm:$0xff] %v3651
    %4939 = vst [vmem:[#allocation7 + $0x3c0] sm:$0xff] %v3653
    %4940 = vst [vmem:[#allocation7 + $0x3c8] sm:$0xff] %v4037
    %4941 = vst [vmem:[#allocation7 + $0x3d0] sm:$0xff] %v4039
    %4942 = vst [vmem:[#allocation7 + $0x3d8] sm:$0xff] %v4423
    %4943 = vst [vmem:[#allocation7 + $0x3e0] sm:$0xff] %v4425
    %4944 = vst [vmem:[#allocation7 + $0x3e8] sm:$0xff] %v4760
    %4945 = vst [vmem:[#allocation7 + $0x3f0] sm:$0xff] %v3657
    %4946 = vst [vmem:[#allocation7 + $0x3f8] sm:$0xff] %v3659
    %4947 = vst [vmem:[#allocation7 + $0x400] sm:$0xff] %v4043
    %4948 = vst [vmem:[#allocation7 + $0x408] sm:$0xff] %v4045
    %4949 = vst [vmem:[#allocation7 + $0x410] sm:$0xff] %v4429
    %4950 = vst [vmem:[#allocation7 + $0x418] sm:$0xff] %v4431
    %4951 = vst [vmem:[#allocation7 + $0x420] sm:$0xff] %v4765
    %4952 = vst [vmem:[#allocation7 + $0x428] sm:$0xff] %v3661
    %4953 = vst [vmem:[#allocation7 + $0x430] sm:$0xff] %v3663
    %4954 = vst [vmem:[#allocation7 + $0x438] sm:$0xff] %v4047
    %4955 = vst [vmem:[#allocation7 + $0x440] sm:$0xff] %v4049
    %4956 = vst [vmem:[#allocation7 + $0x448] sm:$0xff] %v4433
    %4957 = vst [vmem:[#allocation7 + $0x450] sm:$0xff] %v4435
    %4958 = vst [vmem:[#allocation7 + $0x458] sm:$0xff] %v4768
    %4959 = vst [vmem:[#allocation7 + $0x460] sm:$0xff] %v3667
    %4960 = vst [vmem:[#allocation7 + $0x468] sm:$0xff] %v3669
    %4961 = vst [vmem:[#allocation7 + $0x470] sm:$0xff] %v4053
    %4962 = vst [vmem:[#allocation7 + $0x478] sm:$0xff] %v4055
    %4963 = vst [vmem:[#allocation7 + $0x480] sm:$0xff] %v4439
    %4964 = vst [vmem:[#allocation7 + $0x488] sm:$0xff] %v4441
    %4965 = vst [vmem:[#allocation7 + $0x490] sm:$0xff] %v4773
    %4966 = vst [vmem:[#allocation7 + $0x498] sm:$0xff] %v3671
    %4967 = vst [vmem:[#allocation7 + $0x4a0] sm:$0xff] %v3673
    %4968 = vst [vmem:[#allocation7 + $0x4a8] sm:$0xff] %v4057
    %4969 = vst [vmem:[#allocation7 + $0x4b0] sm:$0xff] %v4059
    %4970 = vst [vmem:[#allocation7 + $0x4b8] sm:$0xff] %v4443
    %4971 = vst [vmem:[#allocation7 + $0x4c0] sm:$0xff] %v4445
    %4972 = vst [vmem:[#allocation7 + $0x4c8] sm:$0xff] %v4776
    %4973 = vst [vmem:[#allocation7 + $0x4d0] sm:$0xff] %v3677
    %4974 = vst [vmem:[#allocation7 + $0x4d8] sm:$0xff] %v3679
    %4975 = vst [vmem:[#allocation7 + $0x4e0] sm:$0xff] %v4063
    %4976 = vst [vmem:[#allocation7 + $0x4e8] sm:$0xff] %v4065
    %4977 = vst [vmem:[#allocation7 + $0x4f0] sm:$0xff] %v4449
    %4978 = vst [vmem:[#allocation7 + $0x4f8] sm:$0xff] %v4451
    %4979 = vst [vmem:[#allocation7 + $0x500] sm:$0xff] %v4781
    %4980 = vst [vmem:[#allocation7 + $0x508] sm:$0xff] %v3681
    %4981 = vst [vmem:[#allocation7 + $0x510] sm:$0xff] %v3683
    %4982 = vst [vmem:[#allocation7 + $0x518] sm:$0xff] %v4067
    %4983 = vst [vmem:[#allocation7 + $0x520] sm:$0xff] %v4069
    %4984 = vst [vmem:[#allocation7 + $0x528] sm:$0xff] %v4453
    %4985 = vst [vmem:[#allocation7 + $0x530] sm:$0xff] %v4455
    %4986 = vst [vmem:[#allocation7 + $0x538] sm:$0xff] %v4784
    %4987 = vst [vmem:[#allocation7 + $0x540] sm:$0xff] %v3687
    %4988 = vst [vmem:[#allocation7 + $0x548] sm:$0xff] %v3689
    %4989 = vst [vmem:[#allocation7 + $0x550] sm:$0xff] %v4073
    %4990 = vst [vmem:[#allocation7 + $0x558] sm:$0xff] %v4075
    %4991 = vst [vmem:[#allocation7 + $0x560] sm:$0xff] %v4459
    %4992 = vst [vmem:[#allocation7 + $0x568] sm:$0xff] %v4461
    %4993 = vst [vmem:[#allocation7 + $0x570] sm:$0xff] %v4789
    %4994 = vst [vmem:[#allocation7 + $0x578] sm:$0xff] %v3691
    %4995 = vst [vmem:[#allocation7 + $0x580] sm:$0xff] %v3693
    %4996 = vst [vmem:[#allocation7 + $0x588] sm:$0xff] %v4077
    %4997 = vst [vmem:[#allocation7 + $0x590] sm:$0xff] %v4079
    %4998 = vst [vmem:[#allocation7 + $0x598] sm:$0xff] %v4463
    %4999 = vst [vmem:[#allocation7 + $0x5a0] sm:$0xff] %v4465
    %5000 = vst [vmem:[#allocation7 + $0x5a8] sm:$0xff] %v4792
    %5001 = vst [vmem:[#allocation7 + $0x5b0] sm:$0xff] %v3697
    %5002 = vst [vmem:[#allocation7 + $0x5b8] sm:$0xff] %v3699
    %5003 = vst [vmem:[#allocation7 + $0x5c0] sm:$0xff] %v4083
    %5004 = vst [vmem:[#allocation7 + $0x5c8] sm:$0xff] %v4085
    %5005 = vst [vmem:[#allocation7 + $0x5d0] sm:$0xff] %v4469
    %5006 = vst [vmem:[#allocation7 + $0x5d8] sm:$0xff] %v4471
    %5007 = vst [vmem:[#allocation7 + $0x5e0] sm:$0xff] %v4797
    %5008 = vst [vmem:[#allocation7 + $0x5e8] sm:$0xff] %v3701
    %5009 = vst [vmem:[#allocation7 + $0x5f0] sm:$0xff] %v3703
    %5010 = vst [vmem:[#allocation7 + $0x5f8] sm:$0xff] %v4087
    %5011 = vst [vmem:[#allocation7 + $0x600] sm:$0xff] %v4089
    %5012 = vst [vmem:[#allocation7 + $0x608] sm:$0xff] %v4473
    %5013 = vst [vmem:[#allocation7 + $0x610] sm:$0xff] %v4475
    %5014 = vst [vmem:[#allocation7 + $0x618] sm:$0xff] %v4800
    %5015 = vst [vmem:[#allocation7 + $0x620] sm:$0xff] %v3707
    %5016 = vst [vmem:[#allocation7 + $0x628] sm:$0xff] %v3709
    %5017 = vst [vmem:[#allocation7 + $0x630] sm:$0xff] %v4093
    %5018 = vst [vmem:[#allocation7 + $0x638] sm:$0xff] %v4095
    %5019 = vst [vmem:[#allocation7 + $0x640] sm:$0xff] %v4479
    %5020 = vst [vmem:[#allocation7 + $0x648] sm:$0xff] %v4481
    %5021 = vst [vmem:[#allocation7 + $0x650] sm:$0xff] %v4805
    %5022 = vst [vmem:[#allocation7 + $0x658] sm:$0xff] %v3711
    %5023 = vst [vmem:[#allocation7 + $0x660] sm:$0xff] %v3713
    %5024 = vst [vmem:[#allocation7 + $0x668] sm:$0xff] %v4097
    %5025 = vst [vmem:[#allocation7 + $0x670] sm:$0xff] %v4099
    %5026 = vst [vmem:[#allocation7 + $0x678] sm:$0xff] %v4483
    %5027 = vst [vmem:[#allocation7 + $0x680] sm:$0xff] %v4485
    %5028 = vst [vmem:[#allocation7 + $0x688] sm:$0xff] %v4808
    %5029 = vst [vmem:[#allocation7 + $0x690] sm:$0xff] %v3717
    %5030 = vst [vmem:[#allocation7 + $0x698] sm:$0xff] %v3719
    %5031 = vst [vmem:[#allocation7 + $0x6a0] sm:$0xff] %v4103
    %5032 = vst [vmem:[#allocation7 + $0x6a8] sm:$0xff] %v4105
    %5033 = vst [vmem:[#allocation7 + $0x6b0] sm:$0xff] %v4489
    %5034 = vst [vmem:[#allocation7 + $0x6b8] sm:$0xff] %v4491
    %5035 = vst [vmem:[#allocation7 + $0x6c0] sm:$0xff] %v4813
    %5036 = vst [vmem:[#allocation7 + $0x6c8] sm:$0xff] %v3721
    %5037 = vst [vmem:[#allocation7 + $0x6d0] sm:$0xff] %v3723
    %5038 = vst [vmem:[#allocation7 + $0x6d8] sm:$0xff] %v4107
    %5039 = vst [vmem:[#allocation7 + $0x6e0] sm:$0xff] %v4109
    %5040 = vst [vmem:[#allocation7 + $0x6e8] sm:$0xff] %v4493
    %5041 = vst [vmem:[#allocation7 + $0x6f0] sm:$0xff] %v4495
    %5042 = vst [vmem:[#allocation7 + $0x6f8] sm:$0xff] %v4816
    // Predicated region
    $region30: #{tpu_custom_call.1} parent=1 // pred_check
      _
    $region31: #{tpu_custom_call.1} parent=1 // pred_check_branch
      %5044 = sbr.rel (0) target = $region33
    $region32: #{tpu_custom_call.1} parent=1 // pred_region
      %s5046 = ssub.s32 28672, 28672
      %5047 = vsyncadd [#allocation4], %s5046
      %s5048 = sshll.u32 [#allocation7], 4
      %s5049 = int_to_ptr.vmem [resolvable:$true] %s5048
      %5054 = dma.vmem_to_hbm [thread:$0]  %s5049, 28672, %s5, [#allocation4], 896, 896, 56
    $region33: #{tpu_custom_call.1} parent=1 // pred_fallthru
      _
    // Predicated region
    $region34: #{tpu_custom_call.1} parent=1 // pred_check
      _
    $region35: #{tpu_custom_call.1} parent=1 // pred_check_branch
      %5056 = sbr.rel (0) target = $region37
    $region36: #{tpu_custom_call.1} parent=1 // pred_region
      %5057 = dma.done [#allocation4], 28672
    $region37: #{tpu_custom_call.1} parent=1 // pred_fallthru
      _
    %5058 = vsyncpa [#allocation3], 1
    %5059 = vsyncpa [#allocation6], 1
    %5060 = vsyncpa [#allocation4], 1

</llo_original>
